<compile_context>
chip_gen: v7x
topology: tpu7x:2x2x1
jax: 0.10.0
libtpu: 0.0.40
codegen_flags: <defaults>
</compile_context>

<pallas_src>
import math
import numpy as np

import jax
import jax.numpy as jnp
from jax import lax
from jax.experimental import pallas as pl
from jax.experimental.pallas import tpu as pltpu

NCP_NEURONS = 16        # args.ncp_neurons
HP = 128                # padded lane width (gate-packed activations / RHS columns)
HK = 32                 # packed RHS contraction depth (max d+h is 15 <= 32)
G = 32                  # gate column stride inside the packed RHS (gates at 0, G, 2G)


# ---------------------------------------------------------------------------
# AutoNCP wiring (numpy replica of ncps.wirings.AutoNCP / NCP, seed=22222)
# ---------------------------------------------------------------------------
def build_autoncp_wiring(units, output_size, input_dim, sparsity_level=0.5, seed=22222):
    density = 1.0 - sparsity_level
    inter_and_command = units - output_size
    command = max(int(0.4 * inter_and_command), 1)
    inter = inter_and_command - command
    sensory_fanout = max(int(inter * density), 1)
    inter_fanout = max(int(command * density), 1)
    recurrent_command = max(int(command * density * 2), 1)
    motor_fanin = max(int(command * density), 1)

    rng = np.random.RandomState(seed)
    motor_neurons = list(range(0, output_size))
    command_neurons = list(range(output_size, output_size + command))
    inter_neurons = list(range(output_size + command, output_size + command + inter))
    sensory_neurons = list(range(input_dim))

    adj = np.zeros((units, units), dtype=np.int32)
    sadj = np.zeros((input_dim, units), dtype=np.int32)

    # sensory -> inter
    unreachable = list(inter_neurons)
    for src in sensory_neurons:
        for dest in rng.choice(inter_neurons, size=sensory_fanout, replace=False):
            if dest in unreachable:
                unreachable.remove(dest)
            sadj[src, dest] = rng.choice([-1, 1])
    mean_fanin = int(np.clip(int(input_dim * sensory_fanout / inter), 1, input_dim))
    for dest in unreachable:
        for src in rng.choice(sensory_neurons, size=mean_fanin, replace=False):
            sadj[src, dest] = rng.choice([-1, 1])

    # inter -> command
    unreachable = list(command_neurons)
    for src in inter_neurons:
        for dest in rng.choice(command_neurons, size=inter_fanout, replace=False):
            if dest in unreachable:
                unreachable.remove(dest)
            adj[src, dest] = rng.choice([-1, 1])
    mean_fanin = int(np.clip(int(inter * inter_fanout / command), 1, command))
    for dest in unreachable:
        for src in rng.choice(inter_neurons, size=mean_fanin, replace=False):
            adj[src, dest] = rng.choice([-1, 1])

    # recurrent command synapses
    for _ in range(recurrent_command):
        src = rng.choice(command_neurons)
        dest = rng.choice(command_neurons)
        adj[src, dest] = rng.choice([-1, 1])

    # command -> motor
    unreachable = list(command_neurons)
    for dest in motor_neurons:
        for src in rng.choice(command_neurons, size=motor_fanin, replace=False):
            if src in unreachable:
                unreachable.remove(src)
            adj[src, dest] = rng.choice([-1, 1])
    mean_fanout = int(np.clip(int(output_size * motor_fanin / command), 1, output_size))
    for src in unreachable:
        for dest in rng.choice(motor_neurons, size=mean_fanout, replace=False):
            adj[src, dest] = rng.choice([-1, 1])

    layers = [inter_neurons, command_neurons, motor_neurons]
    return adj, sadj, layers


# ---------------------------------------------------------------------------
# Parameter construction (deterministic xavier-uniform-like init, jax PRNG)
# ---------------------------------------------------------------------------
def init_params(key, layers, sadj, adj, input_dim=1):
    """Returns:
      layer_dims: [(in_dim, hidden), ...]
      raw_params: per layer (Ws[4] of (h, d+h), bs[4] of (h,), mask (h, d+h))
      packed:     per layer (rhs (HK,HP), bias (1,HP), win_row (1,HP) [layer 0 only]).
        rhs rows [0:d) = input weights, rows [d:d+h) = recurrent weights
        (layer 0: rows [0:h) = recurrent weights, input handled via win_row);
        gate k (k=0 ff1, 1 ff2, 2 time=Wa+Wb) lives at columns [k*G, k*G+h).
        All padding (rows, cols, biases) is exactly zero.
    """
    layer_dims, raw_params, packed = [], [], []
    in_features = input_dim
    for l, hidden_units in enumerate(layers):
        h = len(hidden_units)
        d = in_features
        assert 2 * G + h <= HP and h <= G
        assert (h if l == 0 else d + h) <= HK
        if l == 0:
            isp = sadj[:, hidden_units]
        else:
            isp = adj[:, hidden_units][layers[l - 1], :]
        isp = np.concatenate([isp, np.ones((h, h))], axis=0)        # (d+h, h)
        mask = jnp.asarray(np.abs(isp.T).astype(np.float32))        # (h, d+h)

        Ws, bs = [], []
        for _ in range(4):   # ff1, ff2, time_a, time_b
            key, k1, k2 = jax.random.split(key, 3)
            fan_in = d + h
            lim_w = math.sqrt(6.0 / (fan_in + h))
            Ws.append(jax.random.uniform(k1, (h, fan_in), jnp.float32, -lim_w, lim_w))
            lim_b = 1.0 / math.sqrt(fan_in)
            bs.append(jax.random.uniform(k2, (h,), jnp.float32, -lim_b, lim_b))

        # Fused effective gates: ff1 (masked), ff2 (masked), time = Wa+Wb (pre-summed).
        geff = [Ws[0] * mask, Ws[1] * mask, Ws[2] + Ws[3]]
        beff = [bs[0], bs[1], bs[2] + bs[3]]

        rhs = jnp.zeros((HK, HP), jnp.float32)
        bias = jnp.zeros((1, HP), jnp.float32)
        win_row = jnp.zeros((1, HP), jnp.float32)
        for k in range(3):
            WeffT = geff[k].T                           # (d+h, h), for x @ W
            c0 = k * G
            if l == 0:   # scalar external input: single input row kept separately
                win_row = win_row.at[0, c0:c0 + h].set(WeffT[0, :])
                rhs = rhs.at[0:h, c0:c0 + h].set(WeffT[d:, :])
            else:
                rhs = rhs.at[0:d, c0:c0 + h].set(WeffT[:d, :])
                rhs = rhs.at[d:d + h, c0:c0 + h].set(WeffT[d:, :])
            bias = bias.at[0, c0:c0 + h].set(beff[k])

        raw_params.append((Ws, bs, mask))
        packed.append((rhs, bias, win_row))
        layer_dims.append((d, h))
        in_features = h
    return layer_dims, raw_params, packed


# ---------------------------------------------------------------------------
# Pallas kernel: full CfC recurrence over time, all three wired layers
# ---------------------------------------------------------------------------
def make_kernel(Bp, T, layer_dims):
    n_layers = len(layer_dims)
    assert layer_dims[-1][1] == 1, "motor layer must have exactly 1 neuron (lane-0 output packing)"
    assert T <= HP
    assert Bp % 8 == 0

    def kernel(x_ref, win0_ref, *refs):
        out_ref = refs[-1]
        wb = refs[:-1]                      # (rhs, bias) per layer

        # ---- loop invariants: loaded / broadcast exactly once ---------------
        rhs = [wb[2 * l][...] for l in range(n_layers)]                 # (HK,HP), 4 vregs each
        bias_b = [jnp.broadcast_to(wb[2 * l + 1][...], (Bp, HP))
                  for l in range(n_layers)]                             # (Bp,HP)
        mask_b = [(lax.broadcasted_iota(jnp.int32, (Bp, HP), 1) < h)
                  .astype(jnp.float32) for (_, h) in layer_dims]        # (Bp,HP)
        win0_b = jnp.broadcast_to(win0_ref[...], (Bp, HP))              # (Bp,HP)
        x_full = x_ref[...]                                             # (Bp,T)

        def gates(r, m):
            # r holds the 3 gate pre-activations at column offsets 0, G, 2G.
            th = jnp.tanh(r)                              # single EUP tanh / layer-step
            ff2 = pltpu.roll(th, HP - G, 1)               # tanh∘roll == roll∘tanh
            ti = jax.nn.sigmoid(pltpu.roll(r, HP - 2 * G, 1))
            return (th + ti * (ff2 - th)) * m             # FMA-shaped blend, mask folded

        hs = [jnp.zeros((Bp, HP), jnp.float32) for _ in range(n_layers)]
        out_acc = jnp.zeros((Bp, HP), jnp.float32)

        # ---- fully unrolled time loop (T is small and static) ---------------
        for t in range(T):
            x_col = x_full[:, t:t + 1]                                   # (Bp,1)
            # layer 0: scalar input contribution via broadcast-mul; the
            # recurrent contraction uses only the first HK lanes of hs[0].
            r = (x_col * win0_b
                 + jnp.dot(hs[0][:, :HK], rhs[0],
                           preferred_element_type=jnp.float32)
                 + bias_b[0])
            hs[0] = gates(r, mask_b[0])
            # layers 1..n-1: fused input+recurrent contraction, depth HK=32
            for l in range(1, n_layers):
                d, _ = layer_dims[l]
                lhs = (hs[l - 1] + pltpu.roll(hs[l], d, 1))[:, :HK]      # [inp | h_l]
                r = (jnp.dot(lhs, rhs[l], preferred_element_type=jnp.float32)
                     + bias_b[l])
                hs[l] = gates(r, mask_b[l])
            # motor layer has one neuron at lane 0; place it at lane t.
            contrib = hs[-1] if t == 0 else pltpu.roll(hs[-1], t, 1)
            out_acc = out_acc + contrib

        out_ref[...] = out_acc          # single lane-dense (Bp,128) store

    return kernel


def ncp_forward(x, packed, layer_dims):
    # x: (1, B, T)  ->  out: (1, 1, B, T)
    xs = x[0].astype(jnp.float32)                  # (B, T)
    B, T = xs.shape
    Bp = max(8, ((B + 7) // 8) * 8)                # pad batch to a full sublane tile
    xs_p = jnp.pad(xs, ((0, Bp - B), (0, 0)))      # zero rows are inert and sliced off

    flat = [packed[0][2]]                          # layer-0 input weight row
    for rhs, bias, _ in packed:
        flat += [rhs, bias]
    vmem = pl.BlockSpec(memory_space=pltpu.MemorySpace.VMEM)
    # Gridless: the recurrence is strictly sequential in T and layers, so no
    # megacore split; total VMEM footprint is ~60 KiB (fine on v5e/v6e/v7x).
    out_pad = pl.pallas_call(
        make_kernel(Bp, T, layer_dims),
        out_shape=jax.ShapeDtypeStruct((Bp, HP), jnp.float32),
        in_specs=[vmem] * (1 + len(flat)),
        out_specs=vmem,
    )(xs_p, *flat)
    return out_pad[:B, :T][None, None, :, :]


# ---------------------------------------------------------------------------
# Pure-JAX reference (straight transcription of the torch/ncps math)
# ---------------------------------------------------------------------------
def ncp_reference(x, raw_params, layer_dims):
    xs = x[0].astype(jnp.float32)
    B, T = xs.shape
    hs = [jnp.zeros((B, h), jnp.float32) for (_, h) in layer_dims]
    outs = []
    for t in range(T):
        inp = xs[:, t:t + 1]
        new_hs = []
        for l, (d, h) in enumerate(layer_dims):
            Ws, bs, mask = raw_params[l]
            xx = jnp.concatenate([inp, hs[l]], axis=-1)       # (B, d+h)

            def lin(k):
                W = Ws[k] * mask if k < 2 else Ws[k]          # (h, d+h)
                return jnp.sum(xx[:, None, :] * W[None, :, :], axis=-1) + bs[k]

            ff1 = jnp.tanh(lin(0))
            ff2 = jnp.tanh(lin(1))
            ti = jax.nn.sigmoid(lin(2) + lin(3))
            nh = ff1 * (1.0 - ti) + ti * ff2
            inp = nh
            new_hs.append(nh)
        hs = new_hs
        outs.append(new_hs[-1][:, 0])
    return jnp.stack(outs, axis=1)[None, None]                # (1,1,B,T)


if __name__ == "__main__":
    B, T = 4, 16
    adj, sadj, layers = build_autoncp_wiring(NCP_NEURONS, 1, input_dim=1)

    key = jax.random.PRNGKey(0)
    kp, kx = jax.random.split(key)
    layer_dims, raw_params, packed = init_params(kp, layers, sadj, adj, input_dim=1)

    x = jax.random.normal(kx, (1, B, T), jnp.float32)   # torch input layout (1, batch, seq)

    out = jax.block_until_ready(ncp_forward(x, packed, layer_dims))
    ref = jax.block_until_ready(ncp_reference(x, raw_params, layer_dims))

    assert out.shape == (1, 1, B, T), out.shape
    np.testing.assert_allclose(np.asarray(out), np.asarray(ref), rtol=1e-3, atol=1e-3)
    print("KERNEL_OK")
</pallas_src>

<mosaic_0001>
module attributes {stable_mosaic.version = 11 : i64} {
  func.func @kernel(%arg0: memref<8x16xf32, #tpu.memory_space<vmem>>, %arg1: memref<1x128xf32, #tpu.memory_space<vmem>>, %arg2: memref<32x128xf32, #tpu.memory_space<vmem>>, %arg3: memref<1x128xf32, #tpu.memory_space<vmem>>, %arg4: memref<32x128xf32, #tpu.memory_space<vmem>>, %arg5: memref<1x128xf32, #tpu.memory_space<vmem>>, %arg6: memref<32x128xf32, #tpu.memory_space<vmem>>, %arg7: memref<1x128xf32, #tpu.memory_space<vmem>>, %arg8: memref<8x128xf32, #tpu.memory_space<vmem>>) attributes {dimension_semantics = [], scalar_prefetch = 0 : i64, scratch_operands = 0 : i64, tpu.core_type = #tpu.core_type<tc>} {
    %c0 = arith.constant 0 : index
    %c0_0 = arith.constant 0 : index
    %0 = vector.load %arg2[%c0, %c0_0] : memref<32x128xf32, #tpu.memory_space<vmem>>, vector<32x128xf32>
    %c0_1 = arith.constant 0 : index
    %c0_2 = arith.constant 0 : index
    %1 = vector.load %arg4[%c0_1, %c0_2] : memref<32x128xf32, #tpu.memory_space<vmem>>, vector<32x128xf32>
    %c0_3 = arith.constant 0 : index
    %c0_4 = arith.constant 0 : index
    %2 = vector.load %arg6[%c0_3, %c0_4] : memref<32x128xf32, #tpu.memory_space<vmem>>, vector<32x128xf32>
    %c0_5 = arith.constant 0 : index
    %c0_6 = arith.constant 0 : index
    %3 = vector.load %arg3[%c0_5, %c0_6] : memref<1x128xf32, #tpu.memory_space<vmem>>, vector<1x128xf32>
    %4 = vector.shape_cast %3 : vector<1x128xf32> to vector<1x128xf32>
    %5 = vector.broadcast %4 : vector<1x128xf32> to vector<8x128xf32>
    %c0_7 = arith.constant 0 : index
    %c0_8 = arith.constant 0 : index
    %6 = vector.load %arg5[%c0_7, %c0_8] : memref<1x128xf32, #tpu.memory_space<vmem>>, vector<1x128xf32>
    %7 = vector.shape_cast %6 : vector<1x128xf32> to vector<1x128xf32>
    %8 = vector.broadcast %7 : vector<1x128xf32> to vector<8x128xf32>
    %c0_9 = arith.constant 0 : index
    %c0_10 = arith.constant 0 : index
    %9 = vector.load %arg7[%c0_9, %c0_10] : memref<1x128xf32, #tpu.memory_space<vmem>>, vector<1x128xf32>
    %10 = vector.shape_cast %9 : vector<1x128xf32> to vector<1x128xf32>
    %11 = vector.broadcast %10 : vector<1x128xf32> to vector<8x128xf32>
    %12 = tpu.iota {dimensions = array<i32: 1>} : vector<8x128xi32>
    %c9_i32 = arith.constant 9 : i32
    %13 = vector.broadcast %c9_i32 : i32 to vector<8x128xi32>
    %14 = arith.cmpi slt, %12, %13 : vector<8x128xi32>
    %15 = arith.extui %14 : vector<8x128xi1> to vector<8x128xi32>
    %16 = arith.sitofp %15 : vector<8x128xi32> to vector<8x128xf32>
    %17 = tpu.iota {dimensions = array<i32: 1>} : vector<8x128xi32>
    %c6_i32 = arith.constant 6 : i32
    %18 = vector.broadcast %c6_i32 : i32 to vector<8x128xi32>
    %19 = arith.cmpi slt, %17, %18 : vector<8x128xi32>
    %20 = arith.extui %19 : vector<8x128xi1> to vector<8x128xi32>
    %21 = arith.sitofp %20 : vector<8x128xi32> to vector<8x128xf32>
    %22 = tpu.iota {dimensions = array<i32: 1>} : vector<8x128xi32>
    %c1_i32 = arith.constant 1 : i32
    %23 = vector.broadcast %c1_i32 : i32 to vector<8x128xi32>
    %24 = arith.cmpi slt, %22, %23 : vector<8x128xi32>
    %25 = arith.extui %24 : vector<8x128xi1> to vector<8x128xi32>
    %26 = arith.sitofp %25 : vector<8x128xi32> to vector<8x128xf32>
    %c0_11 = arith.constant 0 : index
    %c0_12 = arith.constant 0 : index
    %27 = vector.load %arg1[%c0_11, %c0_12] : memref<1x128xf32, #tpu.memory_space<vmem>>, vector<1x128xf32>
    %28 = vector.shape_cast %27 : vector<1x128xf32> to vector<1x128xf32>
    %29 = vector.broadcast %28 : vector<1x128xf32> to vector<8x128xf32>
    %c0_13 = arith.constant 0 : index
    %c0_14 = arith.constant 0 : index
    %30 = vector.load %arg0[%c0_13, %c0_14] : memref<8x16xf32, #tpu.memory_space<vmem>>, vector<8x16xf32>
    %cst = arith.constant 0.000000e+00 : f32
    %31 = vector.broadcast %cst : f32 to vector<8x128xf32>
    %cst_15 = arith.constant 0.000000e+00 : f32
    %32 = vector.broadcast %cst_15 : f32 to vector<8x128xf32>
    %cst_16 = arith.constant 0.000000e+00 : f32
    %33 = vector.broadcast %cst_16 : f32 to vector<8x128xf32>
    %cst_17 = arith.constant 0.000000e+00 : f32
    %34 = vector.broadcast %cst_17 : f32 to vector<8x128xf32>
    %35 = vector.extract_strided_slice %30 {offsets = [0, 0], sizes = [8, 1], strides = [1, 1]} : vector<8x16xf32> to vector<8x1xf32>
    %36 = vector.broadcast %35 : vector<8x1xf32> to vector<8x128xf32>
    %37 = arith.mulf %36, %29 : vector<8x128xf32>
    %38 = vector.extract_strided_slice %31 {offsets = [0, 0], sizes = [8, 32], strides = [1, 1]} : vector<8x128xf32> to vector<8x32xf32>
    %cst_18 = arith.constant dense<0.000000e+00> : vector<8x128xf32>
    %39 = tpu.matmul %38, %0, %cst_18 {dimension_numbers = #tpu.dot_dimension_numbers<[1], [0], [0], [1], [0, 0, 1, 1], [], []>} : vector<8x32xf32>, vector<32x128xf32>, vector<8x128xf32> -> vector<8x128xf32>
    %40 = arith.addf %37, %39 : vector<8x128xf32>
    %41 = arith.addf %40, %5 : vector<8x128xf32>
    %42 = math.tanh %41 : vector<8x128xf32>
    %c96_i32 = arith.constant 96 : i32
    %43 = tpu.dynamic_rotate %42 by %c96_i32 dim 1 : vector<8x128xf32>, i32 -> vector<8x128xf32>
    %c64_i32 = arith.constant 64 : i32
    %44 = tpu.dynamic_rotate %41 by %c64_i32 dim 1 : vector<8x128xf32>, i32 -> vector<8x128xf32>
    %45 = arith.negf %44 : vector<8x128xf32>
    %46 = math.exp %45 : vector<8x128xf32>
    %cst_19 = arith.constant 1.000000e+00 : f32
    %47 = vector.broadcast %cst_19 : f32 to vector<8x128xf32>
    %48 = arith.addf %47, %46 : vector<8x128xf32>
    %49 = arith.divf %47, %48 : vector<8x128xf32>
    %50 = arith.subf %43, %42 : vector<8x128xf32>
    %51 = arith.mulf %49, %50 : vector<8x128xf32>
    %52 = arith.addf %42, %51 : vector<8x128xf32>
    %53 = arith.mulf %52, %16 : vector<8x128xf32>
    %c9_i32_20 = arith.constant 9 : i32
    %54 = tpu.dynamic_rotate %32 by %c9_i32_20 dim 1 : vector<8x128xf32>, i32 -> vector<8x128xf32>
    %55 = arith.addf %53, %54 : vector<8x128xf32>
    %56 = vector.extract_strided_slice %55 {offsets = [0, 0], sizes = [8, 32], strides = [1, 1]} : vector<8x128xf32> to vector<8x32xf32>
    %cst_21 = arith.constant dense<0.000000e+00> : vector<8x128xf32>
    %57 = tpu.matmul %56, %1, %cst_21 {dimension_numbers = #tpu.dot_dimension_numbers<[1], [0], [0], [1], [0, 0, 1, 1], [], []>} : vector<8x32xf32>, vector<32x128xf32>, vector<8x128xf32> -> vector<8x128xf32>
    %58 = arith.addf %57, %8 : vector<8x128xf32>
    %59 = math.tanh %58 : vector<8x128xf32>
    %c96_i32_22 = arith.constant 96 : i32
    %60 = tpu.dynamic_rotate %59 by %c96_i32_22 dim 1 : vector<8x128xf32>, i32 -> vector<8x128xf32>
    %c64_i32_23 = arith.constant 64 : i32
    %61 = tpu.dynamic_rotate %58 by %c64_i32_23 dim 1 : vector<8x128xf32>, i32 -> vector<8x128xf32>
    %62 = arith.negf %61 : vector<8x128xf32>
    %63 = math.exp %62 : vector<8x128xf32>
    %cst_24 = arith.constant 1.000000e+00 : f32
    %64 = vector.broadcast %cst_24 : f32 to vector<8x128xf32>
    %65 = arith.addf %64, %63 : vector<8x128xf32>
    %66 = arith.divf %64, %65 : vector<8x128xf32>
    %67 = arith.subf %60, %59 : vector<8x128xf32>
    %68 = arith.mulf %66, %67 : vector<8x128xf32>
    %69 = arith.addf %59, %68 : vector<8x128xf32>
    %70 = arith.mulf %69, %21 : vector<8x128xf32>
    %c6_i32_25 = arith.constant 6 : i32
    %71 = tpu.dynamic_rotate %33 by %c6_i32_25 dim 1 : vector<8x128xf32>, i32 -> vector<8x128xf32>
    %72 = arith.addf %70, %71 : vector<8x128xf32>
    %73 = vector.extract_strided_slice %72 {offsets = [0, 0], sizes = [8, 32], strides = [1, 1]} : vector<8x128xf32> to vector<8x32xf32>
    %cst_26 = arith.constant dense<0.000000e+00> : vector<8x128xf32>
    %74 = tpu.matmul %73, %2, %cst_26 {dimension_numbers = #tpu.dot_dimension_numbers<[1], [0], [0], [1], [0, 0, 1, 1], [], []>} : vector<8x32xf32>, vector<32x128xf32>, vector<8x128xf32> -> vector<8x128xf32>
    %75 = arith.addf %74, %11 : vector<8x128xf32>
    %76 = math.tanh %75 : vector<8x128xf32>
    %c96_i32_27 = arith.constant 96 : i32
    %77 = tpu.dynamic_rotate %76 by %c96_i32_27 dim 1 : vector<8x128xf32>, i32 -> vector<8x128xf32>
    %c64_i32_28 = arith.constant 64 : i32
    %78 = tpu.dynamic_rotate %75 by %c64_i32_28 dim 1 : vector<8x128xf32>, i32 -> vector<8x128xf32>
    %79 = arith.negf %78 : vector<8x128xf32>
    %80 = math.exp %79 : vector<8x128xf32>
    %cst_29 = arith.constant 1.000000e+00 : f32
    %81 = vector.broadcast %cst_29 : f32 to vector<8x128xf32>
    %82 = arith.addf %81, %80 : vector<8x128xf32>
    %83 = arith.divf %81, %82 : vector<8x128xf32>
    %84 = arith.subf %77, %76 : vector<8x128xf32>
    %85 = arith.mulf %83, %84 : vector<8x128xf32>
    %86 = arith.addf %76, %85 : vector<8x128xf32>
    %87 = arith.mulf %86, %26 : vector<8x128xf32>
    %88 = arith.addf %34, %87 : vector<8x128xf32>
    %89 = vector.extract_strided_slice %30 {offsets = [0, 1], sizes = [8, 1], strides = [1, 1]} : vector<8x16xf32> to vector<8x1xf32>
    %90 = vector.broadcast %89 : vector<8x1xf32> to vector<8x128xf32>
    %91 = arith.mulf %90, %29 : vector<8x128xf32>
    %92 = vector.extract_strided_slice %53 {offsets = [0, 0], sizes = [8, 32], strides = [1, 1]} : vector<8x128xf32> to vector<8x32xf32>
    %cst_30 = arith.constant dense<0.000000e+00> : vector<8x128xf32>
    %93 = tpu.matmul %92, %0, %cst_30 {dimension_numbers = #tpu.dot_dimension_numbers<[1], [0], [0], [1], [0, 0, 1, 1], [], []>} : vector<8x32xf32>, vector<32x128xf32>, vector<8x128xf32> -> vector<8x128xf32>
    %94 = arith.addf %91, %93 : vector<8x128xf32>
    %95 = arith.addf %94, %5 : vector<8x128xf32>
    %96 = math.tanh %95 : vector<8x128xf32>
    %c96_i32_31 = arith.constant 96 : i32
    %97 = tpu.dynamic_rotate %96 by %c96_i32_31 dim 1 : vector<8x128xf32>, i32 -> vector<8x128xf32>
    %c64_i32_32 = arith.constant 64 : i32
    %98 = tpu.dynamic_rotate %95 by %c64_i32_32 dim 1 : vector<8x128xf32>, i32 -> vector<8x128xf32>
    %99 = arith.negf %98 : vector<8x128xf32>
    %100 = math.exp %99 : vector<8x128xf32>
    %cst_33 = arith.constant 1.000000e+00 : f32
    %101 = vector.broadcast %cst_33 : f32 to vector<8x128xf32>
    %102 = arith.addf %101, %100 : vector<8x128xf32>
    %103 = arith.divf %101, %102 : vector<8x128xf32>
    %104 = arith.subf %97, %96 : vector<8x128xf32>
    %105 = arith.mulf %103, %104 : vector<8x128xf32>
    %106 = arith.addf %96, %105 : vector<8x128xf32>
    %107 = arith.mulf %106, %16 : vector<8x128xf32>
    %c9_i32_34 = arith.constant 9 : i32
    %108 = tpu.dynamic_rotate %70 by %c9_i32_34 dim 1 : vector<8x128xf32>, i32 -> vector<8x128xf32>
    %109 = arith.addf %107, %108 : vector<8x128xf32>
    %110 = vector.extract_strided_slice %109 {offsets = [0, 0], sizes = [8, 32], strides = [1, 1]} : vector<8x128xf32> to vector<8x32xf32>
    %cst_35 = arith.constant dense<0.000000e+00> : vector<8x128xf32>
    %111 = tpu.matmul %110, %1, %cst_35 {dimension_numbers = #tpu.dot_dimension_numbers<[1], [0], [0], [1], [0, 0, 1, 1], [], []>} : vector<8x32xf32>, vector<32x128xf32>, vector<8x128xf32> -> vector<8x128xf32>
    %112 = arith.addf %111, %8 : vector<8x128xf32>
    %113 = math.tanh %112 : vector<8x128xf32>
    %c96_i32_36 = arith.constant 96 : i32
    %114 = tpu.dynamic_rotate %113 by %c96_i32_36 dim 1 : vector<8x128xf32>, i32 -> vector<8x128xf32>
    %c64_i32_37 = arith.constant 64 : i32
    %115 = tpu.dynamic_rotate %112 by %c64_i32_37 dim 1 : vector<8x128xf32>, i32 -> vector<8x128xf32>
    %116 = arith.negf %115 : vector<8x128xf32>
    %117 = math.exp %116 : vector<8x128xf32>
    %cst_38 = arith.constant 1.000000e+00 : f32
    %118 = vector.broadcast %cst_38 : f32 to vector<8x128xf32>
    %119 = arith.addf %118, %117 : vector<8x128xf32>
    %120 = arith.divf %118, %119 : vector<8x128xf32>
    %121 = arith.subf %114, %113 : vector<8x128xf32>
    %122 = arith.mulf %120, %121 : vector<8x128xf32>
    %123 = arith.addf %113, %122 : vector<8x128xf32>
    %124 = arith.mulf %123, %21 : vector<8x128xf32>
    %c6_i32_39 = arith.constant 6 : i32
    %125 = tpu.dynamic_rotate %87 by %c6_i32_39 dim 1 : vector<8x128xf32>, i32 -> vector<8x128xf32>
    %126 = arith.addf %124, %125 : vector<8x128xf32>
    %127 = vector.extract_strided_slice %126 {offsets = [0, 0], sizes = [8, 32], strides = [1, 1]} : vector<8x128xf32> to vector<8x32xf32>
    %cst_40 = arith.constant dense<0.000000e+00> : vector<8x128xf32>
    %128 = tpu.matmul %127, %2, %cst_40 {dimension_numbers = #tpu.dot_dimension_numbers<[1], [0], [0], [1], [0, 0, 1, 1], [], []>} : vector<8x32xf32>, vector<32x128xf32>, vector<8x128xf32> -> vector<8x128xf32>
    %129 = arith.addf %128, %11 : vector<8x128xf32>
    %130 = math.tanh %129 : vector<8x128xf32>
    %c96_i32_41 = arith.constant 96 : i32
    %131 = tpu.dynamic_rotate %130 by %c96_i32_41 dim 1 : vector<8x128xf32>, i32 -> vector<8x128xf32>
    %c64_i32_42 = arith.constant 64 : i32
    %132 = tpu.dynamic_rotate %129 by %c64_i32_42 dim 1 : vector<8x128xf32>, i32 -> vector<8x128xf32>
    %133 = arith.negf %132 : vector<8x128xf32>
    %134 = math.exp %133 : vector<8x128xf32>
    %cst_43 = arith.constant 1.000000e+00 : f32
    %135 = vector.broadcast %cst_43 : f32 to vector<8x128xf32>
    %136 = arith.addf %135, %134 : vector<8x128xf32>
    %137 = arith.divf %135, %136 : vector<8x128xf32>
    %138 = arith.subf %131, %130 : vector<8x128xf32>
    %139 = arith.mulf %137, %138 : vector<8x128xf32>
    %140 = arith.addf %130, %139 : vector<8x128xf32>
    %141 = arith.mulf %140, %26 : vector<8x128xf32>
    %c1_i32_44 = arith.constant 1 : i32
    %142 = tpu.dynamic_rotate %141 by %c1_i32_44 dim 1 : vector<8x128xf32>, i32 -> vector<8x128xf32>
    %143 = arith.addf %88, %142 : vector<8x128xf32>
    %144 = vector.extract_strided_slice %30 {offsets = [0, 2], sizes = [8, 1], strides = [1, 1]} : vector<8x16xf32> to vector<8x1xf32>
    %145 = vector.broadcast %144 : vector<8x1xf32> to vector<8x128xf32>
    %146 = arith.mulf %145, %29 : vector<8x128xf32>
    %147 = vector.extract_strided_slice %107 {offsets = [0, 0], sizes = [8, 32], strides = [1, 1]} : vector<8x128xf32> to vector<8x32xf32>
    %cst_45 = arith.constant dense<0.000000e+00> : vector<8x128xf32>
    %148 = tpu.matmul %147, %0, %cst_45 {dimension_numbers = #tpu.dot_dimension_numbers<[1], [0], [0], [1], [0, 0, 1, 1], [], []>} : vector<8x32xf32>, vector<32x128xf32>, vector<8x128xf32> -> vector<8x128xf32>
    %149 = arith.addf %146, %148 : vector<8x128xf32>
    %150 = arith.addf %149, %5 : vector<8x128xf32>
    %151 = math.tanh %150 : vector<8x128xf32>
    %c96_i32_46 = arith.constant 96 : i32
    %152 = tpu.dynamic_rotate %151 by %c96_i32_46 dim 1 : vector<8x128xf32>, i32 -> vector<8x128xf32>
    %c64_i32_47 = arith.constant 64 : i32
    %153 = tpu.dynamic_rotate %150 by %c64_i32_47 dim 1 : vector<8x128xf32>, i32 -> vector<8x128xf32>
    %154 = arith.negf %153 : vector<8x128xf32>
    %155 = math.exp %154 : vector<8x128xf32>
    %cst_48 = arith.constant 1.000000e+00 : f32
    %156 = vector.broadcast %cst_48 : f32 to vector<8x128xf32>
    %157 = arith.addf %156, %155 : vector<8x128xf32>
    %158 = arith.divf %156, %157 : vector<8x128xf32>
    %159 = arith.subf %152, %151 : vector<8x128xf32>
    %160 = arith.mulf %158, %159 : vector<8x128xf32>
    %161 = arith.addf %151, %160 : vector<8x128xf32>
    %162 = arith.mulf %161, %16 : vector<8x128xf32>
    %c9_i32_49 = arith.constant 9 : i32
    %163 = tpu.dynamic_rotate %124 by %c9_i32_49 dim 1 : vector<8x128xf32>, i32 -> vector<8x128xf32>
    %164 = arith.addf %162, %163 : vector<8x128xf32>
    %165 = vector.extract_strided_slice %164 {offsets = [0, 0], sizes = [8, 32], strides = [1, 1]} : vector<8x128xf32> to vector<8x32xf32>
    %cst_50 = arith.constant dense<0.000000e+00> : vector<8x128xf32>
    %166 = tpu.matmul %165, %1, %cst_50 {dimension_numbers = #tpu.dot_dimension_numbers<[1], [0], [0], [1], [0, 0, 1, 1], [], []>} : vector<8x32xf32>, vector<32x128xf32>, vector<8x128xf32> -> vector<8x128xf32>
    %167 = arith.addf %166, %8 : vector<8x128xf32>
    %168 = math.tanh %167 : vector<8x128xf32>
    %c96_i32_51 = arith.constant 96 : i32
    %169 = tpu.dynamic_rotate %168 by %c96_i32_51 dim 1 : vector<8x128xf32>, i32 -> vector<8x128xf32>
    %c64_i32_52 = arith.constant 64 : i32
    %170 = tpu.dynamic_rotate %167 by %c64_i32_52 dim 1 : vector<8x128xf32>, i32 -> vector<8x128xf32>
    %171 = arith.negf %170 : vector<8x128xf32>
    %172 = math.exp %171 : vector<8x128xf32>
    %cst_53 = arith.constant 1.000000e+00 : f32
    %173 = vector.broadcast %cst_53 : f32 to vector<8x128xf32>
    %174 = arith.addf %173, %172 : vector<8x128xf32>
    %175 = arith.divf %173, %174 : vector<8x128xf32>
    %176 = arith.subf %169, %168 : vector<8x128xf32>
    %177 = arith.mulf %175, %176 : vector<8x128xf32>
    %178 = arith.addf %168, %177 : vector<8x128xf32>
    %179 = arith.mulf %178, %21 : vector<8x128xf32>
    %c6_i32_54 = arith.constant 6 : i32
    %180 = tpu.dynamic_rotate %141 by %c6_i32_54 dim 1 : vector<8x128xf32>, i32 -> vector<8x128xf32>
    %181 = arith.addf %179, %180 : vector<8x128xf32>
    %182 = vector.extract_strided_slice %181 {offsets = [0, 0], sizes = [8, 32], strides = [1, 1]} : vector<8x128xf32> to vector<8x32xf32>
    %cst_55 = arith.constant dense<0.000000e+00> : vector<8x128xf32>
    %183 = tpu.matmul %182, %2, %cst_55 {dimension_numbers = #tpu.dot_dimension_numbers<[1], [0], [0], [1], [0, 0, 1, 1], [], []>} : vector<8x32xf32>, vector<32x128xf32>, vector<8x128xf32> -> vector<8x128xf32>
    %184 = arith.addf %183, %11 : vector<8x128xf32>
    %185 = math.tanh %184 : vector<8x128xf32>
    %c96_i32_56 = arith.constant 96 : i32
    %186 = tpu.dynamic_rotate %185 by %c96_i32_56 dim 1 : vector<8x128xf32>, i32 -> vector<8x128xf32>
    %c64_i32_57 = arith.constant 64 : i32
    %187 = tpu.dynamic_rotate %184 by %c64_i32_57 dim 1 : vector<8x128xf32>, i32 -> vector<8x128xf32>
    %188 = arith.negf %187 : vector<8x128xf32>
    %189 = math.exp %188 : vector<8x128xf32>
    %cst_58 = arith.constant 1.000000e+00 : f32
    %190 = vector.broadcast %cst_58 : f32 to vector<8x128xf32>
    %191 = arith.addf %190, %189 : vector<8x128xf32>
    %192 = arith.divf %190, %191 : vector<8x128xf32>
    %193 = arith.subf %186, %185 : vector<8x128xf32>
    %194 = arith.mulf %192, %193 : vector<8x128xf32>
    %195 = arith.addf %185, %194 : vector<8x128xf32>
    %196 = arith.mulf %195, %26 : vector<8x128xf32>
    %c2_i32 = arith.constant 2 : i32
    %197 = tpu.dynamic_rotate %196 by %c2_i32 dim 1 : vector<8x128xf32>, i32 -> vector<8x128xf32>
    %198 = arith.addf %143, %197 : vector<8x128xf32>
    %199 = vector.extract_strided_slice %30 {offsets = [0, 3], sizes = [8, 1], strides = [1, 1]} : vector<8x16xf32> to vector<8x1xf32>
    %200 = vector.broadcast %199 : vector<8x1xf32> to vector<8x128xf32>
    %201 = arith.mulf %200, %29 : vector<8x128xf32>
    %202 = vector.extract_strided_slice %162 {offsets = [0, 0], sizes = [8, 32], strides = [1, 1]} : vector<8x128xf32> to vector<8x32xf32>
    %cst_59 = arith.constant dense<0.000000e+00> : vector<8x128xf32>
    %203 = tpu.matmul %202, %0, %cst_59 {dimension_numbers = #tpu.dot_dimension_numbers<[1], [0], [0], [1], [0, 0, 1, 1], [], []>} : vector<8x32xf32>, vector<32x128xf32>, vector<8x128xf32> -> vector<8x128xf32>
    %204 = arith.addf %201, %203 : vector<8x128xf32>
    %205 = arith.addf %204, %5 : vector<8x128xf32>
    %206 = math.tanh %205 : vector<8x128xf32>
    %c96_i32_60 = arith.constant 96 : i32
    %207 = tpu.dynamic_rotate %206 by %c96_i32_60 dim 1 : vector<8x128xf32>, i32 -> vector<8x128xf32>
    %c64_i32_61 = arith.constant 64 : i32
    %208 = tpu.dynamic_rotate %205 by %c64_i32_61 dim 1 : vector<8x128xf32>, i32 -> vector<8x128xf32>
    %209 = arith.negf %208 : vector<8x128xf32>
    %210 = math.exp %209 : vector<8x128xf32>
    %cst_62 = arith.constant 1.000000e+00 : f32
    %211 = vector.broadcast %cst_62 : f32 to vector<8x128xf32>
    %212 = arith.addf %211, %210 : vector<8x128xf32>
    %213 = arith.divf %211, %212 : vector<8x128xf32>
    %214 = arith.subf %207, %206 : vector<8x128xf32>
    %215 = arith.mulf %213, %214 : vector<8x128xf32>
    %216 = arith.addf %206, %215 : vector<8x128xf32>
    %217 = arith.mulf %216, %16 : vector<8x128xf32>
    %c9_i32_63 = arith.constant 9 : i32
    %218 = tpu.dynamic_rotate %179 by %c9_i32_63 dim 1 : vector<8x128xf32>, i32 -> vector<8x128xf32>
    %219 = arith.addf %217, %218 : vector<8x128xf32>
    %220 = vector.extract_strided_slice %219 {offsets = [0, 0], sizes = [8, 32], strides = [1, 1]} : vector<8x128xf32> to vector<8x32xf32>
    %cst_64 = arith.constant dense<0.000000e+00> : vector<8x128xf32>
    %221 = tpu.matmul %220, %1, %cst_64 {dimension_numbers = #tpu.dot_dimension_numbers<[1], [0], [0], [1], [0, 0, 1, 1], [], []>} : vector<8x32xf32>, vector<32x128xf32>, vector<8x128xf32> -> vector<8x128xf32>
    %222 = arith.addf %221, %8 : vector<8x128xf32>
    %223 = math.tanh %222 : vector<8x128xf32>
    %c96_i32_65 = arith.constant 96 : i32
    %224 = tpu.dynamic_rotate %223 by %c96_i32_65 dim 1 : vector<8x128xf32>, i32 -> vector<8x128xf32>
    %c64_i32_66 = arith.constant 64 : i32
    %225 = tpu.dynamic_rotate %222 by %c64_i32_66 dim 1 : vector<8x128xf32>, i32 -> vector<8x128xf32>
    %226 = arith.negf %225 : vector<8x128xf32>
    %227 = math.exp %226 : vector<8x128xf32>
    %cst_67 = arith.constant 1.000000e+00 : f32
    %228 = vector.broadcast %cst_67 : f32 to vector<8x128xf32>
    %229 = arith.addf %228, %227 : vector<8x128xf32>
    %230 = arith.divf %228, %229 : vector<8x128xf32>
    %231 = arith.subf %224, %223 : vector<8x128xf32>
    %232 = arith.mulf %230, %231 : vector<8x128xf32>
    %233 = arith.addf %223, %232 : vector<8x128xf32>
    %234 = arith.mulf %233, %21 : vector<8x128xf32>
    %c6_i32_68 = arith.constant 6 : i32
    %235 = tpu.dynamic_rotate %196 by %c6_i32_68 dim 1 : vector<8x128xf32>, i32 -> vector<8x128xf32>
    %236 = arith.addf %234, %235 : vector<8x128xf32>
    %237 = vector.extract_strided_slice %236 {offsets = [0, 0], sizes = [8, 32], strides = [1, 1]} : vector<8x128xf32> to vector<8x32xf32>
    %cst_69 = arith.constant dense<0.000000e+00> : vector<8x128xf32>
    %238 = tpu.matmul %237, %2, %cst_69 {dimension_numbers = #tpu.dot_dimension_numbers<[1], [0], [0], [1], [0, 0, 1, 1], [], []>} : vector<8x32xf32>, vector<32x128xf32>, vector<8x128xf32> -> vector<8x128xf32>
    %239 = arith.addf %238, %11 : vector<8x128xf32>
    %240 = math.tanh %239 : vector<8x128xf32>
    %c96_i32_70 = arith.constant 96 : i32
    %241 = tpu.dynamic_rotate %240 by %c96_i32_70 dim 1 : vector<8x128xf32>, i32 -> vector<8x128xf32>
    %c64_i32_71 = arith.constant 64 : i32
    %242 = tpu.dynamic_rotate %239 by %c64_i32_71 dim 1 : vector<8x128xf32>, i32 -> vector<8x128xf32>
    %243 = arith.negf %242 : vector<8x128xf32>
    %244 = math.exp %243 : vector<8x128xf32>
    %cst_72 = arith.constant 1.000000e+00 : f32
    %245 = vector.broadcast %cst_72 : f32 to vector<8x128xf32>
    %246 = arith.addf %245, %244 : vector<8x128xf32>
    %247 = arith.divf %245, %246 : vector<8x128xf32>
    %248 = arith.subf %241, %240 : vector<8x128xf32>
    %249 = arith.mulf %247, %248 : vector<8x128xf32>
    %250 = arith.addf %240, %249 : vector<8x128xf32>
    %251 = arith.mulf %250, %26 : vector<8x128xf32>
    %c3_i32 = arith.constant 3 : i32
    %252 = tpu.dynamic_rotate %251 by %c3_i32 dim 1 : vector<8x128xf32>, i32 -> vector<8x128xf32>
    %253 = arith.addf %198, %252 : vector<8x128xf32>
    %254 = vector.extract_strided_slice %30 {offsets = [0, 4], sizes = [8, 1], strides = [1, 1]} : vector<8x16xf32> to vector<8x1xf32>
    %255 = vector.broadcast %254 : vector<8x1xf32> to vector<8x128xf32>
    %256 = arith.mulf %255, %29 : vector<8x128xf32>
    %257 = vector.extract_strided_slice %217 {offsets = [0, 0], sizes = [8, 32], strides = [1, 1]} : vector<8x128xf32> to vector<8x32xf32>
    %cst_73 = arith.constant dense<0.000000e+00> : vector<8x128xf32>
    %258 = tpu.matmul %257, %0, %cst_73 {dimension_numbers = #tpu.dot_dimension_numbers<[1], [0], [0], [1], [0, 0, 1, 1], [], []>} : vector<8x32xf32>, vector<32x128xf32>, vector<8x128xf32> -> vector<8x128xf32>
    %259 = arith.addf %256, %258 : vector<8x128xf32>
    %260 = arith.addf %259, %5 : vector<8x128xf32>
    %261 = math.tanh %260 : vector<8x128xf32>
    %c96_i32_74 = arith.constant 96 : i32
    %262 = tpu.dynamic_rotate %261 by %c96_i32_74 dim 1 : vector<8x128xf32>, i32 -> vector<8x128xf32>
    %c64_i32_75 = arith.constant 64 : i32
    %263 = tpu.dynamic_rotate %260 by %c64_i32_75 dim 1 : vector<8x128xf32>, i32 -> vector<8x128xf32>
    %264 = arith.negf %263 : vector<8x128xf32>
    %265 = math.exp %264 : vector<8x128xf32>
    %cst_76 = arith.constant 1.000000e+00 : f32
    %266 = vector.broadcast %cst_76 : f32 to vector<8x128xf32>
    %267 = arith.addf %266, %265 : vector<8x128xf32>
    %268 = arith.divf %266, %267 : vector<8x128xf32>
    %269 = arith.subf %262, %261 : vector<8x128xf32>
    %270 = arith.mulf %268, %269 : vector<8x128xf32>
    %271 = arith.addf %261, %270 : vector<8x128xf32>
    %272 = arith.mulf %271, %16 : vector<8x128xf32>
    %c9_i32_77 = arith.constant 9 : i32
    %273 = tpu.dynamic_rotate %234 by %c9_i32_77 dim 1 : vector<8x128xf32>, i32 -> vector<8x128xf32>
    %274 = arith.addf %272, %273 : vector<8x128xf32>
    %275 = vector.extract_strided_slice %274 {offsets = [0, 0], sizes = [8, 32], strides = [1, 1]} : vector<8x128xf32> to vector<8x32xf32>
    %cst_78 = arith.constant dense<0.000000e+00> : vector<8x128xf32>
    %276 = tpu.matmul %275, %1, %cst_78 {dimension_numbers = #tpu.dot_dimension_numbers<[1], [0], [0], [1], [0, 0, 1, 1], [], []>} : vector<8x32xf32>, vector<32x128xf32>, vector<8x128xf32> -> vector<8x128xf32>
    %277 = arith.addf %276, %8 : vector<8x128xf32>
    %278 = math.tanh %277 : vector<8x128xf32>
    %c96_i32_79 = arith.constant 96 : i32
    %279 = tpu.dynamic_rotate %278 by %c96_i32_79 dim 1 : vector<8x128xf32>, i32 -> vector<8x128xf32>
    %c64_i32_80 = arith.constant 64 : i32
    %280 = tpu.dynamic_rotate %277 by %c64_i32_80 dim 1 : vector<8x128xf32>, i32 -> vector<8x128xf32>
    %281 = arith.negf %280 : vector<8x128xf32>
    %282 = math.exp %281 : vector<8x128xf32>
    %cst_81 = arith.constant 1.000000e+00 : f32
    %283 = vector.broadcast %cst_81 : f32 to vector<8x128xf32>
    %284 = arith.addf %283, %282 : vector<8x128xf32>
    %285 = arith.divf %283, %284 : vector<8x128xf32>
    %286 = arith.subf %279, %278 : vector<8x128xf32>
    %287 = arith.mulf %285, %286 : vector<8x128xf32>
    %288 = arith.addf %278, %287 : vector<8x128xf32>
    %289 = arith.mulf %288, %21 : vector<8x128xf32>
    %c6_i32_82 = arith.constant 6 : i32
    %290 = tpu.dynamic_rotate %251 by %c6_i32_82 dim 1 : vector<8x128xf32>, i32 -> vector<8x128xf32>
    %291 = arith.addf %289, %290 : vector<8x128xf32>
    %292 = vector.extract_strided_slice %291 {offsets = [0, 0], sizes = [8, 32], strides = [1, 1]} : vector<8x128xf32> to vector<8x32xf32>
    %cst_83 = arith.constant dense<0.000000e+00> : vector<8x128xf32>
    %293 = tpu.matmul %292, %2, %cst_83 {dimension_numbers = #tpu.dot_dimension_numbers<[1], [0], [0], [1], [0, 0, 1, 1], [], []>} : vector<8x32xf32>, vector<32x128xf32>, vector<8x128xf32> -> vector<8x128xf32>
    %294 = arith.addf %293, %11 : vector<8x128xf32>
    %295 = math.tanh %294 : vector<8x128xf32>
    %c96_i32_84 = arith.constant 96 : i32
    %296 = tpu.dynamic_rotate %295 by %c96_i32_84 dim 1 : vector<8x128xf32>, i32 -> vector<8x128xf32>
    %c64_i32_85 = arith.constant 64 : i32
    %297 = tpu.dynamic_rotate %294 by %c64_i32_85 dim 1 : vector<8x128xf32>, i32 -> vector<8x128xf32>
    %298 = arith.negf %297 : vector<8x128xf32>
    %299 = math.exp %298 : vector<8x128xf32>
    %cst_86 = arith.constant 1.000000e+00 : f32
    %300 = vector.broadcast %cst_86 : f32 to vector<8x128xf32>
    %301 = arith.addf %300, %299 : vector<8x128xf32>
    %302 = arith.divf %300, %301 : vector<8x128xf32>
    %303 = arith.subf %296, %295 : vector<8x128xf32>
    %304 = arith.mulf %302, %303 : vector<8x128xf32>
    %305 = arith.addf %295, %304 : vector<8x128xf32>
    %306 = arith.mulf %305, %26 : vector<8x128xf32>
    %c4_i32 = arith.constant 4 : i32
    %307 = tpu.dynamic_rotate %306 by %c4_i32 dim 1 : vector<8x128xf32>, i32 -> vector<8x128xf32>
    %308 = arith.addf %253, %307 : vector<8x128xf32>
    %309 = vector.extract_strided_slice %30 {offsets = [0, 5], sizes = [8, 1], strides = [1, 1]} : vector<8x16xf32> to vector<8x1xf32>
    %310 = vector.broadcast %309 : vector<8x1xf32> to vector<8x128xf32>
    %311 = arith.mulf %310, %29 : vector<8x128xf32>
    %312 = vector.extract_strided_slice %272 {offsets = [0, 0], sizes = [8, 32], strides = [1, 1]} : vector<8x128xf32> to vector<8x32xf32>
    %cst_87 = arith.constant dense<0.000000e+00> : vector<8x128xf32>
    %313 = tpu.matmul %312, %0, %cst_87 {dimension_numbers = #tpu.dot_dimension_numbers<[1], [0], [0], [1], [0, 0, 1, 1], [], []>} : vector<8x32xf32>, vector<32x128xf32>, vector<8x128xf32> -> vector<8x128xf32>
    %314 = arith.addf %311, %313 : vector<8x128xf32>
    %315 = arith.addf %314, %5 : vector<8x128xf32>
    %316 = math.tanh %315 : vector<8x128xf32>
    %c96_i32_88 = arith.constant 96 : i32
    %317 = tpu.dynamic_rotate %316 by %c96_i32_88 dim 1 : vector<8x128xf32>, i32 -> vector<8x128xf32>
    %c64_i32_89 = arith.constant 64 : i32
    %318 = tpu.dynamic_rotate %315 by %c64_i32_89 dim 1 : vector<8x128xf32>, i32 -> vector<8x128xf32>
    %319 = arith.negf %318 : vector<8x128xf32>
    %320 = math.exp %319 : vector<8x128xf32>
    %cst_90 = arith.constant 1.000000e+00 : f32
    %321 = vector.broadcast %cst_90 : f32 to vector<8x128xf32>
    %322 = arith.addf %321, %320 : vector<8x128xf32>
    %323 = arith.divf %321, %322 : vector<8x128xf32>
    %324 = arith.subf %317, %316 : vector<8x128xf32>
    %325 = arith.mulf %323, %324 : vector<8x128xf32>
    %326 = arith.addf %316, %325 : vector<8x128xf32>
    %327 = arith.mulf %326, %16 : vector<8x128xf32>
    %c9_i32_91 = arith.constant 9 : i32
    %328 = tpu.dynamic_rotate %289 by %c9_i32_91 dim 1 : vector<8x128xf32>, i32 -> vector<8x128xf32>
    %329 = arith.addf %327, %328 : vector<8x128xf32>
    %330 = vector.extract_strided_slice %329 {offsets = [0, 0], sizes = [8, 32], strides = [1, 1]} : vector<8x128xf32> to vector<8x32xf32>
    %cst_92 = arith.constant dense<0.000000e+00> : vector<8x128xf32>
    %331 = tpu.matmul %330, %1, %cst_92 {dimension_numbers = #tpu.dot_dimension_numbers<[1], [0], [0], [1], [0, 0, 1, 1], [], []>} : vector<8x32xf32>, vector<32x128xf32>, vector<8x128xf32> -> vector<8x128xf32>
    %332 = arith.addf %331, %8 : vector<8x128xf32>
    %333 = math.tanh %332 : vector<8x128xf32>
    %c96_i32_93 = arith.constant 96 : i32
    %334 = tpu.dynamic_rotate %333 by %c96_i32_93 dim 1 : vector<8x128xf32>, i32 -> vector<8x128xf32>
    %c64_i32_94 = arith.constant 64 : i32
    %335 = tpu.dynamic_rotate %332 by %c64_i32_94 dim 1 : vector<8x128xf32>, i32 -> vector<8x128xf32>
    %336 = arith.negf %335 : vector<8x128xf32>
    %337 = math.exp %336 : vector<8x128xf32>
    %cst_95 = arith.constant 1.000000e+00 : f32
    %338 = vector.broadcast %cst_95 : f32 to vector<8x128xf32>
    %339 = arith.addf %338, %337 : vector<8x128xf32>
    %340 = arith.divf %338, %339 : vector<8x128xf32>
    %341 = arith.subf %334, %333 : vector<8x128xf32>
    %342 = arith.mulf %340, %341 : vector<8x128xf32>
    %343 = arith.addf %333, %342 : vector<8x128xf32>
    %344 = arith.mulf %343, %21 : vector<8x128xf32>
    %c6_i32_96 = arith.constant 6 : i32
    %345 = tpu.dynamic_rotate %306 by %c6_i32_96 dim 1 : vector<8x128xf32>, i32 -> vector<8x128xf32>
    %346 = arith.addf %344, %345 : vector<8x128xf32>
    %347 = vector.extract_strided_slice %346 {offsets = [0, 0], sizes = [8, 32], strides = [1, 1]} : vector<8x128xf32> to vector<8x32xf32>
    %cst_97 = arith.constant dense<0.000000e+00> : vector<8x128xf32>
    %348 = tpu.matmul %347, %2, %cst_97 {dimension_numbers = #tpu.dot_dimension_numbers<[1], [0], [0], [1], [0, 0, 1, 1], [], []>} : vector<8x32xf32>, vector<32x128xf32>, vector<8x128xf32> -> vector<8x128xf32>
    %349 = arith.addf %348, %11 : vector<8x128xf32>
    %350 = math.tanh %349 : vector<8x128xf32>
    %c96_i32_98 = arith.constant 96 : i32
    %351 = tpu.dynamic_rotate %350 by %c96_i32_98 dim 1 : vector<8x128xf32>, i32 -> vector<8x128xf32>
    %c64_i32_99 = arith.constant 64 : i32
    %352 = tpu.dynamic_rotate %349 by %c64_i32_99 dim 1 : vector<8x128xf32>, i32 -> vector<8x128xf32>
    %353 = arith.negf %352 : vector<8x128xf32>
    %354 = math.exp %353 : vector<8x128xf32>
    %cst_100 = arith.constant 1.000000e+00 : f32
    %355 = vector.broadcast %cst_100 : f32 to vector<8x128xf32>
    %356 = arith.addf %355, %354 : vector<8x128xf32>
    %357 = arith.divf %355, %356 : vector<8x128xf32>
    %358 = arith.subf %351, %350 : vector<8x128xf32>
    %359 = arith.mulf %357, %358 : vector<8x128xf32>
    %360 = arith.addf %350, %359 : vector<8x128xf32>
    %361 = arith.mulf %360, %26 : vector<8x128xf32>
    %c5_i32 = arith.constant 5 : i32
    %362 = tpu.dynamic_rotate %361 by %c5_i32 dim 1 : vector<8x128xf32>, i32 -> vector<8x128xf32>
    %363 = arith.addf %308, %362 : vector<8x128xf32>
    %364 = vector.extract_strided_slice %30 {offsets = [0, 6], sizes = [8, 1], strides = [1, 1]} : vector<8x16xf32> to vector<8x1xf32>
    %365 = vector.broadcast %364 : vector<8x1xf32> to vector<8x128xf32>
    %366 = arith.mulf %365, %29 : vector<8x128xf32>
    %367 = vector.extract_strided_slice %327 {offsets = [0, 0], sizes = [8, 32], strides = [1, 1]} : vector<8x128xf32> to vector<8x32xf32>
    %cst_101 = arith.constant dense<0.000000e+00> : vector<8x128xf32>
    %368 = tpu.matmul %367, %0, %cst_101 {dimension_numbers = #tpu.dot_dimension_numbers<[1], [0], [0], [1], [0, 0, 1, 1], [], []>} : vector<8x32xf32>, vector<32x128xf32>, vector<8x128xf32> -> vector<8x128xf32>
    %369 = arith.addf %366, %368 : vector<8x128xf32>
    %370 = arith.addf %369, %5 : vector<8x128xf32>
    %371 = math.tanh %370 : vector<8x128xf32>
    %c96_i32_102 = arith.constant 96 : i32
    %372 = tpu.dynamic_rotate %371 by %c96_i32_102 dim 1 : vector<8x128xf32>, i32 -> vector<8x128xf32>
    %c64_i32_103 = arith.constant 64 : i32
    %373 = tpu.dynamic_rotate %370 by %c64_i32_103 dim 1 : vector<8x128xf32>, i32 -> vector<8x128xf32>
    %374 = arith.negf %373 : vector<8x128xf32>
    %375 = math.exp %374 : vector<8x128xf32>
    %cst_104 = arith.constant 1.000000e+00 : f32
    %376 = vector.broadcast %cst_104 : f32 to vector<8x128xf32>
    %377 = arith.addf %376, %375 : vector<8x128xf32>
    %378 = arith.divf %376, %377 : vector<8x128xf32>
    %379 = arith.subf %372, %371 : vector<8x128xf32>
    %380 = arith.mulf %378, %379 : vector<8x128xf32>
    %381 = arith.addf %371, %380 : vector<8x128xf32>
    %382 = arith.mulf %381, %16 : vector<8x128xf32>
    %c9_i32_105 = arith.constant 9 : i32
    %383 = tpu.dynamic_rotate %344 by %c9_i32_105 dim 1 : vector<8x128xf32>, i32 -> vector<8x128xf32>
    %384 = arith.addf %382, %383 : vector<8x128xf32>
    %385 = vector.extract_strided_slice %384 {offsets = [0, 0], sizes = [8, 32], strides = [1, 1]} : vector<8x128xf32> to vector<8x32xf32>
    %cst_106 = arith.constant dense<0.000000e+00> : vector<8x128xf32>
    %386 = tpu.matmul %385, %1, %cst_106 {dimension_numbers = #tpu.dot_dimension_numbers<[1], [0], [0], [1], [0, 0, 1, 1], [], []>} : vector<8x32xf32>, vector<32x128xf32>, vector<8x128xf32> -> vector<8x128xf32>
    %387 = arith.addf %386, %8 : vector<8x128xf32>
    %388 = math.tanh %387 : vector<8x128xf32>
    %c96_i32_107 = arith.constant 96 : i32
    %389 = tpu.dynamic_rotate %388 by %c96_i32_107 dim 1 : vector<8x128xf32>, i32 -> vector<8x128xf32>
    %c64_i32_108 = arith.constant 64 : i32
    %390 = tpu.dynamic_rotate %387 by %c64_i32_108 dim 1 : vector<8x128xf32>, i32 -> vector<8x128xf32>
    %391 = arith.negf %390 : vector<8x128xf32>
    %392 = math.exp %391 : vector<8x128xf32>
    %cst_109 = arith.constant 1.000000e+00 : f32
    %393 = vector.broadcast %cst_109 : f32 to vector<8x128xf32>
    %394 = arith.addf %393, %392 : vector<8x128xf32>
    %395 = arith.divf %393, %394 : vector<8x128xf32>
    %396 = arith.subf %389, %388 : vector<8x128xf32>
    %397 = arith.mulf %395, %396 : vector<8x128xf32>
    %398 = arith.addf %388, %397 : vector<8x128xf32>
    %399 = arith.mulf %398, %21 : vector<8x128xf32>
    %c6_i32_110 = arith.constant 6 : i32
    %400 = tpu.dynamic_rotate %361 by %c6_i32_110 dim 1 : vector<8x128xf32>, i32 -> vector<8x128xf32>
    %401 = arith.addf %399, %400 : vector<8x128xf32>
    %402 = vector.extract_strided_slice %401 {offsets = [0, 0], sizes = [8, 32], strides = [1, 1]} : vector<8x128xf32> to vector<8x32xf32>
    %cst_111 = arith.constant dense<0.000000e+00> : vector<8x128xf32>
    %403 = tpu.matmul %402, %2, %cst_111 {dimension_numbers = #tpu.dot_dimension_numbers<[1], [0], [0], [1], [0, 0, 1, 1], [], []>} : vector<8x32xf32>, vector<32x128xf32>, vector<8x128xf32> -> vector<8x128xf32>
    %404 = arith.addf %403, %11 : vector<8x128xf32>
    %405 = math.tanh %404 : vector<8x128xf32>
    %c96_i32_112 = arith.constant 96 : i32
    %406 = tpu.dynamic_rotate %405 by %c96_i32_112 dim 1 : vector<8x128xf32>, i32 -> vector<8x128xf32>
    %c64_i32_113 = arith.constant 64 : i32
    %407 = tpu.dynamic_rotate %404 by %c64_i32_113 dim 1 : vector<8x128xf32>, i32 -> vector<8x128xf32>
    %408 = arith.negf %407 : vector<8x128xf32>
    %409 = math.exp %408 : vector<8x128xf32>
    %cst_114 = arith.constant 1.000000e+00 : f32
    %410 = vector.broadcast %cst_114 : f32 to vector<8x128xf32>
    %411 = arith.addf %410, %409 : vector<8x128xf32>
    %412 = arith.divf %410, %411 : vector<8x128xf32>
    %413 = arith.subf %406, %405 : vector<8x128xf32>
    %414 = arith.mulf %412, %413 : vector<8x128xf32>
    %415 = arith.addf %405, %414 : vector<8x128xf32>
    %416 = arith.mulf %415, %26 : vector<8x128xf32>
    %c6_i32_115 = arith.constant 6 : i32
    %417 = tpu.dynamic_rotate %416 by %c6_i32_115 dim 1 : vector<8x128xf32>, i32 -> vector<8x128xf32>
    %418 = arith.addf %363, %417 : vector<8x128xf32>
    %419 = vector.extract_strided_slice %30 {offsets = [0, 7], sizes = [8, 1], strides = [1, 1]} : vector<8x16xf32> to vector<8x1xf32>
    %420 = vector.broadcast %419 : vector<8x1xf32> to vector<8x128xf32>
    %421 = arith.mulf %420, %29 : vector<8x128xf32>
    %422 = vector.extract_strided_slice %382 {offsets = [0, 0], sizes = [8, 32], strides = [1, 1]} : vector<8x128xf32> to vector<8x32xf32>
    %cst_116 = arith.constant dense<0.000000e+00> : vector<8x128xf32>
    %423 = tpu.matmul %422, %0, %cst_116 {dimension_numbers = #tpu.dot_dimension_numbers<[1], [0], [0], [1], [0, 0, 1, 1], [], []>} : vector<8x32xf32>, vector<32x128xf32>, vector<8x128xf32> -> vector<8x128xf32>
    %424 = arith.addf %421, %423 : vector<8x128xf32>
    %425 = arith.addf %424, %5 : vector<8x128xf32>
    %426 = math.tanh %425 : vector<8x128xf32>
    %c96_i32_117 = arith.constant 96 : i32
    %427 = tpu.dynamic_rotate %426 by %c96_i32_117 dim 1 : vector<8x128xf32>, i32 -> vector<8x128xf32>
    %c64_i32_118 = arith.constant 64 : i32
    %428 = tpu.dynamic_rotate %425 by %c64_i32_118 dim 1 : vector<8x128xf32>, i32 -> vector<8x128xf32>
    %429 = arith.negf %428 : vector<8x128xf32>
    %430 = math.exp %429 : vector<8x128xf32>
    %cst_119 = arith.constant 1.000000e+00 : f32
    %431 = vector.broadcast %cst_119 : f32 to vector<8x128xf32>
    %432 = arith.addf %431, %430 : vector<8x128xf32>
    %433 = arith.divf %431, %432 : vector<8x128xf32>
    %434 = arith.subf %427, %426 : vector<8x128xf32>
    %435 = arith.mulf %433, %434 : vector<8x128xf32>
    %436 = arith.addf %426, %435 : vector<8x128xf32>
    %437 = arith.mulf %436, %16 : vector<8x128xf32>
    %c9_i32_120 = arith.constant 9 : i32
    %438 = tpu.dynamic_rotate %399 by %c9_i32_120 dim 1 : vector<8x128xf32>, i32 -> vector<8x128xf32>
    %439 = arith.addf %437, %438 : vector<8x128xf32>
    %440 = vector.extract_strided_slice %439 {offsets = [0, 0], sizes = [8, 32], strides = [1, 1]} : vector<8x128xf32> to vector<8x32xf32>
    %cst_121 = arith.constant dense<0.000000e+00> : vector<8x128xf32>
    %441 = tpu.matmul %440, %1, %cst_121 {dimension_numbers = #tpu.dot_dimension_numbers<[1], [0], [0], [1], [0, 0, 1, 1], [], []>} : vector<8x32xf32>, vector<32x128xf32>, vector<8x128xf32> -> vector<8x128xf32>
    %442 = arith.addf %441, %8 : vector<8x128xf32>
    %443 = math.tanh %442 : vector<8x128xf32>
    %c96_i32_122 = arith.constant 96 : i32
    %444 = tpu.dynamic_rotate %443 by %c96_i32_122 dim 1 : vector<8x128xf32>, i32 -> vector<8x128xf32>
    %c64_i32_123 = arith.constant 64 : i32
    %445 = tpu.dynamic_rotate %442 by %c64_i32_123 dim 1 : vector<8x128xf32>, i32 -> vector<8x128xf32>
    %446 = arith.negf %445 : vector<8x128xf32>
    %447 = math.exp %446 : vector<8x128xf32>
    %cst_124 = arith.constant 1.000000e+00 : f32
    %448 = vector.broadcast %cst_124 : f32 to vector<8x128xf32>
    %449 = arith.addf %448, %447 : vector<8x128xf32>
    %450 = arith.divf %448, %449 : vector<8x128xf32>
    %451 = arith.subf %444, %443 : vector<8x128xf32>
    %452 = arith.mulf %450, %451 : vector<8x128xf32>
    %453 = arith.addf %443, %452 : vector<8x128xf32>
    %454 = arith.mulf %453, %21 : vector<8x128xf32>
    %c6_i32_125 = arith.constant 6 : i32
    %455 = tpu.dynamic_rotate %416 by %c6_i32_125 dim 1 : vector<8x128xf32>, i32 -> vector<8x128xf32>
    %456 = arith.addf %454, %455 : vector<8x128xf32>
    %457 = vector.extract_strided_slice %456 {offsets = [0, 0], sizes = [8, 32], strides = [1, 1]} : vector<8x128xf32> to vector<8x32xf32>
    %cst_126 = arith.constant dense<0.000000e+00> : vector<8x128xf32>
    %458 = tpu.matmul %457, %2, %cst_126 {dimension_numbers = #tpu.dot_dimension_numbers<[1], [0], [0], [1], [0, 0, 1, 1], [], []>} : vector<8x32xf32>, vector<32x128xf32>, vector<8x128xf32> -> vector<8x128xf32>
    %459 = arith.addf %458, %11 : vector<8x128xf32>
    %460 = math.tanh %459 : vector<8x128xf32>
    %c96_i32_127 = arith.constant 96 : i32
    %461 = tpu.dynamic_rotate %460 by %c96_i32_127 dim 1 : vector<8x128xf32>, i32 -> vector<8x128xf32>
    %c64_i32_128 = arith.constant 64 : i32
    %462 = tpu.dynamic_rotate %459 by %c64_i32_128 dim 1 : vector<8x128xf32>, i32 -> vector<8x128xf32>
    %463 = arith.negf %462 : vector<8x128xf32>
    %464 = math.exp %463 : vector<8x128xf32>
    %cst_129 = arith.constant 1.000000e+00 : f32
    %465 = vector.broadcast %cst_129 : f32 to vector<8x128xf32>
    %466 = arith.addf %465, %464 : vector<8x128xf32>
    %467 = arith.divf %465, %466 : vector<8x128xf32>
    %468 = arith.subf %461, %460 : vector<8x128xf32>
    %469 = arith.mulf %467, %468 : vector<8x128xf32>
    %470 = arith.addf %460, %469 : vector<8x128xf32>
    %471 = arith.mulf %470, %26 : vector<8x128xf32>
    %c7_i32 = arith.constant 7 : i32
    %472 = tpu.dynamic_rotate %471 by %c7_i32 dim 1 : vector<8x128xf32>, i32 -> vector<8x128xf32>
    %473 = arith.addf %418, %472 : vector<8x128xf32>
    %474 = vector.extract_strided_slice %30 {offsets = [0, 8], sizes = [8, 1], strides = [1, 1]} : vector<8x16xf32> to vector<8x1xf32>
    %475 = vector.broadcast %474 : vector<8x1xf32> to vector<8x128xf32>
    %476 = arith.mulf %475, %29 : vector<8x128xf32>
    %477 = vector.extract_strided_slice %437 {offsets = [0, 0], sizes = [8, 32], strides = [1, 1]} : vector<8x128xf32> to vector<8x32xf32>
    %cst_130 = arith.constant dense<0.000000e+00> : vector<8x128xf32>
    %478 = tpu.matmul %477, %0, %cst_130 {dimension_numbers = #tpu.dot_dimension_numbers<[1], [0], [0], [1], [0, 0, 1, 1], [], []>} : vector<8x32xf32>, vector<32x128xf32>, vector<8x128xf32> -> vector<8x128xf32>
    %479 = arith.addf %476, %478 : vector<8x128xf32>
    %480 = arith.addf %479, %5 : vector<8x128xf32>
    %481 = math.tanh %480 : vector<8x128xf32>
    %c96_i32_131 = arith.constant 96 : i32
    %482 = tpu.dynamic_rotate %481 by %c96_i32_131 dim 1 : vector<8x128xf32>, i32 -> vector<8x128xf32>
    %c64_i32_132 = arith.constant 64 : i32
    %483 = tpu.dynamic_rotate %480 by %c64_i32_132 dim 1 : vector<8x128xf32>, i32 -> vector<8x128xf32>
    %484 = arith.negf %483 : vector<8x128xf32>
    %485 = math.exp %484 : vector<8x128xf32>
    %cst_133 = arith.constant 1.000000e+00 : f32
    %486 = vector.broadcast %cst_133 : f32 to vector<8x128xf32>
    %487 = arith.addf %486, %485 : vector<8x128xf32>
    %488 = arith.divf %486, %487 : vector<8x128xf32>
    %489 = arith.subf %482, %481 : vector<8x128xf32>
    %490 = arith.mulf %488, %489 : vector<8x128xf32>
    %491 = arith.addf %481, %490 : vector<8x128xf32>
    %492 = arith.mulf %491, %16 : vector<8x128xf32>
    %c9_i32_134 = arith.constant 9 : i32
    %493 = tpu.dynamic_rotate %454 by %c9_i32_134 dim 1 : vector<8x128xf32>, i32 -> vector<8x128xf32>
    %494 = arith.addf %492, %493 : vector<8x128xf32>
    %495 = vector.extract_strided_slice %494 {offsets = [0, 0], sizes = [8, 32], strides = [1, 1]} : vector<8x128xf32> to vector<8x32xf32>
    %cst_135 = arith.constant dense<0.000000e+00> : vector<8x128xf32>
    %496 = tpu.matmul %495, %1, %cst_135 {dimension_numbers = #tpu.dot_dimension_numbers<[1], [0], [0], [1], [0, 0, 1, 1], [], []>} : vector<8x32xf32>, vector<32x128xf32>, vector<8x128xf32> -> vector<8x128xf32>
    %497 = arith.addf %496, %8 : vector<8x128xf32>
    %498 = math.tanh %497 : vector<8x128xf32>
    %c96_i32_136 = arith.constant 96 : i32
    %499 = tpu.dynamic_rotate %498 by %c96_i32_136 dim 1 : vector<8x128xf32>, i32 -> vector<8x128xf32>
    %c64_i32_137 = arith.constant 64 : i32
    %500 = tpu.dynamic_rotate %497 by %c64_i32_137 dim 1 : vector<8x128xf32>, i32 -> vector<8x128xf32>
    %501 = arith.negf %500 : vector<8x128xf32>
    %502 = math.exp %501 : vector<8x128xf32>
    %cst_138 = arith.constant 1.000000e+00 : f32
    %503 = vector.broadcast %cst_138 : f32 to vector<8x128xf32>
    %504 = arith.addf %503, %502 : vector<8x128xf32>
    %505 = arith.divf %503, %504 : vector<8x128xf32>
    %506 = arith.subf %499, %498 : vector<8x128xf32>
    %507 = arith.mulf %505, %506 : vector<8x128xf32>
    %508 = arith.addf %498, %507 : vector<8x128xf32>
    %509 = arith.mulf %508, %21 : vector<8x128xf32>
    %c6_i32_139 = arith.constant 6 : i32
    %510 = tpu.dynamic_rotate %471 by %c6_i32_139 dim 1 : vector<8x128xf32>, i32 -> vector<8x128xf32>
    %511 = arith.addf %509, %510 : vector<8x128xf32>
    %512 = vector.extract_strided_slice %511 {offsets = [0, 0], sizes = [8, 32], strides = [1, 1]} : vector<8x128xf32> to vector<8x32xf32>
    %cst_140 = arith.constant dense<0.000000e+00> : vector<8x128xf32>
    %513 = tpu.matmul %512, %2, %cst_140 {dimension_numbers = #tpu.dot_dimension_numbers<[1], [0], [0], [1], [0, 0, 1, 1], [], []>} : vector<8x32xf32>, vector<32x128xf32>, vector<8x128xf32> -> vector<8x128xf32>
    %514 = arith.addf %513, %11 : vector<8x128xf32>
    %515 = math.tanh %514 : vector<8x128xf32>
    %c96_i32_141 = arith.constant 96 : i32
    %516 = tpu.dynamic_rotate %515 by %c96_i32_141 dim 1 : vector<8x128xf32>, i32 -> vector<8x128xf32>
    %c64_i32_142 = arith.constant 64 : i32
    %517 = tpu.dynamic_rotate %514 by %c64_i32_142 dim 1 : vector<8x128xf32>, i32 -> vector<8x128xf32>
    %518 = arith.negf %517 : vector<8x128xf32>
    %519 = math.exp %518 : vector<8x128xf32>
    %cst_143 = arith.constant 1.000000e+00 : f32
    %520 = vector.broadcast %cst_143 : f32 to vector<8x128xf32>
    %521 = arith.addf %520, %519 : vector<8x128xf32>
    %522 = arith.divf %520, %521 : vector<8x128xf32>
    %523 = arith.subf %516, %515 : vector<8x128xf32>
    %524 = arith.mulf %522, %523 : vector<8x128xf32>
    %525 = arith.addf %515, %524 : vector<8x128xf32>
    %526 = arith.mulf %525, %26 : vector<8x128xf32>
    %c8_i32 = arith.constant 8 : i32
    %527 = tpu.dynamic_rotate %526 by %c8_i32 dim 1 : vector<8x128xf32>, i32 -> vector<8x128xf32>
    %528 = arith.addf %473, %527 : vector<8x128xf32>
    %529 = vector.extract_strided_slice %30 {offsets = [0, 9], sizes = [8, 1], strides = [1, 1]} : vector<8x16xf32> to vector<8x1xf32>
    %530 = vector.broadcast %529 : vector<8x1xf32> to vector<8x128xf32>
    %531 = arith.mulf %530, %29 : vector<8x128xf32>
    %532 = vector.extract_strided_slice %492 {offsets = [0, 0], sizes = [8, 32], strides = [1, 1]} : vector<8x128xf32> to vector<8x32xf32>
    %cst_144 = arith.constant dense<0.000000e+00> : vector<8x128xf32>
    %533 = tpu.matmul %532, %0, %cst_144 {dimension_numbers = #tpu.dot_dimension_numbers<[1], [0], [0], [1], [0, 0, 1, 1], [], []>} : vector<8x32xf32>, vector<32x128xf32>, vector<8x128xf32> -> vector<8x128xf32>
    %534 = arith.addf %531, %533 : vector<8x128xf32>
    %535 = arith.addf %534, %5 : vector<8x128xf32>
    %536 = math.tanh %535 : vector<8x128xf32>
    %c96_i32_145 = arith.constant 96 : i32
    %537 = tpu.dynamic_rotate %536 by %c96_i32_145 dim 1 : vector<8x128xf32>, i32 -> vector<8x128xf32>
    %c64_i32_146 = arith.constant 64 : i32
    %538 = tpu.dynamic_rotate %535 by %c64_i32_146 dim 1 : vector<8x128xf32>, i32 -> vector<8x128xf32>
    %539 = arith.negf %538 : vector<8x128xf32>
    %540 = math.exp %539 : vector<8x128xf32>
    %cst_147 = arith.constant 1.000000e+00 : f32
    %541 = vector.broadcast %cst_147 : f32 to vector<8x128xf32>
    %542 = arith.addf %541, %540 : vector<8x128xf32>
    %543 = arith.divf %541, %542 : vector<8x128xf32>
    %544 = arith.subf %537, %536 : vector<8x128xf32>
    %545 = arith.mulf %543, %544 : vector<8x128xf32>
    %546 = arith.addf %536, %545 : vector<8x128xf32>
    %547 = arith.mulf %546, %16 : vector<8x128xf32>
    %c9_i32_148 = arith.constant 9 : i32
    %548 = tpu.dynamic_rotate %509 by %c9_i32_148 dim 1 : vector<8x128xf32>, i32 -> vector<8x128xf32>
    %549 = arith.addf %547, %548 : vector<8x128xf32>
    %550 = vector.extract_strided_slice %549 {offsets = [0, 0], sizes = [8, 32], strides = [1, 1]} : vector<8x128xf32> to vector<8x32xf32>
    %cst_149 = arith.constant dense<0.000000e+00> : vector<8x128xf32>
    %551 = tpu.matmul %550, %1, %cst_149 {dimension_numbers = #tpu.dot_dimension_numbers<[1], [0], [0], [1], [0, 0, 1, 1], [], []>} : vector<8x32xf32>, vector<32x128xf32>, vector<8x128xf32> -> vector<8x128xf32>
    %552 = arith.addf %551, %8 : vector<8x128xf32>
    %553 = math.tanh %552 : vector<8x128xf32>
    %c96_i32_150 = arith.constant 96 : i32
    %554 = tpu.dynamic_rotate %553 by %c96_i32_150 dim 1 : vector<8x128xf32>, i32 -> vector<8x128xf32>
    %c64_i32_151 = arith.constant 64 : i32
    %555 = tpu.dynamic_rotate %552 by %c64_i32_151 dim 1 : vector<8x128xf32>, i32 -> vector<8x128xf32>
    %556 = arith.negf %555 : vector<8x128xf32>
    %557 = math.exp %556 : vector<8x128xf32>
    %cst_152 = arith.constant 1.000000e+00 : f32
    %558 = vector.broadcast %cst_152 : f32 to vector<8x128xf32>
    %559 = arith.addf %558, %557 : vector<8x128xf32>
    %560 = arith.divf %558, %559 : vector<8x128xf32>
    %561 = arith.subf %554, %553 : vector<8x128xf32>
    %562 = arith.mulf %560, %561 : vector<8x128xf32>
    %563 = arith.addf %553, %562 : vector<8x128xf32>
    %564 = arith.mulf %563, %21 : vector<8x128xf32>
    %c6_i32_153 = arith.constant 6 : i32
    %565 = tpu.dynamic_rotate %526 by %c6_i32_153 dim 1 : vector<8x128xf32>, i32 -> vector<8x128xf32>
    %566 = arith.addf %564, %565 : vector<8x128xf32>
    %567 = vector.extract_strided_slice %566 {offsets = [0, 0], sizes = [8, 32], strides = [1, 1]} : vector<8x128xf32> to vector<8x32xf32>
    %cst_154 = arith.constant dense<0.000000e+00> : vector<8x128xf32>
    %568 = tpu.matmul %567, %2, %cst_154 {dimension_numbers = #tpu.dot_dimension_numbers<[1], [0], [0], [1], [0, 0, 1, 1], [], []>} : vector<8x32xf32>, vector<32x128xf32>, vector<8x128xf32> -> vector<8x128xf32>
    %569 = arith.addf %568, %11 : vector<8x128xf32>
    %570 = math.tanh %569 : vector<8x128xf32>
    %c96_i32_155 = arith.constant 96 : i32
    %571 = tpu.dynamic_rotate %570 by %c96_i32_155 dim 1 : vector<8x128xf32>, i32 -> vector<8x128xf32>
    %c64_i32_156 = arith.constant 64 : i32
    %572 = tpu.dynamic_rotate %569 by %c64_i32_156 dim 1 : vector<8x128xf32>, i32 -> vector<8x128xf32>
    %573 = arith.negf %572 : vector<8x128xf32>
    %574 = math.exp %573 : vector<8x128xf32>
    %cst_157 = arith.constant 1.000000e+00 : f32
    %575 = vector.broadcast %cst_157 : f32 to vector<8x128xf32>
    %576 = arith.addf %575, %574 : vector<8x128xf32>
    %577 = arith.divf %575, %576 : vector<8x128xf32>
    %578 = arith.subf %571, %570 : vector<8x128xf32>
    %579 = arith.mulf %577, %578 : vector<8x128xf32>
    %580 = arith.addf %570, %579 : vector<8x128xf32>
    %581 = arith.mulf %580, %26 : vector<8x128xf32>
    %c9_i32_158 = arith.constant 9 : i32
    %582 = tpu.dynamic_rotate %581 by %c9_i32_158 dim 1 : vector<8x128xf32>, i32 -> vector<8x128xf32>
    %583 = arith.addf %528, %582 : vector<8x128xf32>
    %584 = vector.extract_strided_slice %30 {offsets = [0, 10], sizes = [8, 1], strides = [1, 1]} : vector<8x16xf32> to vector<8x1xf32>
    %585 = vector.broadcast %584 : vector<8x1xf32> to vector<8x128xf32>
    %586 = arith.mulf %585, %29 : vector<8x128xf32>
    %587 = vector.extract_strided_slice %547 {offsets = [0, 0], sizes = [8, 32], strides = [1, 1]} : vector<8x128xf32> to vector<8x32xf32>
    %cst_159 = arith.constant dense<0.000000e+00> : vector<8x128xf32>
    %588 = tpu.matmul %587, %0, %cst_159 {dimension_numbers = #tpu.dot_dimension_numbers<[1], [0], [0], [1], [0, 0, 1, 1], [], []>} : vector<8x32xf32>, vector<32x128xf32>, vector<8x128xf32> -> vector<8x128xf32>
    %589 = arith.addf %586, %588 : vector<8x128xf32>
    %590 = arith.addf %589, %5 : vector<8x128xf32>
    %591 = math.tanh %590 : vector<8x128xf32>
    %c96_i32_160 = arith.constant 96 : i32
    %592 = tpu.dynamic_rotate %591 by %c96_i32_160 dim 1 : vector<8x128xf32>, i32 -> vector<8x128xf32>
    %c64_i32_161 = arith.constant 64 : i32
    %593 = tpu.dynamic_rotate %590 by %c64_i32_161 dim 1 : vector<8x128xf32>, i32 -> vector<8x128xf32>
    %594 = arith.negf %593 : vector<8x128xf32>
    %595 = math.exp %594 : vector<8x128xf32>
    %cst_162 = arith.constant 1.000000e+00 : f32
    %596 = vector.broadcast %cst_162 : f32 to vector<8x128xf32>
    %597 = arith.addf %596, %595 : vector<8x128xf32>
    %598 = arith.divf %596, %597 : vector<8x128xf32>
    %599 = arith.subf %592, %591 : vector<8x128xf32>
    %600 = arith.mulf %598, %599 : vector<8x128xf32>
    %601 = arith.addf %591, %600 : vector<8x128xf32>
    %602 = arith.mulf %601, %16 : vector<8x128xf32>
    %c9_i32_163 = arith.constant 9 : i32
    %603 = tpu.dynamic_rotate %564 by %c9_i32_163 dim 1 : vector<8x128xf32>, i32 -> vector<8x128xf32>
    %604 = arith.addf %602, %603 : vector<8x128xf32>
    %605 = vector.extract_strided_slice %604 {offsets = [0, 0], sizes = [8, 32], strides = [1, 1]} : vector<8x128xf32> to vector<8x32xf32>
    %cst_164 = arith.constant dense<0.000000e+00> : vector<8x128xf32>
    %606 = tpu.matmul %605, %1, %cst_164 {dimension_numbers = #tpu.dot_dimension_numbers<[1], [0], [0], [1], [0, 0, 1, 1], [], []>} : vector<8x32xf32>, vector<32x128xf32>, vector<8x128xf32> -> vector<8x128xf32>
    %607 = arith.addf %606, %8 : vector<8x128xf32>
    %608 = math.tanh %607 : vector<8x128xf32>
    %c96_i32_165 = arith.constant 96 : i32
    %609 = tpu.dynamic_rotate %608 by %c96_i32_165 dim 1 : vector<8x128xf32>, i32 -> vector<8x128xf32>
    %c64_i32_166 = arith.constant 64 : i32
    %610 = tpu.dynamic_rotate %607 by %c64_i32_166 dim 1 : vector<8x128xf32>, i32 -> vector<8x128xf32>
    %611 = arith.negf %610 : vector<8x128xf32>
    %612 = math.exp %611 : vector<8x128xf32>
    %cst_167 = arith.constant 1.000000e+00 : f32
    %613 = vector.broadcast %cst_167 : f32 to vector<8x128xf32>
    %614 = arith.addf %613, %612 : vector<8x128xf32>
    %615 = arith.divf %613, %614 : vector<8x128xf32>
    %616 = arith.subf %609, %608 : vector<8x128xf32>
    %617 = arith.mulf %615, %616 : vector<8x128xf32>
    %618 = arith.addf %608, %617 : vector<8x128xf32>
    %619 = arith.mulf %618, %21 : vector<8x128xf32>
    %c6_i32_168 = arith.constant 6 : i32
    %620 = tpu.dynamic_rotate %581 by %c6_i32_168 dim 1 : vector<8x128xf32>, i32 -> vector<8x128xf32>
    %621 = arith.addf %619, %620 : vector<8x128xf32>
    %622 = vector.extract_strided_slice %621 {offsets = [0, 0], sizes = [8, 32], strides = [1, 1]} : vector<8x128xf32> to vector<8x32xf32>
    %cst_169 = arith.constant dense<0.000000e+00> : vector<8x128xf32>
    %623 = tpu.matmul %622, %2, %cst_169 {dimension_numbers = #tpu.dot_dimension_numbers<[1], [0], [0], [1], [0, 0, 1, 1], [], []>} : vector<8x32xf32>, vector<32x128xf32>, vector<8x128xf32> -> vector<8x128xf32>
    %624 = arith.addf %623, %11 : vector<8x128xf32>
    %625 = math.tanh %624 : vector<8x128xf32>
    %c96_i32_170 = arith.constant 96 : i32
    %626 = tpu.dynamic_rotate %625 by %c96_i32_170 dim 1 : vector<8x128xf32>, i32 -> vector<8x128xf32>
    %c64_i32_171 = arith.constant 64 : i32
    %627 = tpu.dynamic_rotate %624 by %c64_i32_171 dim 1 : vector<8x128xf32>, i32 -> vector<8x128xf32>
    %628 = arith.negf %627 : vector<8x128xf32>
    %629 = math.exp %628 : vector<8x128xf32>
    %cst_172 = arith.constant 1.000000e+00 : f32
    %630 = vector.broadcast %cst_172 : f32 to vector<8x128xf32>
    %631 = arith.addf %630, %629 : vector<8x128xf32>
    %632 = arith.divf %630, %631 : vector<8x128xf32>
    %633 = arith.subf %626, %625 : vector<8x128xf32>
    %634 = arith.mulf %632, %633 : vector<8x128xf32>
    %635 = arith.addf %625, %634 : vector<8x128xf32>
    %636 = arith.mulf %635, %26 : vector<8x128xf32>
    %c10_i32 = arith.constant 10 : i32
    %637 = tpu.dynamic_rotate %636 by %c10_i32 dim 1 : vector<8x128xf32>, i32 -> vector<8x128xf32>
    %638 = arith.addf %583, %637 : vector<8x128xf32>
    %639 = vector.extract_strided_slice %30 {offsets = [0, 11], sizes = [8, 1], strides = [1, 1]} : vector<8x16xf32> to vector<8x1xf32>
    %640 = vector.broadcast %639 : vector<8x1xf32> to vector<8x128xf32>
    %641 = arith.mulf %640, %29 : vector<8x128xf32>
    %642 = vector.extract_strided_slice %602 {offsets = [0, 0], sizes = [8, 32], strides = [1, 1]} : vector<8x128xf32> to vector<8x32xf32>
    %cst_173 = arith.constant dense<0.000000e+00> : vector<8x128xf32>
    %643 = tpu.matmul %642, %0, %cst_173 {dimension_numbers = #tpu.dot_dimension_numbers<[1], [0], [0], [1], [0, 0, 1, 1], [], []>} : vector<8x32xf32>, vector<32x128xf32>, vector<8x128xf32> -> vector<8x128xf32>
    %644 = arith.addf %641, %643 : vector<8x128xf32>
    %645 = arith.addf %644, %5 : vector<8x128xf32>
    %646 = math.tanh %645 : vector<8x128xf32>
    %c96_i32_174 = arith.constant 96 : i32
    %647 = tpu.dynamic_rotate %646 by %c96_i32_174 dim 1 : vector<8x128xf32>, i32 -> vector<8x128xf32>
    %c64_i32_175 = arith.constant 64 : i32
    %648 = tpu.dynamic_rotate %645 by %c64_i32_175 dim 1 : vector<8x128xf32>, i32 -> vector<8x128xf32>
    %649 = arith.negf %648 : vector<8x128xf32>
    %650 = math.exp %649 : vector<8x128xf32>
    %cst_176 = arith.constant 1.000000e+00 : f32
    %651 = vector.broadcast %cst_176 : f32 to vector<8x128xf32>
    %652 = arith.addf %651, %650 : vector<8x128xf32>
    %653 = arith.divf %651, %652 : vector<8x128xf32>
    %654 = arith.subf %647, %646 : vector<8x128xf32>
    %655 = arith.mulf %653, %654 : vector<8x128xf32>
    %656 = arith.addf %646, %655 : vector<8x128xf32>
    %657 = arith.mulf %656, %16 : vector<8x128xf32>
    %c9_i32_177 = arith.constant 9 : i32
    %658 = tpu.dynamic_rotate %619 by %c9_i32_177 dim 1 : vector<8x128xf32>, i32 -> vector<8x128xf32>
    %659 = arith.addf %657, %658 : vector<8x128xf32>
    %660 = vector.extract_strided_slice %659 {offsets = [0, 0], sizes = [8, 32], strides = [1, 1]} : vector<8x128xf32> to vector<8x32xf32>
    %cst_178 = arith.constant dense<0.000000e+00> : vector<8x128xf32>
    %661 = tpu.matmul %660, %1, %cst_178 {dimension_numbers = #tpu.dot_dimension_numbers<[1], [0], [0], [1], [0, 0, 1, 1], [], []>} : vector<8x32xf32>, vector<32x128xf32>, vector<8x128xf32> -> vector<8x128xf32>
    %662 = arith.addf %661, %8 : vector<8x128xf32>
    %663 = math.tanh %662 : vector<8x128xf32>
    %c96_i32_179 = arith.constant 96 : i32
    %664 = tpu.dynamic_rotate %663 by %c96_i32_179 dim 1 : vector<8x128xf32>, i32 -> vector<8x128xf32>
    %c64_i32_180 = arith.constant 64 : i32
    %665 = tpu.dynamic_rotate %662 by %c64_i32_180 dim 1 : vector<8x128xf32>, i32 -> vector<8x128xf32>
    %666 = arith.negf %665 : vector<8x128xf32>
    %667 = math.exp %666 : vector<8x128xf32>
    %cst_181 = arith.constant 1.000000e+00 : f32
    %668 = vector.broadcast %cst_181 : f32 to vector<8x128xf32>
    %669 = arith.addf %668, %667 : vector<8x128xf32>
    %670 = arith.divf %668, %669 : vector<8x128xf32>
    %671 = arith.subf %664, %663 : vector<8x128xf32>
    %672 = arith.mulf %670, %671 : vector<8x128xf32>
    %673 = arith.addf %663, %672 : vector<8x128xf32>
    %674 = arith.mulf %673, %21 : vector<8x128xf32>
    %c6_i32_182 = arith.constant 6 : i32
    %675 = tpu.dynamic_rotate %636 by %c6_i32_182 dim 1 : vector<8x128xf32>, i32 -> vector<8x128xf32>
    %676 = arith.addf %674, %675 : vector<8x128xf32>
    %677 = vector.extract_strided_slice %676 {offsets = [0, 0], sizes = [8, 32], strides = [1, 1]} : vector<8x128xf32> to vector<8x32xf32>
    %cst_183 = arith.constant dense<0.000000e+00> : vector<8x128xf32>
    %678 = tpu.matmul %677, %2, %cst_183 {dimension_numbers = #tpu.dot_dimension_numbers<[1], [0], [0], [1], [0, 0, 1, 1], [], []>} : vector<8x32xf32>, vector<32x128xf32>, vector<8x128xf32> -> vector<8x128xf32>
    %679 = arith.addf %678, %11 : vector<8x128xf32>
    %680 = math.tanh %679 : vector<8x128xf32>
    %c96_i32_184 = arith.constant 96 : i32
    %681 = tpu.dynamic_rotate %680 by %c96_i32_184 dim 1 : vector<8x128xf32>, i32 -> vector<8x128xf32>
    %c64_i32_185 = arith.constant 64 : i32
    %682 = tpu.dynamic_rotate %679 by %c64_i32_185 dim 1 : vector<8x128xf32>, i32 -> vector<8x128xf32>
    %683 = arith.negf %682 : vector<8x128xf32>
    %684 = math.exp %683 : vector<8x128xf32>
    %cst_186 = arith.constant 1.000000e+00 : f32
    %685 = vector.broadcast %cst_186 : f32 to vector<8x128xf32>
    %686 = arith.addf %685, %684 : vector<8x128xf32>
    %687 = arith.divf %685, %686 : vector<8x128xf32>
    %688 = arith.subf %681, %680 : vector<8x128xf32>
    %689 = arith.mulf %687, %688 : vector<8x128xf32>
    %690 = arith.addf %680, %689 : vector<8x128xf32>
    %691 = arith.mulf %690, %26 : vector<8x128xf32>
    %c11_i32 = arith.constant 11 : i32
    %692 = tpu.dynamic_rotate %691 by %c11_i32 dim 1 : vector<8x128xf32>, i32 -> vector<8x128xf32>
    %693 = arith.addf %638, %692 : vector<8x128xf32>
    %694 = vector.extract_strided_slice %30 {offsets = [0, 12], sizes = [8, 1], strides = [1, 1]} : vector<8x16xf32> to vector<8x1xf32>
    %695 = vector.broadcast %694 : vector<8x1xf32> to vector<8x128xf32>
    %696 = arith.mulf %695, %29 : vector<8x128xf32>
    %697 = vector.extract_strided_slice %657 {offsets = [0, 0], sizes = [8, 32], strides = [1, 1]} : vector<8x128xf32> to vector<8x32xf32>
    %cst_187 = arith.constant dense<0.000000e+00> : vector<8x128xf32>
    %698 = tpu.matmul %697, %0, %cst_187 {dimension_numbers = #tpu.dot_dimension_numbers<[1], [0], [0], [1], [0, 0, 1, 1], [], []>} : vector<8x32xf32>, vector<32x128xf32>, vector<8x128xf32> -> vector<8x128xf32>
    %699 = arith.addf %696, %698 : vector<8x128xf32>
    %700 = arith.addf %699, %5 : vector<8x128xf32>
    %701 = math.tanh %700 : vector<8x128xf32>
    %c96_i32_188 = arith.constant 96 : i32
    %702 = tpu.dynamic_rotate %701 by %c96_i32_188 dim 1 : vector<8x128xf32>, i32 -> vector<8x128xf32>
    %c64_i32_189 = arith.constant 64 : i32
    %703 = tpu.dynamic_rotate %700 by %c64_i32_189 dim 1 : vector<8x128xf32>, i32 -> vector<8x128xf32>
    %704 = arith.negf %703 : vector<8x128xf32>
    %705 = math.exp %704 : vector<8x128xf32>
    %cst_190 = arith.constant 1.000000e+00 : f32
    %706 = vector.broadcast %cst_190 : f32 to vector<8x128xf32>
    %707 = arith.addf %706, %705 : vector<8x128xf32>
    %708 = arith.divf %706, %707 : vector<8x128xf32>
    %709 = arith.subf %702, %701 : vector<8x128xf32>
    %710 = arith.mulf %708, %709 : vector<8x128xf32>
    %711 = arith.addf %701, %710 : vector<8x128xf32>
    %712 = arith.mulf %711, %16 : vector<8x128xf32>
    %c9_i32_191 = arith.constant 9 : i32
    %713 = tpu.dynamic_rotate %674 by %c9_i32_191 dim 1 : vector<8x128xf32>, i32 -> vector<8x128xf32>
    %714 = arith.addf %712, %713 : vector<8x128xf32>
    %715 = vector.extract_strided_slice %714 {offsets = [0, 0], sizes = [8, 32], strides = [1, 1]} : vector<8x128xf32> to vector<8x32xf32>
    %cst_192 = arith.constant dense<0.000000e+00> : vector<8x128xf32>
    %716 = tpu.matmul %715, %1, %cst_192 {dimension_numbers = #tpu.dot_dimension_numbers<[1], [0], [0], [1], [0, 0, 1, 1], [], []>} : vector<8x32xf32>, vector<32x128xf32>, vector<8x128xf32> -> vector<8x128xf32>
    %717 = arith.addf %716, %8 : vector<8x128xf32>
    %718 = math.tanh %717 : vector<8x128xf32>
    %c96_i32_193 = arith.constant 96 : i32
    %719 = tpu.dynamic_rotate %718 by %c96_i32_193 dim 1 : vector<8x128xf32>, i32 -> vector<8x128xf32>
    %c64_i32_194 = arith.constant 64 : i32
    %720 = tpu.dynamic_rotate %717 by %c64_i32_194 dim 1 : vector<8x128xf32>, i32 -> vector<8x128xf32>
    %721 = arith.negf %720 : vector<8x128xf32>
    %722 = math.exp %721 : vector<8x128xf32>
    %cst_195 = arith.constant 1.000000e+00 : f32
    %723 = vector.broadcast %cst_195 : f32 to vector<8x128xf32>
    %724 = arith.addf %723, %722 : vector<8x128xf32>
    %725 = arith.divf %723, %724 : vector<8x128xf32>
    %726 = arith.subf %719, %718 : vector<8x128xf32>
    %727 = arith.mulf %725, %726 : vector<8x128xf32>
    %728 = arith.addf %718, %727 : vector<8x128xf32>
    %729 = arith.mulf %728, %21 : vector<8x128xf32>
    %c6_i32_196 = arith.constant 6 : i32
    %730 = tpu.dynamic_rotate %691 by %c6_i32_196 dim 1 : vector<8x128xf32>, i32 -> vector<8x128xf32>
    %731 = arith.addf %729, %730 : vector<8x128xf32>
    %732 = vector.extract_strided_slice %731 {offsets = [0, 0], sizes = [8, 32], strides = [1, 1]} : vector<8x128xf32> to vector<8x32xf32>
    %cst_197 = arith.constant dense<0.000000e+00> : vector<8x128xf32>
    %733 = tpu.matmul %732, %2, %cst_197 {dimension_numbers = #tpu.dot_dimension_numbers<[1], [0], [0], [1], [0, 0, 1, 1], [], []>} : vector<8x32xf32>, vector<32x128xf32>, vector<8x128xf32> -> vector<8x128xf32>
    %734 = arith.addf %733, %11 : vector<8x128xf32>
    %735 = math.tanh %734 : vector<8x128xf32>
    %c96_i32_198 = arith.constant 96 : i32
    %736 = tpu.dynamic_rotate %735 by %c96_i32_198 dim 1 : vector<8x128xf32>, i32 -> vector<8x128xf32>
    %c64_i32_199 = arith.constant 64 : i32
    %737 = tpu.dynamic_rotate %734 by %c64_i32_199 dim 1 : vector<8x128xf32>, i32 -> vector<8x128xf32>
    %738 = arith.negf %737 : vector<8x128xf32>
    %739 = math.exp %738 : vector<8x128xf32>
    %cst_200 = arith.constant 1.000000e+00 : f32
    %740 = vector.broadcast %cst_200 : f32 to vector<8x128xf32>
    %741 = arith.addf %740, %739 : vector<8x128xf32>
    %742 = arith.divf %740, %741 : vector<8x128xf32>
    %743 = arith.subf %736, %735 : vector<8x128xf32>
    %744 = arith.mulf %742, %743 : vector<8x128xf32>
    %745 = arith.addf %735, %744 : vector<8x128xf32>
    %746 = arith.mulf %745, %26 : vector<8x128xf32>
    %c12_i32 = arith.constant 12 : i32
    %747 = tpu.dynamic_rotate %746 by %c12_i32 dim 1 : vector<8x128xf32>, i32 -> vector<8x128xf32>
    %748 = arith.addf %693, %747 : vector<8x128xf32>
    %749 = vector.extract_strided_slice %30 {offsets = [0, 13], sizes = [8, 1], strides = [1, 1]} : vector<8x16xf32> to vector<8x1xf32>
    %750 = vector.broadcast %749 : vector<8x1xf32> to vector<8x128xf32>
    %751 = arith.mulf %750, %29 : vector<8x128xf32>
    %752 = vector.extract_strided_slice %712 {offsets = [0, 0], sizes = [8, 32], strides = [1, 1]} : vector<8x128xf32> to vector<8x32xf32>
    %cst_201 = arith.constant dense<0.000000e+00> : vector<8x128xf32>
    %753 = tpu.matmul %752, %0, %cst_201 {dimension_numbers = #tpu.dot_dimension_numbers<[1], [0], [0], [1], [0, 0, 1, 1], [], []>} : vector<8x32xf32>, vector<32x128xf32>, vector<8x128xf32> -> vector<8x128xf32>
    %754 = arith.addf %751, %753 : vector<8x128xf32>
    %755 = arith.addf %754, %5 : vector<8x128xf32>
    %756 = math.tanh %755 : vector<8x128xf32>
    %c96_i32_202 = arith.constant 96 : i32
    %757 = tpu.dynamic_rotate %756 by %c96_i32_202 dim 1 : vector<8x128xf32>, i32 -> vector<8x128xf32>
    %c64_i32_203 = arith.constant 64 : i32
    %758 = tpu.dynamic_rotate %755 by %c64_i32_203 dim 1 : vector<8x128xf32>, i32 -> vector<8x128xf32>
    %759 = arith.negf %758 : vector<8x128xf32>
    %760 = math.exp %759 : vector<8x128xf32>
    %cst_204 = arith.constant 1.000000e+00 : f32
    %761 = vector.broadcast %cst_204 : f32 to vector<8x128xf32>
    %762 = arith.addf %761, %760 : vector<8x128xf32>
    %763 = arith.divf %761, %762 : vector<8x128xf32>
    %764 = arith.subf %757, %756 : vector<8x128xf32>
    %765 = arith.mulf %763, %764 : vector<8x128xf32>
    %766 = arith.addf %756, %765 : vector<8x128xf32>
    %767 = arith.mulf %766, %16 : vector<8x128xf32>
    %c9_i32_205 = arith.constant 9 : i32
    %768 = tpu.dynamic_rotate %729 by %c9_i32_205 dim 1 : vector<8x128xf32>, i32 -> vector<8x128xf32>
    %769 = arith.addf %767, %768 : vector<8x128xf32>
    %770 = vector.extract_strided_slice %769 {offsets = [0, 0], sizes = [8, 32], strides = [1, 1]} : vector<8x128xf32> to vector<8x32xf32>
    %cst_206 = arith.constant dense<0.000000e+00> : vector<8x128xf32>
    %771 = tpu.matmul %770, %1, %cst_206 {dimension_numbers = #tpu.dot_dimension_numbers<[1], [0], [0], [1], [0, 0, 1, 1], [], []>} : vector<8x32xf32>, vector<32x128xf32>, vector<8x128xf32> -> vector<8x128xf32>
    %772 = arith.addf %771, %8 : vector<8x128xf32>
    %773 = math.tanh %772 : vector<8x128xf32>
    %c96_i32_207 = arith.constant 96 : i32
    %774 = tpu.dynamic_rotate %773 by %c96_i32_207 dim 1 : vector<8x128xf32>, i32 -> vector<8x128xf32>
    %c64_i32_208 = arith.constant 64 : i32
    %775 = tpu.dynamic_rotate %772 by %c64_i32_208 dim 1 : vector<8x128xf32>, i32 -> vector<8x128xf32>
    %776 = arith.negf %775 : vector<8x128xf32>
    %777 = math.exp %776 : vector<8x128xf32>
    %cst_209 = arith.constant 1.000000e+00 : f32
    %778 = vector.broadcast %cst_209 : f32 to vector<8x128xf32>
    %779 = arith.addf %778, %777 : vector<8x128xf32>
    %780 = arith.divf %778, %779 : vector<8x128xf32>
    %781 = arith.subf %774, %773 : vector<8x128xf32>
    %782 = arith.mulf %780, %781 : vector<8x128xf32>
    %783 = arith.addf %773, %782 : vector<8x128xf32>
    %784 = arith.mulf %783, %21 : vector<8x128xf32>
    %c6_i32_210 = arith.constant 6 : i32
    %785 = tpu.dynamic_rotate %746 by %c6_i32_210 dim 1 : vector<8x128xf32>, i32 -> vector<8x128xf32>
    %786 = arith.addf %784, %785 : vector<8x128xf32>
    %787 = vector.extract_strided_slice %786 {offsets = [0, 0], sizes = [8, 32], strides = [1, 1]} : vector<8x128xf32> to vector<8x32xf32>
    %cst_211 = arith.constant dense<0.000000e+00> : vector<8x128xf32>
    %788 = tpu.matmul %787, %2, %cst_211 {dimension_numbers = #tpu.dot_dimension_numbers<[1], [0], [0], [1], [0, 0, 1, 1], [], []>} : vector<8x32xf32>, vector<32x128xf32>, vector<8x128xf32> -> vector<8x128xf32>
    %789 = arith.addf %788, %11 : vector<8x128xf32>
    %790 = math.tanh %789 : vector<8x128xf32>
    %c96_i32_212 = arith.constant 96 : i32
    %791 = tpu.dynamic_rotate %790 by %c96_i32_212 dim 1 : vector<8x128xf32>, i32 -> vector<8x128xf32>
    %c64_i32_213 = arith.constant 64 : i32
    %792 = tpu.dynamic_rotate %789 by %c64_i32_213 dim 1 : vector<8x128xf32>, i32 -> vector<8x128xf32>
    %793 = arith.negf %792 : vector<8x128xf32>
    %794 = math.exp %793 : vector<8x128xf32>
    %cst_214 = arith.constant 1.000000e+00 : f32
    %795 = vector.broadcast %cst_214 : f32 to vector<8x128xf32>
    %796 = arith.addf %795, %794 : vector<8x128xf32>
    %797 = arith.divf %795, %796 : vector<8x128xf32>
    %798 = arith.subf %791, %790 : vector<8x128xf32>
    %799 = arith.mulf %797, %798 : vector<8x128xf32>
    %800 = arith.addf %790, %799 : vector<8x128xf32>
    %801 = arith.mulf %800, %26 : vector<8x128xf32>
    %c13_i32 = arith.constant 13 : i32
    %802 = tpu.dynamic_rotate %801 by %c13_i32 dim 1 : vector<8x128xf32>, i32 -> vector<8x128xf32>
    %803 = arith.addf %748, %802 : vector<8x128xf32>
    %804 = vector.extract_strided_slice %30 {offsets = [0, 14], sizes = [8, 1], strides = [1, 1]} : vector<8x16xf32> to vector<8x1xf32>
    %805 = vector.broadcast %804 : vector<8x1xf32> to vector<8x128xf32>
    %806 = arith.mulf %805, %29 : vector<8x128xf32>
    %807 = vector.extract_strided_slice %767 {offsets = [0, 0], sizes = [8, 32], strides = [1, 1]} : vector<8x128xf32> to vector<8x32xf32>
    %cst_215 = arith.constant dense<0.000000e+00> : vector<8x128xf32>
    %808 = tpu.matmul %807, %0, %cst_215 {dimension_numbers = #tpu.dot_dimension_numbers<[1], [0], [0], [1], [0, 0, 1, 1], [], []>} : vector<8x32xf32>, vector<32x128xf32>, vector<8x128xf32> -> vector<8x128xf32>
    %809 = arith.addf %806, %808 : vector<8x128xf32>
    %810 = arith.addf %809, %5 : vector<8x128xf32>
    %811 = math.tanh %810 : vector<8x128xf32>
    %c96_i32_216 = arith.constant 96 : i32
    %812 = tpu.dynamic_rotate %811 by %c96_i32_216 dim 1 : vector<8x128xf32>, i32 -> vector<8x128xf32>
    %c64_i32_217 = arith.constant 64 : i32
    %813 = tpu.dynamic_rotate %810 by %c64_i32_217 dim 1 : vector<8x128xf32>, i32 -> vector<8x128xf32>
    %814 = arith.negf %813 : vector<8x128xf32>
    %815 = math.exp %814 : vector<8x128xf32>
    %cst_218 = arith.constant 1.000000e+00 : f32
    %816 = vector.broadcast %cst_218 : f32 to vector<8x128xf32>
    %817 = arith.addf %816, %815 : vector<8x128xf32>
    %818 = arith.divf %816, %817 : vector<8x128xf32>
    %819 = arith.subf %812, %811 : vector<8x128xf32>
    %820 = arith.mulf %818, %819 : vector<8x128xf32>
    %821 = arith.addf %811, %820 : vector<8x128xf32>
    %822 = arith.mulf %821, %16 : vector<8x128xf32>
    %c9_i32_219 = arith.constant 9 : i32
    %823 = tpu.dynamic_rotate %784 by %c9_i32_219 dim 1 : vector<8x128xf32>, i32 -> vector<8x128xf32>
    %824 = arith.addf %822, %823 : vector<8x128xf32>
    %825 = vector.extract_strided_slice %824 {offsets = [0, 0], sizes = [8, 32], strides = [1, 1]} : vector<8x128xf32> to vector<8x32xf32>
    %cst_220 = arith.constant dense<0.000000e+00> : vector<8x128xf32>
    %826 = tpu.matmul %825, %1, %cst_220 {dimension_numbers = #tpu.dot_dimension_numbers<[1], [0], [0], [1], [0, 0, 1, 1], [], []>} : vector<8x32xf32>, vector<32x128xf32>, vector<8x128xf32> -> vector<8x128xf32>
    %827 = arith.addf %826, %8 : vector<8x128xf32>
    %828 = math.tanh %827 : vector<8x128xf32>
    %c96_i32_221 = arith.constant 96 : i32
    %829 = tpu.dynamic_rotate %828 by %c96_i32_221 dim 1 : vector<8x128xf32>, i32 -> vector<8x128xf32>
    %c64_i32_222 = arith.constant 64 : i32
    %830 = tpu.dynamic_rotate %827 by %c64_i32_222 dim 1 : vector<8x128xf32>, i32 -> vector<8x128xf32>
    %831 = arith.negf %830 : vector<8x128xf32>
    %832 = math.exp %831 : vector<8x128xf32>
    %cst_223 = arith.constant 1.000000e+00 : f32
    %833 = vector.broadcast %cst_223 : f32 to vector<8x128xf32>
    %834 = arith.addf %833, %832 : vector<8x128xf32>
    %835 = arith.divf %833, %834 : vector<8x128xf32>
    %836 = arith.subf %829, %828 : vector<8x128xf32>
    %837 = arith.mulf %835, %836 : vector<8x128xf32>
    %838 = arith.addf %828, %837 : vector<8x128xf32>
    %839 = arith.mulf %838, %21 : vector<8x128xf32>
    %c6_i32_224 = arith.constant 6 : i32
    %840 = tpu.dynamic_rotate %801 by %c6_i32_224 dim 1 : vector<8x128xf32>, i32 -> vector<8x128xf32>
    %841 = arith.addf %839, %840 : vector<8x128xf32>
    %842 = vector.extract_strided_slice %841 {offsets = [0, 0], sizes = [8, 32], strides = [1, 1]} : vector<8x128xf32> to vector<8x32xf32>
    %cst_225 = arith.constant dense<0.000000e+00> : vector<8x128xf32>
    %843 = tpu.matmul %842, %2, %cst_225 {dimension_numbers = #tpu.dot_dimension_numbers<[1], [0], [0], [1], [0, 0, 1, 1], [], []>} : vector<8x32xf32>, vector<32x128xf32>, vector<8x128xf32> -> vector<8x128xf32>
    %844 = arith.addf %843, %11 : vector<8x128xf32>
    %845 = math.tanh %844 : vector<8x128xf32>
    %c96_i32_226 = arith.constant 96 : i32
    %846 = tpu.dynamic_rotate %845 by %c96_i32_226 dim 1 : vector<8x128xf32>, i32 -> vector<8x128xf32>
    %c64_i32_227 = arith.constant 64 : i32
    %847 = tpu.dynamic_rotate %844 by %c64_i32_227 dim 1 : vector<8x128xf32>, i32 -> vector<8x128xf32>
    %848 = arith.negf %847 : vector<8x128xf32>
    %849 = math.exp %848 : vector<8x128xf32>
    %cst_228 = arith.constant 1.000000e+00 : f32
    %850 = vector.broadcast %cst_228 : f32 to vector<8x128xf32>
    %851 = arith.addf %850, %849 : vector<8x128xf32>
    %852 = arith.divf %850, %851 : vector<8x128xf32>
    %853 = arith.subf %846, %845 : vector<8x128xf32>
    %854 = arith.mulf %852, %853 : vector<8x128xf32>
    %855 = arith.addf %845, %854 : vector<8x128xf32>
    %856 = arith.mulf %855, %26 : vector<8x128xf32>
    %c14_i32 = arith.constant 14 : i32
    %857 = tpu.dynamic_rotate %856 by %c14_i32 dim 1 : vector<8x128xf32>, i32 -> vector<8x128xf32>
    %858 = arith.addf %803, %857 : vector<8x128xf32>
    %859 = vector.extract_strided_slice %30 {offsets = [0, 15], sizes = [8, 1], strides = [1, 1]} : vector<8x16xf32> to vector<8x1xf32>
    %860 = vector.broadcast %859 : vector<8x1xf32> to vector<8x128xf32>
    %861 = arith.mulf %860, %29 : vector<8x128xf32>
    %862 = vector.extract_strided_slice %822 {offsets = [0, 0], sizes = [8, 32], strides = [1, 1]} : vector<8x128xf32> to vector<8x32xf32>
    %cst_229 = arith.constant dense<0.000000e+00> : vector<8x128xf32>
    %863 = tpu.matmul %862, %0, %cst_229 {dimension_numbers = #tpu.dot_dimension_numbers<[1], [0], [0], [1], [0, 0, 1, 1], [], []>} : vector<8x32xf32>, vector<32x128xf32>, vector<8x128xf32> -> vector<8x128xf32>
    %864 = arith.addf %861, %863 : vector<8x128xf32>
    %865 = arith.addf %864, %5 : vector<8x128xf32>
    %866 = math.tanh %865 : vector<8x128xf32>
    %c96_i32_230 = arith.constant 96 : i32
    %867 = tpu.dynamic_rotate %866 by %c96_i32_230 dim 1 : vector<8x128xf32>, i32 -> vector<8x128xf32>
    %c64_i32_231 = arith.constant 64 : i32
    %868 = tpu.dynamic_rotate %865 by %c64_i32_231 dim 1 : vector<8x128xf32>, i32 -> vector<8x128xf32>
    %869 = arith.negf %868 : vector<8x128xf32>
    %870 = math.exp %869 : vector<8x128xf32>
    %cst_232 = arith.constant 1.000000e+00 : f32
    %871 = vector.broadcast %cst_232 : f32 to vector<8x128xf32>
    %872 = arith.addf %871, %870 : vector<8x128xf32>
    %873 = arith.divf %871, %872 : vector<8x128xf32>
    %874 = arith.subf %867, %866 : vector<8x128xf32>
    %875 = arith.mulf %873, %874 : vector<8x128xf32>
    %876 = arith.addf %866, %875 : vector<8x128xf32>
    %877 = arith.mulf %876, %16 : vector<8x128xf32>
    %c9_i32_233 = arith.constant 9 : i32
    %878 = tpu.dynamic_rotate %839 by %c9_i32_233 dim 1 : vector<8x128xf32>, i32 -> vector<8x128xf32>
    %879 = arith.addf %877, %878 : vector<8x128xf32>
    %880 = vector.extract_strided_slice %879 {offsets = [0, 0], sizes = [8, 32], strides = [1, 1]} : vector<8x128xf32> to vector<8x32xf32>
    %cst_234 = arith.constant dense<0.000000e+00> : vector<8x128xf32>
    %881 = tpu.matmul %880, %1, %cst_234 {dimension_numbers = #tpu.dot_dimension_numbers<[1], [0], [0], [1], [0, 0, 1, 1], [], []>} : vector<8x32xf32>, vector<32x128xf32>, vector<8x128xf32> -> vector<8x128xf32>
    %882 = arith.addf %881, %8 : vector<8x128xf32>
    %883 = math.tanh %882 : vector<8x128xf32>
    %c96_i32_235 = arith.constant 96 : i32
    %884 = tpu.dynamic_rotate %883 by %c96_i32_235 dim 1 : vector<8x128xf32>, i32 -> vector<8x128xf32>
    %c64_i32_236 = arith.constant 64 : i32
    %885 = tpu.dynamic_rotate %882 by %c64_i32_236 dim 1 : vector<8x128xf32>, i32 -> vector<8x128xf32>
    %886 = arith.negf %885 : vector<8x128xf32>
    %887 = math.exp %886 : vector<8x128xf32>
    %cst_237 = arith.constant 1.000000e+00 : f32
    %888 = vector.broadcast %cst_237 : f32 to vector<8x128xf32>
    %889 = arith.addf %888, %887 : vector<8x128xf32>
    %890 = arith.divf %888, %889 : vector<8x128xf32>
    %891 = arith.subf %884, %883 : vector<8x128xf32>
    %892 = arith.mulf %890, %891 : vector<8x128xf32>
    %893 = arith.addf %883, %892 : vector<8x128xf32>
    %894 = arith.mulf %893, %21 : vector<8x128xf32>
    %c6_i32_238 = arith.constant 6 : i32
    %895 = tpu.dynamic_rotate %856 by %c6_i32_238 dim 1 : vector<8x128xf32>, i32 -> vector<8x128xf32>
    %896 = arith.addf %894, %895 : vector<8x128xf32>
    %897 = vector.extract_strided_slice %896 {offsets = [0, 0], sizes = [8, 32], strides = [1, 1]} : vector<8x128xf32> to vector<8x32xf32>
    %cst_239 = arith.constant dense<0.000000e+00> : vector<8x128xf32>
    %898 = tpu.matmul %897, %2, %cst_239 {dimension_numbers = #tpu.dot_dimension_numbers<[1], [0], [0], [1], [0, 0, 1, 1], [], []>} : vector<8x32xf32>, vector<32x128xf32>, vector<8x128xf32> -> vector<8x128xf32>
    %899 = arith.addf %898, %11 : vector<8x128xf32>
    %900 = math.tanh %899 : vector<8x128xf32>
    %c96_i32_240 = arith.constant 96 : i32
    %901 = tpu.dynamic_rotate %900 by %c96_i32_240 dim 1 : vector<8x128xf32>, i32 -> vector<8x128xf32>
    %c64_i32_241 = arith.constant 64 : i32
    %902 = tpu.dynamic_rotate %899 by %c64_i32_241 dim 1 : vector<8x128xf32>, i32 -> vector<8x128xf32>
    %903 = arith.negf %902 : vector<8x128xf32>
    %904 = math.exp %903 : vector<8x128xf32>
    %cst_242 = arith.constant 1.000000e+00 : f32
    %905 = vector.broadcast %cst_242 : f32 to vector<8x128xf32>
    %906 = arith.addf %905, %904 : vector<8x128xf32>
    %907 = arith.divf %905, %906 : vector<8x128xf32>
    %908 = arith.subf %901, %900 : vector<8x128xf32>
    %909 = arith.mulf %907, %908 : vector<8x128xf32>
    %910 = arith.addf %900, %909 : vector<8x128xf32>
    %911 = arith.mulf %910, %26 : vector<8x128xf32>
    %c15_i32 = arith.constant 15 : i32
    %912 = tpu.dynamic_rotate %911 by %c15_i32 dim 1 : vector<8x128xf32>, i32 -> vector<8x128xf32>
    %913 = arith.addf %858, %912 : vector<8x128xf32>
    %c0_243 = arith.constant 0 : index
    %c0_244 = arith.constant 0 : index
    %914 = vector.load %arg8[%c0_243, %c0_244] : memref<8x128xf32, #tpu.memory_space<vmem>>, vector<8x128xf32>
    tpu.vector_store %arg8[%c0_243, %c0_244], %913 {strides = array<i32>} : memref<8x128xf32, #tpu.memory_space<vmem>>, vector<8x128xf32>,
    return
  }
}

</mosaic_0001>

<llo_original>
// kernel: tpu_custom_call.1
$region0: #{tpu_custom_call.1}
  #allocation0 [shape = 'u32[]', space=smem, size = 0x4, offset = 0x4, fixed_abs, tag = 'smem constant byte address 0x4 - core index']
  #allocation1 [shape = 'u32[144,128]{1,0:T(1,128)}', space=vmem, size = 0x12000, scoped, tag = 'internal scratch']
  %s0 = inlined_call_operand.hbm [shape: f32[8,16], index: 0, kind: input, shape index: {}]
  %s1 = inlined_call_operand.vmem [shape: f32[1,128], index: 1, kind: input, shape index: {}]
  %s2 = inlined_call_operand.hbm [shape: f32[32,128], index: 2, kind: input, shape index: {}]
  %s3 = inlined_call_operand.vmem [shape: f32[1,128], index: 3, kind: input, shape index: {}]
  %s4 = inlined_call_operand.hbm [shape: f32[32,128], index: 4, kind: input, shape index: {}]
  %s5 = inlined_call_operand.vmem [shape: f32[1,128], index: 5, kind: input, shape index: {}]
  %s6 = inlined_call_operand.hbm [shape: f32[32,128], index: 6, kind: input, shape index: {}]
  %s7 = inlined_call_operand.vmem [shape: f32[1,128], index: 7, kind: input, shape index: {}]
  %s8 = inlined_call_operand.hbm [shape: f32[8,128], index: 8, kind: output, shape index: {}]
  %s9 = sld [smem:[#allocation0]]
  $region58: #{tpu_custom_call.1} parent=0
    _
  %s11 = ssub.s32 1, %s9
  %s12 = scalar_select 0, %s11, %s9
  $region1: #{tpu_custom_call.1} parent=0
    #allocation2 [shape = 'u8[4096]{0}', space=vmem, size = 0x1000, scoped, tag = 'input window, operand 0, single buffered']
    #allocation3 [shape = 's32[1]{0}', space=sflag, size = 0x4, scoped, tag = 'scoped memory for tpu_custom_call.1']
    #allocation4 [shape = 's32[1]{0}', space=sflag, size = 0x4, scoped, tag = 'scoped memory for tpu_custom_call.1']
    #allocation5 [shape = 'u8[16384]{0}', space=vmem, size = 0x4000, scoped, tag = 'input window, operand 2, single buffered']
    #allocation6 [shape = 's32[1]{0}', space=sflag, size = 0x4, scoped, tag = 'scoped memory for tpu_custom_call.1']
    #allocation7 [shape = 'u8[16384]{0}', space=vmem, size = 0x4000, scoped, tag = 'input window, operand 4, single buffered']
    #allocation8 [shape = 'u8[16384]{0}', space=vmem, size = 0x4000, scoped, tag = 'input window, operand 6, single buffered']
    #allocation9 [shape = 's32[1]{0}', space=sflag, size = 0x4, scoped, tag = 'scoped memory for tpu_custom_call.1']
    #allocation10 [shape = 'u8[4096]{0}', space=vmem, size = 0x1000, scoped, tag = 'output window, operand 0, single buffered']
    %13 = vsyncpa [#allocation3], 0
    %14 = vsyncpa [#allocation6], 0
    %15 = vsyncpa [#allocation9], 0
    %16 = vsyncpa [#allocation4], 0
    // Predicated region
    $region2: #{tpu_custom_call.1} parent=1 // pred_check
      _
    $region3: #{tpu_custom_call.1} parent=1 // pred_check_branch
      %18 = sbr.rel (0) target = $region5
    $region4: #{tpu_custom_call.1} parent=1 // pred_region
      %s20 = ssub.s32 128, 128
      %21 = vsyncadd [#allocation3], %s20
      %s23 = sshll.u32 [#allocation2], 4
      %s24 = int_to_ptr.vmem [resolvable:$true] %s23
      %26 = dma.hbm_to_vmem [thread:$0]  %s0, 128, %s24, [#allocation3]
    $region5: #{tpu_custom_call.1} parent=1 // pred_fallthru
      _
    // Predicated region
    $region6: #{tpu_custom_call.1} parent=1 // pred_check
      _
    $region7: #{tpu_custom_call.1} parent=1 // pred_check_branch
      %28 = sbr.rel (0) target = $region9
    $region8: #{tpu_custom_call.1} parent=1 // pred_region
      _
    $region9: #{tpu_custom_call.1} parent=1 // pred_fallthru
      _
    // Predicated region
    $region10: #{tpu_custom_call.1} parent=1 // pred_check
      _
    $region11: #{tpu_custom_call.1} parent=1 // pred_check_branch
      %30 = sbr.rel (0) target = $region13
    $region12: #{tpu_custom_call.1} parent=1 // pred_region
      %s32 = ssub.s32 512, 512
      %33 = vsyncadd [#allocation6], %s32
      %s34 = sshll.u32 [#allocation5], 4
      %s35 = int_to_ptr.vmem [resolvable:$true] %s34
      %40 = dma.hbm_to_vmem [thread:$0]  %s2, 512, %s35, [#allocation6], 128, 128, 8
    $region13: #{tpu_custom_call.1} parent=1 // pred_fallthru
      _
    // Predicated region
    $region14: #{tpu_custom_call.1} parent=1 // pred_check
      _
    $region15: #{tpu_custom_call.1} parent=1 // pred_check_branch
      %42 = sbr.rel (0) target = $region17
    $region16: #{tpu_custom_call.1} parent=1 // pred_region
      _
    $region17: #{tpu_custom_call.1} parent=1 // pred_fallthru
      _
    // Predicated region
    $region18: #{tpu_custom_call.1} parent=1 // pred_check
      _
    $region19: #{tpu_custom_call.1} parent=1 // pred_check_branch
      %44 = sbr.rel (0) target = $region21
    $region20: #{tpu_custom_call.1} parent=1 // pred_region
      %s46 = ssub.s32 512, 512
      %47 = vsyncadd [#allocation6], %s46
      %s48 = sshll.u32 [#allocation7], 4
      %s49 = int_to_ptr.vmem [resolvable:$true] %s48
      %54 = dma.hbm_to_vmem [thread:$0]  %s4, 512, %s49, [#allocation6], 128, 128, 8
    $region21: #{tpu_custom_call.1} parent=1 // pred_fallthru
      _
    // Predicated region
    $region22: #{tpu_custom_call.1} parent=1 // pred_check
      _
    $region23: #{tpu_custom_call.1} parent=1 // pred_check_branch
      %56 = sbr.rel (0) target = $region25
    $region24: #{tpu_custom_call.1} parent=1 // pred_region
      _
    $region25: #{tpu_custom_call.1} parent=1 // pred_fallthru
      _
    // Predicated region
    $region26: #{tpu_custom_call.1} parent=1 // pred_check
      _
    $region27: #{tpu_custom_call.1} parent=1 // pred_check_branch
      %58 = sbr.rel (0) target = $region29
    $region28: #{tpu_custom_call.1} parent=1 // pred_region
      %s60 = ssub.s32 512, 512
      %61 = vsyncadd [#allocation9], %s60
      %s62 = sshll.u32 [#allocation8], 4
      %s63 = int_to_ptr.vmem [resolvable:$true] %s62
      %68 = dma.hbm_to_vmem [thread:$0]  %s6, 512, %s63, [#allocation9], 128, 128, 8
    $region29: #{tpu_custom_call.1} parent=1 // pred_fallthru
      _
    // Predicated region
    $region30: #{tpu_custom_call.1} parent=1 // pred_check
      _
    $region31: #{tpu_custom_call.1} parent=1 // pred_check_branch
      %70 = sbr.rel (0) target = $region33
    $region32: #{tpu_custom_call.1} parent=1 // pred_region
      _
    $region33: #{tpu_custom_call.1} parent=1 // pred_fallthru
      _
    // Predicated region
    $region34: #{tpu_custom_call.1} parent=1 // pred_check
      _
    $region35: #{tpu_custom_call.1} parent=1 // pred_check_branch
      %72 = sbr.rel (0) target = $region37
    $region36: #{tpu_custom_call.1} parent=1 // pred_region
      %73 = dma.done [#allocation3], 128
    $region37: #{tpu_custom_call.1} parent=1 // pred_fallthru
      _
    // Predicated region
    $region38: #{tpu_custom_call.1} parent=1 // pred_check
      _
    $region39: #{tpu_custom_call.1} parent=1 // pred_check_branch
      %75 = sbr.rel (0) target = $region41
    $region40: #{tpu_custom_call.1} parent=1 // pred_region
      %76 = dma.done [#allocation6], 512
    $region41: #{tpu_custom_call.1} parent=1 // pred_fallthru
      _
    // Predicated region
    $region42: #{tpu_custom_call.1} parent=1 // pred_check
      _
    $region43: #{tpu_custom_call.1} parent=1 // pred_check_branch
      %78 = sbr.rel (0) target = $region45
    $region44: #{tpu_custom_call.1} parent=1 // pred_region
      %79 = dma.done [#allocation6], 512
    $region45: #{tpu_custom_call.1} parent=1 // pred_fallthru
      _
    // Predicated region
    $region46: #{tpu_custom_call.1} parent=1 // pred_check
      _
    $region47: #{tpu_custom_call.1} parent=1 // pred_check_branch
      %81 = sbr.rel (0) target = $region49
    $region48: #{tpu_custom_call.1} parent=1 // pred_region
      %82 = dma.done [#allocation9], 512
    $region49: #{tpu_custom_call.1} parent=1 // pred_fallthru
      _
    %v83 = vld [vmem:[#allocation5] sm:$0xff]
    %v84 = vld [vmem:[#allocation5 + $0x8] sm:$0xff]
    %v85 = vld [vmem:[#allocation5 + $0x10] sm:$0xff]
    %v86 = vld [vmem:[#allocation5 + $0x18] sm:$0xff]
    %v87 = vld [vmem:[#allocation7] sm:$0xff]
    %v88 = vld [vmem:[#allocation7 + $0x8] sm:$0xff]
    %v89 = vld [vmem:[#allocation7 + $0x10] sm:$0xff]
    %v90 = vld [vmem:[#allocation7 + $0x18] sm:$0xff]
    %v91 = vld [vmem:[#allocation8] sm:$0xff]
    %v92 = vld [vmem:[#allocation8 + $0x8] sm:$0xff]
    %v93 = vld [vmem:[#allocation8 + $0x10] sm:$0xff]
    %v94 = vld [vmem:[#allocation8 + $0x18] sm:$0xff]
    %v95 = vld [vmem:[%s3] sm:$0x1]
    %v97 = vlaneseq
    %v98 = vshrl.u32 %v97, 7
    %v99 = vsub.s32 0, %v98
    %v100 = vrot.slane %v95, %v99
    %v102 = vld [vmem:[%s5] sm:$0x1]
    %v104 = vlaneseq
    %v105 = vshrl.u32 %v104, 7
    %v106 = vsub.s32 0, %v105
    %v107 = vrot.slane %v102, %v106
    %v109 = vld [vmem:[%s7] sm:$0x1]
    %v111 = vlaneseq
    %v112 = vshrl.u32 %v111, 7
    %v113 = vsub.s32 0, %v112
    %v114 = vrot.slane %v109, %v113
    %v116 = vlaneseq
    %v117 = vand.u32 %v116, 127
    %vm118 = vcmp.lt.s32.totalorder %v117, 9
    %v119 = vsel %vm118, 1, 0
    %v120 = vcvt.s32.f32 %v119
    %vm121 = vcmp.lt.s32.totalorder %v117, 6
    %v122 = vsel %vm121, 1, 0
    %v123 = vcvt.s32.f32 %v122
    %vm124 = vcmp.lt.s32.totalorder %v117, 1
    %v125 = vsel %vm124, 1, 0
    %v126 = vcvt.s32.f32 %v125
    %v127 = vld [vmem:[%s1] sm:$0x1]
    %v129 = vlaneseq
    %v130 = vshrl.u32 %v129, 7
    %v131 = vsub.s32 0, %v130
    %v132 = vrot.slane %v127, %v131
    %v134 = vld [vmem:[#allocation2] sm:$0xff]
    %136 = vset.pattern.permute.xlu0 0
    %137 = vperm.xlu0 %136, %v134
    %v138 = vpop.permute.xlu0 %137
    %v140 = vmul.f32 %v138, %v132
    %vm141 = vcmask 261120
    %v143 = vsel %vm141, 0.0, 0
    %145 = vmatprep.subr.mxu0 0.0
    %146 = vmatpush1.msra.mxu0 %v83
    %147 = vmatprep.subr.mxu0 0.0
    %148 = vmatpush1.msra.mxu0 %v84
    %149 = vmatprep.subr.mxu0 0.0
    %150 = vmatpush1.msra.mxu0 %v85
    %151 = vmatprep.subr.mxu0 0.0
    %152 = vmatpush1.msra.mxu0 %v86
    %153 = vmatprep.subr.mxu0 0.0
    %154 = vmatpush1.msra.mxu0 0.0
    %155 = vmatprep.subr.mxu0 0.0
    %156 = vmatpush1.msra.mxu0 0.0
    %157 = vmatprep.subr.mxu0 0.0
    %158 = vmatpush1.msra.mxu0 0.0
    %159 = vmatprep.subr.mxu0 0.0
    %160 = vmatpush1.msra.mxu0 0.0
    %161 = vmatprep.subr.mxu0 0.0
    %162 = vmatpush1.msra.mxu0 0.0
    %163 = vmatprep.subr.mxu0 0.0
    %164 = vmatpush1.msra.mxu0 0.0
    %165 = vmatprep.subr.mxu0 0.0
    %166 = vmatpush1.msra.mxu0 0.0
    %167 = vmatprep.subr.mxu0 0.0
    %168 = vmatpush1.msra.mxu0 0.0
    %169 = vmatprep.subr.mxu0 0.0
    %170 = vmatpush1.msra.mxu0 0.0
    %171 = vmatprep.subr.mxu0 0.0
    %172 = vmatpush1.msra.mxu0 0.0
    %173 = vmatprep.subr.mxu0 0.0
    %174 = vmatpush1.msra.mxu0 0.0
    %175 = vmatprep.subr.mxu0 0.0
    %176 = vmatpush1.msra.mxu0 0.0
    %177 = vmatprep.subr.mxu0 0.0
    %178 = vmatpush1.msra.mxu0 0.0
    %179 = vmatprep.subr.mxu0 0.0
    %180 = vmatpush1.msra.mxu0 0.0
    %181 = vmatprep.subr.mxu0 0.0
    %182 = vmatpush1.msra.mxu0 0.0
    %183 = vmatprep.subr.mxu0 0.0
    %184 = vmatpush1.msra.mxu0 0.0
    %185 = vmatprep.subr.mxu0 0.0
    %186 = vmatpush1.msra.mxu0 0.0
    %187 = vmatprep.subr.mxu0 0.0
    %188 = vmatpush1.msra.mxu0 0.0
    %189 = vmatprep.subr.mxu0 0.0
    %190 = vmatpush1.msra.mxu0 0.0
    %191 = vmatprep.subr.mxu0 0.0
    %192 = vmatpush1.msra.mxu0 0.0
    %193 = vmatprep.subr.mxu0 0.0
    %194 = vmatpush1.msra.mxu0 0.0
    %195 = vmatprep.subr.mxu0 0.0
    %196 = vmatpush1.msra.mxu0 0.0
    %197 = vmatprep.subr.mxu0 0.0
    %198 = vmatpush1.msra.mxu0 0.0
    %199 = vmatprep.subr.mxu0 0.0
    %200 = vmatpush1.msra.mxu0 0.0
    %201 = vmatprep.subr.mxu0 0.0
    %202 = vmatpush1.msra.mxu0 0.0
    %203 = vmatprep.subr.mxu0 0.0
    %204 = vmatpush1.msra.mxu0 0.0
    %205 = vmatprep.subr.mxu0 0.0
    %206 = vmatpush1.msra.mxu0 0.0
    %207 = vmatprep.subr.mxu0 0.0
    %208 = vmatpush1.msra.mxu0 0.0
    %209 = vmatprep.mubr.f32.mxu0 0.0
    %210 = vmatmul.mubr.f32.gmra.mrb[0].mxu0 %v143
    %v211 = vpop.f32.mrb[0].mxu0
    %v212 = vadd.f32 0.0, %v211
    %v213 = vpop.f32.mrb[0].mxu0
    %214 = vdwg.mxu0
    %v215 = vadd.f32 %v140, %v212
    %v216 = vadd.f32 %v215, %v100
    %v217 = vtanh.pop %v216
    %218 = vrot.lane.b32.xlu0 %v217, 96
    %v219 = vpop.permute.xlu0 %218
    %220 = vrot.lane.b32.xlu0 %v216, 64
    %v221 = vpop.permute.xlu0 %220
    %v222 = vxor.u32 %v221, 2147483648
    %v223 = vmul.f32 %v222, 1.442695
    %v224 = vpow.pop %v223
    %v225 = vadd.f32 %v224, 1.0
    %v226 = vrcp.pop %v225
    %v227 = vmul.f32 1.0, %v226
    %v228 = vsub.f32 %v219, %v217
    %v229 = vmul.f32 %v227, %v228
    %v230 = vadd.f32 %v217, %v229
    %v231 = vmul.f32 %v230, %v120
    %232 = vrot.lane.b32.xlu0 0.0, 9
    %v233 = vpop.permute.xlu0 %232
    %v234 = vadd.f32 %v231, %v233
    %v236 = vsel %vm141, %v234, 0
    %238 = vmatprep.subr.mxu0 0.0
    %239 = vmatpush1.msra.mxu0 %v87
    %240 = vmatprep.subr.mxu0 0.0
    %241 = vmatpush1.msra.mxu0 %v88
    %242 = vmatprep.subr.mxu0 0.0
    %243 = vmatpush1.msra.mxu0 %v89
    %244 = vmatprep.subr.mxu0 0.0
    %245 = vmatpush1.msra.mxu0 %v90
    %246 = vmatprep.subr.mxu0 0.0
    %247 = vmatpush1.msra.mxu0 0.0
    %248 = vmatprep.subr.mxu0 0.0
    %249 = vmatpush1.msra.mxu0 0.0
    %250 = vmatprep.subr.mxu0 0.0
    %251 = vmatpush1.msra.mxu0 0.0
    %252 = vmatprep.subr.mxu0 0.0
    %253 = vmatpush1.msra.mxu0 0.0
    %254 = vmatprep.subr.mxu0 0.0
    %255 = vmatpush1.msra.mxu0 0.0
    %256 = vmatprep.subr.mxu0 0.0
    %257 = vmatpush1.msra.mxu0 0.0
    %258 = vmatprep.subr.mxu0 0.0
    %259 = vmatpush1.msra.mxu0 0.0
    %260 = vmatprep.subr.mxu0 0.0
    %261 = vmatpush1.msra.mxu0 0.0
    %262 = vmatprep.subr.mxu0 0.0
    %263 = vmatpush1.msra.mxu0 0.0
    %264 = vmatprep.subr.mxu0 0.0
    %265 = vmatpush1.msra.mxu0 0.0
    %266 = vmatprep.subr.mxu0 0.0
    %267 = vmatpush1.msra.mxu0 0.0
    %268 = vmatprep.subr.mxu0 0.0
    %269 = vmatpush1.msra.mxu0 0.0
    %270 = vmatprep.subr.mxu0 0.0
    %271 = vmatpush1.msra.mxu0 0.0
    %272 = vmatprep.subr.mxu0 0.0
    %273 = vmatpush1.msra.mxu0 0.0
    %274 = vmatprep.subr.mxu0 0.0
    %275 = vmatpush1.msra.mxu0 0.0
    %276 = vmatprep.subr.mxu0 0.0
    %277 = vmatpush1.msra.mxu0 0.0
    %278 = vmatprep.subr.mxu0 0.0
    %279 = vmatpush1.msra.mxu0 0.0
    %280 = vmatprep.subr.mxu0 0.0
    %281 = vmatpush1.msra.mxu0 0.0
    %282 = vmatprep.subr.mxu0 0.0
    %283 = vmatpush1.msra.mxu0 0.0
    %284 = vmatprep.subr.mxu0 0.0
    %285 = vmatpush1.msra.mxu0 0.0
    %286 = vmatprep.subr.mxu0 0.0
    %287 = vmatpush1.msra.mxu0 0.0
    %288 = vmatprep.subr.mxu0 0.0
    %289 = vmatpush1.msra.mxu0 0.0
    %290 = vmatprep.subr.mxu0 0.0
    %291 = vmatpush1.msra.mxu0 0.0
    %292 = vmatprep.subr.mxu0 0.0
    %293 = vmatpush1.msra.mxu0 0.0
    %294 = vmatprep.subr.mxu0 0.0
    %295 = vmatpush1.msra.mxu0 0.0
    %296 = vmatprep.subr.mxu0 0.0
    %297 = vmatpush1.msra.mxu0 0.0
    %298 = vmatprep.subr.mxu0 0.0
    %299 = vmatpush1.msra.mxu0 0.0
    %300 = vmatprep.subr.mxu0 0.0
    %301 = vmatpush1.msra.mxu0 0.0
    %302 = vmatprep.mubr.f32.mxu0 0.0
    %303 = vmatmul.mubr.f32.gmra.mrb[0].mxu0 %v236
    %v304 = vpop.f32.mrb[0].mxu0
    %v305 = vadd.f32 %v107, %v304
    %v306 = vpop.f32.mrb[0].mxu0
    %307 = vdwg.mxu0
    %v308 = vtanh.pop %v305
    %309 = vrot.lane.b32.xlu0 %v308, 96
    %v310 = vpop.permute.xlu0 %309
    %311 = vrot.lane.b32.xlu0 %v305, 64
    %v312 = vpop.permute.xlu0 %311
    %v313 = vxor.u32 %v312, 2147483648
    %v314 = vmul.f32 %v313, 1.442695
    %v315 = vpow.pop %v314
    %v316 = vadd.f32 %v315, 1.0
    %v317 = vrcp.pop %v316
    %v318 = vmul.f32 1.0, %v317
    %v319 = vsub.f32 %v310, %v308
    %v320 = vmul.f32 %v318, %v319
    %v321 = vadd.f32 %v308, %v320
    %v322 = vmul.f32 %v321, %v123
    %323 = vrot.lane.b32.xlu0 0.0, 6
    %v324 = vpop.permute.xlu0 %323
    %v325 = vadd.f32 %v322, %v324
    %v327 = vsel %vm141, %v325, 0
    %329 = vmatprep.subr.mxu0 0.0
    %330 = vmatpush1.msra.mxu0 %v91
    %331 = vmatprep.subr.mxu0 0.0
    %332 = vmatpush1.msra.mxu0 %v92
    %333 = vmatprep.subr.mxu0 0.0
    %334 = vmatpush1.msra.mxu0 %v93
    %335 = vmatprep.subr.mxu0 0.0
    %336 = vmatpush1.msra.mxu0 %v94
    %337 = vmatprep.subr.mxu0 0.0
    %338 = vmatpush1.msra.mxu0 0.0
    %339 = vmatprep.subr.mxu0 0.0
    %340 = vmatpush1.msra.mxu0 0.0
    %341 = vmatprep.subr.mxu0 0.0
    %342 = vmatpush1.msra.mxu0 0.0
    %343 = vmatprep.subr.mxu0 0.0
    %344 = vmatpush1.msra.mxu0 0.0
    %345 = vmatprep.subr.mxu0 0.0
    %346 = vmatpush1.msra.mxu0 0.0
    %347 = vmatprep.subr.mxu0 0.0
    %348 = vmatpush1.msra.mxu0 0.0
    %349 = vmatprep.subr.mxu0 0.0
    %350 = vmatpush1.msra.mxu0 0.0
    %351 = vmatprep.subr.mxu0 0.0
    %352 = vmatpush1.msra.mxu0 0.0
    %353 = vmatprep.subr.mxu0 0.0
    %354 = vmatpush1.msra.mxu0 0.0
    %355 = vmatprep.subr.mxu0 0.0
    %356 = vmatpush1.msra.mxu0 0.0
    %357 = vmatprep.subr.mxu0 0.0
    %358 = vmatpush1.msra.mxu0 0.0
    %359 = vmatprep.subr.mxu0 0.0
    %360 = vmatpush1.msra.mxu0 0.0
    %361 = vmatprep.subr.mxu0 0.0
    %362 = vmatpush1.msra.mxu0 0.0
    %363 = vmatprep.subr.mxu0 0.0
    %364 = vmatpush1.msra.mxu0 0.0
    %365 = vmatprep.subr.mxu0 0.0
    %366 = vmatpush1.msra.mxu0 0.0
    %367 = vmatprep.subr.mxu0 0.0
    %368 = vmatpush1.msra.mxu0 0.0
    %369 = vmatprep.subr.mxu0 0.0
    %370 = vmatpush1.msra.mxu0 0.0
    %371 = vmatprep.subr.mxu0 0.0
    %372 = vmatpush1.msra.mxu0 0.0
    %373 = vmatprep.subr.mxu0 0.0
    %374 = vmatpush1.msra.mxu0 0.0
    %375 = vmatprep.subr.mxu0 0.0
    %376 = vmatpush1.msra.mxu0 0.0
    %377 = vmatprep.subr.mxu0 0.0
    %378 = vmatpush1.msra.mxu0 0.0
    %379 = vmatprep.subr.mxu0 0.0
    %380 = vmatpush1.msra.mxu0 0.0
    %381 = vmatprep.subr.mxu0 0.0
    %382 = vmatpush1.msra.mxu0 0.0
    %383 = vmatprep.subr.mxu0 0.0
    %384 = vmatpush1.msra.mxu0 0.0
    %385 = vmatprep.subr.mxu0 0.0
    %386 = vmatpush1.msra.mxu0 0.0
    %387 = vmatprep.subr.mxu0 0.0
    %388 = vmatpush1.msra.mxu0 0.0
    %389 = vmatprep.subr.mxu0 0.0
    %390 = vmatpush1.msra.mxu0 0.0
    %391 = vmatprep.subr.mxu0 0.0
    %392 = vmatpush1.msra.mxu0 0.0
    %393 = vmatprep.mubr.f32.mxu0 0.0
    %394 = vmatmul.mubr.f32.gmra.mrb[0].mxu0 %v327
    %v395 = vpop.f32.mrb[0].mxu0
    %v396 = vadd.f32 %v114, %v395
    %v397 = vpop.f32.mrb[0].mxu0
    %398 = vdwg.mxu0
    %v399 = vtanh.pop %v396
    %400 = vrot.lane.b32.xlu0 %v399, 96
    %v401 = vpop.permute.xlu0 %400
    %402 = vrot.lane.b32.xlu0 %v396, 64
    %v403 = vpop.permute.xlu0 %402
    %v404 = vxor.u32 %v403, 2147483648
    %v405 = vmul.f32 %v404, 1.442695
    %v406 = vpow.pop %v405
    %v407 = vadd.f32 %v406, 1.0
    %v408 = vrcp.pop %v407
    %v409 = vmul.f32 1.0, %v408
    %v410 = vsub.f32 %v401, %v399
    %v411 = vmul.f32 %v409, %v410
    %v412 = vadd.f32 %v399, %v411
    %v413 = vmul.f32 %v412, %v126
    %v414 = vadd.f32 %v413, 0.0
    %415 = vset.pattern.permute.xlu0 1
    %416 = vperm.xlu0 %415, %v134
    %v417 = vpop.permute.xlu0 %416
    %v419 = vmul.f32 %v417, %v132
    %v421 = vsel %vm141, %v231, 0
    %423 = vmatprep.subr.mxu0 0.0
    %424 = vmatpush1.msra.mxu0 %v83
    %425 = vmatprep.subr.mxu0 0.0
    %426 = vmatpush1.msra.mxu0 %v84
    %427 = vmatprep.subr.mxu0 0.0
    %428 = vmatpush1.msra.mxu0 %v85
    %429 = vmatprep.subr.mxu0 0.0
    %430 = vmatpush1.msra.mxu0 %v86
    %431 = vmatprep.subr.mxu0 0.0
    %432 = vmatpush1.msra.mxu0 0.0
    %433 = vmatprep.subr.mxu0 0.0
    %434 = vmatpush1.msra.mxu0 0.0
    %435 = vmatprep.subr.mxu0 0.0
    %436 = vmatpush1.msra.mxu0 0.0
    %437 = vmatprep.subr.mxu0 0.0
    %438 = vmatpush1.msra.mxu0 0.0
    %439 = vmatprep.subr.mxu0 0.0
    %440 = vmatpush1.msra.mxu0 0.0
    %441 = vmatprep.subr.mxu0 0.0
    %442 = vmatpush1.msra.mxu0 0.0
    %443 = vmatprep.subr.mxu0 0.0
    %444 = vmatpush1.msra.mxu0 0.0
    %445 = vmatprep.subr.mxu0 0.0
    %446 = vmatpush1.msra.mxu0 0.0
    %447 = vmatprep.subr.mxu0 0.0
    %448 = vmatpush1.msra.mxu0 0.0
    %449 = vmatprep.subr.mxu0 0.0
    %450 = vmatpush1.msra.mxu0 0.0
    %451 = vmatprep.subr.mxu0 0.0
    %452 = vmatpush1.msra.mxu0 0.0
    %453 = vmatprep.subr.mxu0 0.0
    %454 = vmatpush1.msra.mxu0 0.0
    %455 = vmatprep.subr.mxu0 0.0
    %456 = vmatpush1.msra.mxu0 0.0
    %457 = vmatprep.subr.mxu0 0.0
    %458 = vmatpush1.msra.mxu0 0.0
    %459 = vmatprep.subr.mxu0 0.0
    %460 = vmatpush1.msra.mxu0 0.0
    %461 = vmatprep.subr.mxu0 0.0
    %462 = vmatpush1.msra.mxu0 0.0
    %463 = vmatprep.subr.mxu0 0.0
    %464 = vmatpush1.msra.mxu0 0.0
    %465 = vmatprep.subr.mxu0 0.0
    %466 = vmatpush1.msra.mxu0 0.0
    %467 = vmatprep.subr.mxu0 0.0
    %468 = vmatpush1.msra.mxu0 0.0
    %469 = vmatprep.subr.mxu0 0.0
    %470 = vmatpush1.msra.mxu0 0.0
    %471 = vmatprep.subr.mxu0 0.0
    %472 = vmatpush1.msra.mxu0 0.0
    %473 = vmatprep.subr.mxu0 0.0
    %474 = vmatpush1.msra.mxu0 0.0
    %475 = vmatprep.subr.mxu0 0.0
    %476 = vmatpush1.msra.mxu0 0.0
    %477 = vmatprep.subr.mxu0 0.0
    %478 = vmatpush1.msra.mxu0 0.0
    %479 = vmatprep.subr.mxu0 0.0
    %480 = vmatpush1.msra.mxu0 0.0
    %481 = vmatprep.subr.mxu0 0.0
    %482 = vmatpush1.msra.mxu0 0.0
    %483 = vmatprep.subr.mxu0 0.0
    %484 = vmatpush1.msra.mxu0 0.0
    %485 = vmatprep.subr.mxu0 0.0
    %486 = vmatpush1.msra.mxu0 0.0
    %487 = vmatprep.mubr.f32.mxu0 0.0
    %488 = vmatmul.mubr.f32.gmra.mrb[0].mxu0 %v421
    %v489 = vpop.f32.mrb[0].mxu0
    %v490 = vadd.f32 0.0, %v489
    %v491 = vpop.f32.mrb[0].mxu0
    %492 = vdwg.mxu0
    %v493 = vadd.f32 %v419, %v490
    %v494 = vadd.f32 %v493, %v100
    %v495 = vtanh.pop %v494
    %496 = vrot.lane.b32.xlu0 %v495, 96
    %v497 = vpop.permute.xlu0 %496
    %498 = vrot.lane.b32.xlu0 %v494, 64
    %v499 = vpop.permute.xlu0 %498
    %v500 = vxor.u32 %v499, 2147483648
    %v501 = vmul.f32 %v500, 1.442695
    %v502 = vpow.pop %v501
    %v503 = vadd.f32 %v502, 1.0
    %v504 = vrcp.pop %v503
    %v505 = vmul.f32 1.0, %v504
    %v506 = vsub.f32 %v497, %v495
    %v507 = vmul.f32 %v505, %v506
    %v508 = vadd.f32 %v495, %v507
    %v509 = vmul.f32 %v508, %v120
    %510 = vrot.lane.b32.xlu0 %v322, 9
    %v511 = vpop.permute.xlu0 %510
    %v512 = vadd.f32 %v509, %v511
    %v514 = vsel %vm141, %v512, 0
    %516 = vmatprep.subr.mxu0 0.0
    %517 = vmatpush1.msra.mxu0 %v87
    %518 = vmatprep.subr.mxu0 0.0
    %519 = vmatpush1.msra.mxu0 %v88
    %520 = vmatprep.subr.mxu0 0.0
    %521 = vmatpush1.msra.mxu0 %v89
    %522 = vmatprep.subr.mxu0 0.0
    %523 = vmatpush1.msra.mxu0 %v90
    %524 = vmatprep.subr.mxu0 0.0
    %525 = vmatpush1.msra.mxu0 0.0
    %526 = vmatprep.subr.mxu0 0.0
    %527 = vmatpush1.msra.mxu0 0.0
    %528 = vmatprep.subr.mxu0 0.0
    %529 = vmatpush1.msra.mxu0 0.0
    %530 = vmatprep.subr.mxu0 0.0
    %531 = vmatpush1.msra.mxu0 0.0
    %532 = vmatprep.subr.mxu0 0.0
    %533 = vmatpush1.msra.mxu0 0.0
    %534 = vmatprep.subr.mxu0 0.0
    %535 = vmatpush1.msra.mxu0 0.0
    %536 = vmatprep.subr.mxu0 0.0
    %537 = vmatpush1.msra.mxu0 0.0
    %538 = vmatprep.subr.mxu0 0.0
    %539 = vmatpush1.msra.mxu0 0.0
    %540 = vmatprep.subr.mxu0 0.0
    %541 = vmatpush1.msra.mxu0 0.0
    %542 = vmatprep.subr.mxu0 0.0
    %543 = vmatpush1.msra.mxu0 0.0
    %544 = vmatprep.subr.mxu0 0.0
    %545 = vmatpush1.msra.mxu0 0.0
    %546 = vmatprep.subr.mxu0 0.0
    %547 = vmatpush1.msra.mxu0 0.0
    %548 = vmatprep.subr.mxu0 0.0
    %549 = vmatpush1.msra.mxu0 0.0
    %550 = vmatprep.subr.mxu0 0.0
    %551 = vmatpush1.msra.mxu0 0.0
    %552 = vmatprep.subr.mxu0 0.0
    %553 = vmatpush1.msra.mxu0 0.0
    %554 = vmatprep.subr.mxu0 0.0
    %555 = vmatpush1.msra.mxu0 0.0
    %556 = vmatprep.subr.mxu0 0.0
    %557 = vmatpush1.msra.mxu0 0.0
    %558 = vmatprep.subr.mxu0 0.0
    %559 = vmatpush1.msra.mxu0 0.0
    %560 = vmatprep.subr.mxu0 0.0
    %561 = vmatpush1.msra.mxu0 0.0
    %562 = vmatprep.subr.mxu0 0.0
    %563 = vmatpush1.msra.mxu0 0.0
    %564 = vmatprep.subr.mxu0 0.0
    %565 = vmatpush1.msra.mxu0 0.0
    %566 = vmatprep.subr.mxu0 0.0
    %567 = vmatpush1.msra.mxu0 0.0
    %568 = vmatprep.subr.mxu0 0.0
    %569 = vmatpush1.msra.mxu0 0.0
    %570 = vmatprep.subr.mxu0 0.0
    %571 = vmatpush1.msra.mxu0 0.0
    %572 = vmatprep.subr.mxu0 0.0
    %573 = vmatpush1.msra.mxu0 0.0
    %574 = vmatprep.subr.mxu0 0.0
    %575 = vmatpush1.msra.mxu0 0.0
    %576 = vmatprep.subr.mxu0 0.0
    %577 = vmatpush1.msra.mxu0 0.0
    %578 = vmatprep.subr.mxu0 0.0
    %579 = vmatpush1.msra.mxu0 0.0
    %580 = vmatprep.mubr.f32.mxu0 0.0
    %581 = vmatmul.mubr.f32.gmra.mrb[0].mxu0 %v514
    %v582 = vpop.f32.mrb[0].mxu0
    %v583 = vadd.f32 %v107, %v582
    %v584 = vpop.f32.mrb[0].mxu0
    %585 = vdwg.mxu0
    %v586 = vtanh.pop %v583
    %587 = vrot.lane.b32.xlu0 %v586, 96
    %v588 = vpop.permute.xlu0 %587
    %589 = vrot.lane.b32.xlu0 %v583, 64
    %v590 = vpop.permute.xlu0 %589
    %v591 = vxor.u32 %v590, 2147483648
    %v592 = vmul.f32 %v591, 1.442695
    %v593 = vpow.pop %v592
    %v594 = vadd.f32 %v593, 1.0
    %v595 = vrcp.pop %v594
    %v596 = vmul.f32 1.0, %v595
    %v597 = vsub.f32 %v588, %v586
    %v598 = vmul.f32 %v596, %v597
    %v599 = vadd.f32 %v586, %v598
    %v600 = vmul.f32 %v599, %v123
    %601 = vrot.lane.b32.xlu0 %v413, 6
    %v602 = vpop.permute.xlu0 %601
    %v603 = vadd.f32 %v600, %v602
    %v605 = vsel %vm141, %v603, 0
    %607 = vmatprep.subr.mxu0 0.0
    %608 = vmatpush1.msra.mxu0 %v91
    %609 = vmatprep.subr.mxu0 0.0
    %610 = vmatpush1.msra.mxu0 %v92
    %611 = vmatprep.subr.mxu0 0.0
    %612 = vmatpush1.msra.mxu0 %v93
    %613 = vmatprep.subr.mxu0 0.0
    %614 = vmatpush1.msra.mxu0 %v94
    %615 = vmatprep.subr.mxu0 0.0
    %616 = vmatpush1.msra.mxu0 0.0
    %617 = vmatprep.subr.mxu0 0.0
    %618 = vmatpush1.msra.mxu0 0.0
    %619 = vmatprep.subr.mxu0 0.0
    %620 = vmatpush1.msra.mxu0 0.0
    %621 = vmatprep.subr.mxu0 0.0
    %622 = vmatpush1.msra.mxu0 0.0
    %623 = vmatprep.subr.mxu0 0.0
    %624 = vmatpush1.msra.mxu0 0.0
    %625 = vmatprep.subr.mxu0 0.0
    %626 = vmatpush1.msra.mxu0 0.0
    %627 = vmatprep.subr.mxu0 0.0
    %628 = vmatpush1.msra.mxu0 0.0
    %629 = vmatprep.subr.mxu0 0.0
    %630 = vmatpush1.msra.mxu0 0.0
    %631 = vmatprep.subr.mxu0 0.0
    %632 = vmatpush1.msra.mxu0 0.0
    %633 = vmatprep.subr.mxu0 0.0
    %634 = vmatpush1.msra.mxu0 0.0
    %635 = vmatprep.subr.mxu0 0.0
    %636 = vmatpush1.msra.mxu0 0.0
    %637 = vmatprep.subr.mxu0 0.0
    %638 = vmatpush1.msra.mxu0 0.0
    %639 = vmatprep.subr.mxu0 0.0
    %640 = vmatpush1.msra.mxu0 0.0
    %641 = vmatprep.subr.mxu0 0.0
    %642 = vmatpush1.msra.mxu0 0.0
    %643 = vmatprep.subr.mxu0 0.0
    %644 = vmatpush1.msra.mxu0 0.0
    %645 = vmatprep.subr.mxu0 0.0
    %646 = vmatpush1.msra.mxu0 0.0
    %647 = vmatprep.subr.mxu0 0.0
    %648 = vmatpush1.msra.mxu0 0.0
    %649 = vmatprep.subr.mxu0 0.0
    %650 = vmatpush1.msra.mxu0 0.0
    %651 = vmatprep.subr.mxu0 0.0
    %652 = vmatpush1.msra.mxu0 0.0
    %653 = vmatprep.subr.mxu0 0.0
    %654 = vmatpush1.msra.mxu0 0.0
    %655 = vmatprep.subr.mxu0 0.0
    %656 = vmatpush1.msra.mxu0 0.0
    %657 = vmatprep.subr.mxu0 0.0
    %658 = vmatpush1.msra.mxu0 0.0
    %659 = vmatprep.subr.mxu0 0.0
    %660 = vmatpush1.msra.mxu0 0.0
    %661 = vmatprep.subr.mxu0 0.0
    %662 = vmatpush1.msra.mxu0 0.0
    %663 = vmatprep.subr.mxu0 0.0
    %664 = vmatpush1.msra.mxu0 0.0
    %665 = vmatprep.subr.mxu0 0.0
    %666 = vmatpush1.msra.mxu0 0.0
    %667 = vmatprep.subr.mxu0 0.0
    %668 = vmatpush1.msra.mxu0 0.0
    %669 = vmatprep.subr.mxu0 0.0
    %670 = vmatpush1.msra.mxu0 0.0
    %671 = vmatprep.mubr.f32.mxu0 0.0
    %672 = vmatmul.mubr.f32.gmra.mrb[0].mxu0 %v605
    %v673 = vpop.f32.mrb[0].mxu0
    %v674 = vadd.f32 %v114, %v673
    %v675 = vpop.f32.mrb[0].mxu0
    %676 = vdwg.mxu0
    %v677 = vtanh.pop %v674
    %678 = vrot.lane.b32.xlu0 %v677, 96
    %v679 = vpop.permute.xlu0 %678
    %680 = vrot.lane.b32.xlu0 %v674, 64
    %v681 = vpop.permute.xlu0 %680
    %v682 = vxor.u32 %v681, 2147483648
    %v683 = vmul.f32 %v682, 1.442695
    %v684 = vpow.pop %v683
    %v685 = vadd.f32 %v684, 1.0
    %v686 = vrcp.pop %v685
    %v687 = vmul.f32 1.0, %v686
    %v688 = vsub.f32 %v679, %v677
    %v689 = vmul.f32 %v687, %v688
    %v690 = vadd.f32 %v677, %v689
    %v691 = vmul.f32 %v690, %v126
    %692 = vrot.lane.b32.xlu0 %v691, 1
    %v693 = vpop.permute.xlu0 %692
    %v694 = vadd.f32 %v414, %v693
    %695 = vset.pattern.permute.xlu0 2
    %696 = vperm.xlu0 %695, %v134
    %v697 = vpop.permute.xlu0 %696
    %v699 = vmul.f32 %v697, %v132
    %v701 = vsel %vm141, %v509, 0
    %703 = vmatprep.subr.mxu0 0.0
    %704 = vmatpush1.msra.mxu0 %v83
    %705 = vmatprep.subr.mxu0 0.0
    %706 = vmatpush1.msra.mxu0 %v84
    %707 = vmatprep.subr.mxu0 0.0
    %708 = vmatpush1.msra.mxu0 %v85
    %709 = vmatprep.subr.mxu0 0.0
    %710 = vmatpush1.msra.mxu0 %v86
    %711 = vmatprep.subr.mxu0 0.0
    %712 = vmatpush1.msra.mxu0 0.0
    %713 = vmatprep.subr.mxu0 0.0
    %714 = vmatpush1.msra.mxu0 0.0
    %715 = vmatprep.subr.mxu0 0.0
    %716 = vmatpush1.msra.mxu0 0.0
    %717 = vmatprep.subr.mxu0 0.0
    %718 = vmatpush1.msra.mxu0 0.0
    %719 = vmatprep.subr.mxu0 0.0
    %720 = vmatpush1.msra.mxu0 0.0
    %721 = vmatprep.subr.mxu0 0.0
    %722 = vmatpush1.msra.mxu0 0.0
    %723 = vmatprep.subr.mxu0 0.0
    %724 = vmatpush1.msra.mxu0 0.0
    %725 = vmatprep.subr.mxu0 0.0
    %726 = vmatpush1.msra.mxu0 0.0
    %727 = vmatprep.subr.mxu0 0.0
    %728 = vmatpush1.msra.mxu0 0.0
    %729 = vmatprep.subr.mxu0 0.0
    %730 = vmatpush1.msra.mxu0 0.0
    %731 = vmatprep.subr.mxu0 0.0
    %732 = vmatpush1.msra.mxu0 0.0
    %733 = vmatprep.subr.mxu0 0.0
    %734 = vmatpush1.msra.mxu0 0.0
    %735 = vmatprep.subr.mxu0 0.0
    %736 = vmatpush1.msra.mxu0 0.0
    %737 = vmatprep.subr.mxu0 0.0
    %738 = vmatpush1.msra.mxu0 0.0
    %739 = vmatprep.subr.mxu0 0.0
    %740 = vmatpush1.msra.mxu0 0.0
    %741 = vmatprep.subr.mxu0 0.0
    %742 = vmatpush1.msra.mxu0 0.0
    %743 = vmatprep.subr.mxu0 0.0
    %744 = vmatpush1.msra.mxu0 0.0
    %745 = vmatprep.subr.mxu0 0.0
    %746 = vmatpush1.msra.mxu0 0.0
    %747 = vmatprep.subr.mxu0 0.0
    %748 = vmatpush1.msra.mxu0 0.0
    %749 = vmatprep.subr.mxu0 0.0
    %750 = vmatpush1.msra.mxu0 0.0
    %751 = vmatprep.subr.mxu0 0.0
    %752 = vmatpush1.msra.mxu0 0.0
    %753 = vmatprep.subr.mxu0 0.0
    %754 = vmatpush1.msra.mxu0 0.0
    %755 = vmatprep.subr.mxu0 0.0
    %756 = vmatpush1.msra.mxu0 0.0
    %757 = vmatprep.subr.mxu0 0.0
    %758 = vmatpush1.msra.mxu0 0.0
    %759 = vmatprep.subr.mxu0 0.0
    %760 = vmatpush1.msra.mxu0 0.0
    %761 = vmatprep.subr.mxu0 0.0
    %762 = vmatpush1.msra.mxu0 0.0
    %763 = vmatprep.subr.mxu0 0.0
    %764 = vmatpush1.msra.mxu0 0.0
    %765 = vmatprep.subr.mxu0 0.0
    %766 = vmatpush1.msra.mxu0 0.0
    %767 = vmatprep.mubr.f32.mxu0 0.0
    %768 = vmatmul.mubr.f32.gmra.mrb[0].mxu0 %v701
    %v769 = vpop.f32.mrb[0].mxu0
    %v770 = vadd.f32 0.0, %v769
    %v771 = vpop.f32.mrb[0].mxu0
    %772 = vdwg.mxu0
    %v773 = vadd.f32 %v699, %v770
    %v774 = vadd.f32 %v773, %v100
    %v775 = vtanh.pop %v774
    %776 = vrot.lane.b32.xlu0 %v775, 96
    %v777 = vpop.permute.xlu0 %776
    %778 = vrot.lane.b32.xlu0 %v774, 64
    %v779 = vpop.permute.xlu0 %778
    %v780 = vxor.u32 %v779, 2147483648
    %v781 = vmul.f32 %v780, 1.442695
    %v782 = vpow.pop %v781
    %v783 = vadd.f32 %v782, 1.0
    %v784 = vrcp.pop %v783
    %v785 = vmul.f32 1.0, %v784
    %v786 = vsub.f32 %v777, %v775
    %v787 = vmul.f32 %v785, %v786
    %v788 = vadd.f32 %v775, %v787
    %v789 = vmul.f32 %v788, %v120
    %790 = vrot.lane.b32.xlu0 %v600, 9
    %v791 = vpop.permute.xlu0 %790
    %v792 = vadd.f32 %v789, %v791
    %v794 = vsel %vm141, %v792, 0
    %796 = vmatprep.subr.mxu0 0.0
    %797 = vmatpush1.msra.mxu0 %v87
    %798 = vmatprep.subr.mxu0 0.0
    %799 = vmatpush1.msra.mxu0 %v88
    %800 = vmatprep.subr.mxu0 0.0
    %801 = vmatpush1.msra.mxu0 %v89
    %802 = vmatprep.subr.mxu0 0.0
    %803 = vmatpush1.msra.mxu0 %v90
    %804 = vmatprep.subr.mxu0 0.0
    %805 = vmatpush1.msra.mxu0 0.0
    %806 = vmatprep.subr.mxu0 0.0
    %807 = vmatpush1.msra.mxu0 0.0
    %808 = vmatprep.subr.mxu0 0.0
    %809 = vmatpush1.msra.mxu0 0.0
    %810 = vmatprep.subr.mxu0 0.0
    %811 = vmatpush1.msra.mxu0 0.0
    %812 = vmatprep.subr.mxu0 0.0
    %813 = vmatpush1.msra.mxu0 0.0
    %814 = vmatprep.subr.mxu0 0.0
    %815 = vmatpush1.msra.mxu0 0.0
    %816 = vmatprep.subr.mxu0 0.0
    %817 = vmatpush1.msra.mxu0 0.0
    %818 = vmatprep.subr.mxu0 0.0
    %819 = vmatpush1.msra.mxu0 0.0
    %820 = vmatprep.subr.mxu0 0.0
    %821 = vmatpush1.msra.mxu0 0.0
    %822 = vmatprep.subr.mxu0 0.0
    %823 = vmatpush1.msra.mxu0 0.0
    %824 = vmatprep.subr.mxu0 0.0
    %825 = vmatpush1.msra.mxu0 0.0
    %826 = vmatprep.subr.mxu0 0.0
    %827 = vmatpush1.msra.mxu0 0.0
    %828 = vmatprep.subr.mxu0 0.0
    %829 = vmatpush1.msra.mxu0 0.0
    %830 = vmatprep.subr.mxu0 0.0
    %831 = vmatpush1.msra.mxu0 0.0
    %832 = vmatprep.subr.mxu0 0.0
    %833 = vmatpush1.msra.mxu0 0.0
    %834 = vmatprep.subr.mxu0 0.0
    %835 = vmatpush1.msra.mxu0 0.0
    %836 = vmatprep.subr.mxu0 0.0
    %837 = vmatpush1.msra.mxu0 0.0
    %838 = vmatprep.subr.mxu0 0.0
    %839 = vmatpush1.msra.mxu0 0.0
    %840 = vmatprep.subr.mxu0 0.0
    %841 = vmatpush1.msra.mxu0 0.0
    %842 = vmatprep.subr.mxu0 0.0
    %843 = vmatpush1.msra.mxu0 0.0
    %844 = vmatprep.subr.mxu0 0.0
    %845 = vmatpush1.msra.mxu0 0.0
    %846 = vmatprep.subr.mxu0 0.0
    %847 = vmatpush1.msra.mxu0 0.0
    %848 = vmatprep.subr.mxu0 0.0
    %849 = vmatpush1.msra.mxu0 0.0
    %850 = vmatprep.subr.mxu0 0.0
    %851 = vmatpush1.msra.mxu0 0.0
    %852 = vmatprep.subr.mxu0 0.0
    %853 = vmatpush1.msra.mxu0 0.0
    %854 = vmatprep.subr.mxu0 0.0
    %855 = vmatpush1.msra.mxu0 0.0
    %856 = vmatprep.subr.mxu0 0.0
    %857 = vmatpush1.msra.mxu0 0.0
    %858 = vmatprep.subr.mxu0 0.0
    %859 = vmatpush1.msra.mxu0 0.0
    %860 = vmatprep.mubr.f32.mxu0 0.0
    %861 = vmatmul.mubr.f32.gmra.mrb[0].mxu0 %v794
    %v862 = vpop.f32.mrb[0].mxu0
    %v863 = vadd.f32 %v107, %v862
    %v864 = vpop.f32.mrb[0].mxu0
    %865 = vdwg.mxu0
    %v866 = vtanh.pop %v863
    %867 = vrot.lane.b32.xlu0 %v866, 96
    %v868 = vpop.permute.xlu0 %867
    %869 = vrot.lane.b32.xlu0 %v863, 64
    %v870 = vpop.permute.xlu0 %869
    %v871 = vxor.u32 %v870, 2147483648
    %v872 = vmul.f32 %v871, 1.442695
    %v873 = vpow.pop %v872
    %v874 = vadd.f32 %v873, 1.0
    %v875 = vrcp.pop %v874
    %v876 = vmul.f32 1.0, %v875
    %v877 = vsub.f32 %v868, %v866
    %v878 = vmul.f32 %v876, %v877
    %v879 = vadd.f32 %v866, %v878
    %v880 = vmul.f32 %v879, %v123
    %881 = vrot.lane.b32.xlu0 %v691, 6
    %v882 = vpop.permute.xlu0 %881
    %v883 = vadd.f32 %v880, %v882
    %v885 = vsel %vm141, %v883, 0
    %887 = vmatprep.subr.mxu0 0.0
    %888 = vmatpush1.msra.mxu0 %v91
    %889 = vmatprep.subr.mxu0 0.0
    %890 = vmatpush1.msra.mxu0 %v92
    %891 = vmatprep.subr.mxu0 0.0
    %892 = vmatpush1.msra.mxu0 %v93
    %893 = vmatprep.subr.mxu0 0.0
    %894 = vmatpush1.msra.mxu0 %v94
    %895 = vmatprep.subr.mxu0 0.0
    %896 = vmatpush1.msra.mxu0 0.0
    %897 = vmatprep.subr.mxu0 0.0
    %898 = vmatpush1.msra.mxu0 0.0
    %899 = vmatprep.subr.mxu0 0.0
    %900 = vmatpush1.msra.mxu0 0.0
    %901 = vmatprep.subr.mxu0 0.0
    %902 = vmatpush1.msra.mxu0 0.0
    %903 = vmatprep.subr.mxu0 0.0
    %904 = vmatpush1.msra.mxu0 0.0
    %905 = vmatprep.subr.mxu0 0.0
    %906 = vmatpush1.msra.mxu0 0.0
    %907 = vmatprep.subr.mxu0 0.0
    %908 = vmatpush1.msra.mxu0 0.0
    %909 = vmatprep.subr.mxu0 0.0
    %910 = vmatpush1.msra.mxu0 0.0
    %911 = vmatprep.subr.mxu0 0.0
    %912 = vmatpush1.msra.mxu0 0.0
    %913 = vmatprep.subr.mxu0 0.0
    %914 = vmatpush1.msra.mxu0 0.0
    %915 = vmatprep.subr.mxu0 0.0
    %916 = vmatpush1.msra.mxu0 0.0
    %917 = vmatprep.subr.mxu0 0.0
    %918 = vmatpush1.msra.mxu0 0.0
    %919 = vmatprep.subr.mxu0 0.0
    %920 = vmatpush1.msra.mxu0 0.0
    %921 = vmatprep.subr.mxu0 0.0
    %922 = vmatpush1.msra.mxu0 0.0
    %923 = vmatprep.subr.mxu0 0.0
    %924 = vmatpush1.msra.mxu0 0.0
    %925 = vmatprep.subr.mxu0 0.0
    %926 = vmatpush1.msra.mxu0 0.0
    %927 = vmatprep.subr.mxu0 0.0
    %928 = vmatpush1.msra.mxu0 0.0
    %929 = vmatprep.subr.mxu0 0.0
    %930 = vmatpush1.msra.mxu0 0.0
    %931 = vmatprep.subr.mxu0 0.0
    %932 = vmatpush1.msra.mxu0 0.0
    %933 = vmatprep.subr.mxu0 0.0
    %934 = vmatpush1.msra.mxu0 0.0
    %935 = vmatprep.subr.mxu0 0.0
    %936 = vmatpush1.msra.mxu0 0.0
    %937 = vmatprep.subr.mxu0 0.0
    %938 = vmatpush1.msra.mxu0 0.0
    %939 = vmatprep.subr.mxu0 0.0
    %940 = vmatpush1.msra.mxu0 0.0
    %941 = vmatprep.subr.mxu0 0.0
    %942 = vmatpush1.msra.mxu0 0.0
    %943 = vmatprep.subr.mxu0 0.0
    %944 = vmatpush1.msra.mxu0 0.0
    %945 = vmatprep.subr.mxu0 0.0
    %946 = vmatpush1.msra.mxu0 0.0
    %947 = vmatprep.subr.mxu0 0.0
    %948 = vmatpush1.msra.mxu0 0.0
    %949 = vmatprep.subr.mxu0 0.0
    %950 = vmatpush1.msra.mxu0 0.0
    %951 = vmatprep.mubr.f32.mxu0 0.0
    %952 = vmatmul.mubr.f32.gmra.mrb[0].mxu0 %v885
    %v953 = vpop.f32.mrb[0].mxu0
    %v954 = vadd.f32 %v114, %v953
    %v955 = vpop.f32.mrb[0].mxu0
    %956 = vdwg.mxu0
    %v957 = vtanh.pop %v954
    %958 = vrot.lane.b32.xlu0 %v957, 96
    %v959 = vpop.permute.xlu0 %958
    %960 = vrot.lane.b32.xlu0 %v954, 64
    %v961 = vpop.permute.xlu0 %960
    %v962 = vxor.u32 %v961, 2147483648
    %v963 = vmul.f32 %v962, 1.442695
    %v964 = vpow.pop %v963
    %v965 = vadd.f32 %v964, 1.0
    %v966 = vrcp.pop %v965
    %v967 = vmul.f32 1.0, %v966
    %v968 = vsub.f32 %v959, %v957
    %v969 = vmul.f32 %v967, %v968
    %v970 = vadd.f32 %v957, %v969
    %v971 = vmul.f32 %v970, %v126
    %972 = vrot.lane.b32.xlu0 %v971, 2
    %v973 = vpop.permute.xlu0 %972
    %v974 = vadd.f32 %v694, %v973
    %975 = vset.pattern.permute.xlu0 3
    %976 = vperm.xlu0 %975, %v134
    %v977 = vpop.permute.xlu0 %976
    %v979 = vmul.f32 %v977, %v132
    %v981 = vsel %vm141, %v789, 0
    %983 = vmatprep.subr.mxu0 0.0
    %984 = vmatpush1.msra.mxu0 %v83
    %985 = vmatprep.subr.mxu0 0.0
    %986 = vmatpush1.msra.mxu0 %v84
    %987 = vmatprep.subr.mxu0 0.0
    %988 = vmatpush1.msra.mxu0 %v85
    %989 = vmatprep.subr.mxu0 0.0
    %990 = vmatpush1.msra.mxu0 %v86
    %991 = vmatprep.subr.mxu0 0.0
    %992 = vmatpush1.msra.mxu0 0.0
    %993 = vmatprep.subr.mxu0 0.0
    %994 = vmatpush1.msra.mxu0 0.0
    %995 = vmatprep.subr.mxu0 0.0
    %996 = vmatpush1.msra.mxu0 0.0
    %997 = vmatprep.subr.mxu0 0.0
    %998 = vmatpush1.msra.mxu0 0.0
    %999 = vmatprep.subr.mxu0 0.0
    %1000 = vmatpush1.msra.mxu0 0.0
    %1001 = vmatprep.subr.mxu0 0.0
    %1002 = vmatpush1.msra.mxu0 0.0
    %1003 = vmatprep.subr.mxu0 0.0
    %1004 = vmatpush1.msra.mxu0 0.0
    %1005 = vmatprep.subr.mxu0 0.0
    %1006 = vmatpush1.msra.mxu0 0.0
    %1007 = vmatprep.subr.mxu0 0.0
    %1008 = vmatpush1.msra.mxu0 0.0
    %1009 = vmatprep.subr.mxu0 0.0
    %1010 = vmatpush1.msra.mxu0 0.0
    %1011 = vmatprep.subr.mxu0 0.0
    %1012 = vmatpush1.msra.mxu0 0.0
    %1013 = vmatprep.subr.mxu0 0.0
    %1014 = vmatpush1.msra.mxu0 0.0
    %1015 = vmatprep.subr.mxu0 0.0
    %1016 = vmatpush1.msra.mxu0 0.0
    %1017 = vmatprep.subr.mxu0 0.0
    %1018 = vmatpush1.msra.mxu0 0.0
    %1019 = vmatprep.subr.mxu0 0.0
    %1020 = vmatpush1.msra.mxu0 0.0
    %1021 = vmatprep.subr.mxu0 0.0
    %1022 = vmatpush1.msra.mxu0 0.0
    %1023 = vmatprep.subr.mxu0 0.0
    %1024 = vmatpush1.msra.mxu0 0.0
    %1025 = vmatprep.subr.mxu0 0.0
    %1026 = vmatpush1.msra.mxu0 0.0
    %1027 = vmatprep.subr.mxu0 0.0
    %1028 = vmatpush1.msra.mxu0 0.0
    %1029 = vmatprep.subr.mxu0 0.0
    %1030 = vmatpush1.msra.mxu0 0.0
    %1031 = vmatprep.subr.mxu0 0.0
    %1032 = vmatpush1.msra.mxu0 0.0
    %1033 = vmatprep.subr.mxu0 0.0
    %1034 = vmatpush1.msra.mxu0 0.0
    %1035 = vmatprep.subr.mxu0 0.0
    %1036 = vmatpush1.msra.mxu0 0.0
    %1037 = vmatprep.subr.mxu0 0.0
    %1038 = vmatpush1.msra.mxu0 0.0
    %1039 = vmatprep.subr.mxu0 0.0
    %1040 = vmatpush1.msra.mxu0 0.0
    %1041 = vmatprep.subr.mxu0 0.0
    %1042 = vmatpush1.msra.mxu0 0.0
    %1043 = vmatprep.subr.mxu0 0.0
    %1044 = vmatpush1.msra.mxu0 0.0
    %1045 = vmatprep.subr.mxu0 0.0
    %1046 = vmatpush1.msra.mxu0 0.0
    %1047 = vmatprep.mubr.f32.mxu0 0.0
    %1048 = vmatmul.mubr.f32.gmra.mrb[0].mxu0 %v981
    %v1049 = vpop.f32.mrb[0].mxu0
    %v1050 = vadd.f32 0.0, %v1049
    %v1051 = vpop.f32.mrb[0].mxu0
    %1052 = vdwg.mxu0
    %v1053 = vadd.f32 %v979, %v1050
    %v1054 = vadd.f32 %v1053, %v100
    %v1055 = vtanh.pop %v1054
    %1056 = vrot.lane.b32.xlu0 %v1055, 96
    %v1057 = vpop.permute.xlu0 %1056
    %1058 = vrot.lane.b32.xlu0 %v1054, 64
    %v1059 = vpop.permute.xlu0 %1058
    %v1060 = vxor.u32 %v1059, 2147483648
    %v1061 = vmul.f32 %v1060, 1.442695
    %v1062 = vpow.pop %v1061
    %v1063 = vadd.f32 %v1062, 1.0
    %v1064 = vrcp.pop %v1063
    %v1065 = vmul.f32 1.0, %v1064
    %v1066 = vsub.f32 %v1057, %v1055
    %v1067 = vmul.f32 %v1065, %v1066
    %v1068 = vadd.f32 %v1055, %v1067
    %v1069 = vmul.f32 %v1068, %v120
    %1070 = vrot.lane.b32.xlu0 %v880, 9
    %v1071 = vpop.permute.xlu0 %1070
    %v1072 = vadd.f32 %v1069, %v1071
    %v1074 = vsel %vm141, %v1072, 0
    %1076 = vmatprep.subr.mxu0 0.0
    %1077 = vmatpush1.msra.mxu0 %v87
    %1078 = vmatprep.subr.mxu0 0.0
    %1079 = vmatpush1.msra.mxu0 %v88
    %1080 = vmatprep.subr.mxu0 0.0
    %1081 = vmatpush1.msra.mxu0 %v89
    %1082 = vmatprep.subr.mxu0 0.0
    %1083 = vmatpush1.msra.mxu0 %v90
    %1084 = vmatprep.subr.mxu0 0.0
    %1085 = vmatpush1.msra.mxu0 0.0
    %1086 = vmatprep.subr.mxu0 0.0
    %1087 = vmatpush1.msra.mxu0 0.0
    %1088 = vmatprep.subr.mxu0 0.0
    %1089 = vmatpush1.msra.mxu0 0.0
    %1090 = vmatprep.subr.mxu0 0.0
    %1091 = vmatpush1.msra.mxu0 0.0
    %1092 = vmatprep.subr.mxu0 0.0
    %1093 = vmatpush1.msra.mxu0 0.0
    %1094 = vmatprep.subr.mxu0 0.0
    %1095 = vmatpush1.msra.mxu0 0.0
    %1096 = vmatprep.subr.mxu0 0.0
    %1097 = vmatpush1.msra.mxu0 0.0
    %1098 = vmatprep.subr.mxu0 0.0
    %1099 = vmatpush1.msra.mxu0 0.0
    %1100 = vmatprep.subr.mxu0 0.0
    %1101 = vmatpush1.msra.mxu0 0.0
    %1102 = vmatprep.subr.mxu0 0.0
    %1103 = vmatpush1.msra.mxu0 0.0
    %1104 = vmatprep.subr.mxu0 0.0
    %1105 = vmatpush1.msra.mxu0 0.0
    %1106 = vmatprep.subr.mxu0 0.0
    %1107 = vmatpush1.msra.mxu0 0.0
    %1108 = vmatprep.subr.mxu0 0.0
    %1109 = vmatpush1.msra.mxu0 0.0
    %1110 = vmatprep.subr.mxu0 0.0
    %1111 = vmatpush1.msra.mxu0 0.0
    %1112 = vmatprep.subr.mxu0 0.0
    %1113 = vmatpush1.msra.mxu0 0.0
    %1114 = vmatprep.subr.mxu0 0.0
    %1115 = vmatpush1.msra.mxu0 0.0
    %1116 = vmatprep.subr.mxu0 0.0
    %1117 = vmatpush1.msra.mxu0 0.0
    %1118 = vmatprep.subr.mxu0 0.0
    %1119 = vmatpush1.msra.mxu0 0.0
    %1120 = vmatprep.subr.mxu0 0.0
    %1121 = vmatpush1.msra.mxu0 0.0
    %1122 = vmatprep.subr.mxu0 0.0
    %1123 = vmatpush1.msra.mxu0 0.0
    %1124 = vmatprep.subr.mxu0 0.0
    %1125 = vmatpush1.msra.mxu0 0.0
    %1126 = vmatprep.subr.mxu0 0.0
    %1127 = vmatpush1.msra.mxu0 0.0
    %1128 = vmatprep.subr.mxu0 0.0
    %1129 = vmatpush1.msra.mxu0 0.0
    %1130 = vmatprep.subr.mxu0 0.0
    %1131 = vmatpush1.msra.mxu0 0.0
    %1132 = vmatprep.subr.mxu0 0.0
    %1133 = vmatpush1.msra.mxu0 0.0
    %1134 = vmatprep.subr.mxu0 0.0
    %1135 = vmatpush1.msra.mxu0 0.0
    %1136 = vmatprep.subr.mxu0 0.0
    %1137 = vmatpush1.msra.mxu0 0.0
    %1138 = vmatprep.subr.mxu0 0.0
    %1139 = vmatpush1.msra.mxu0 0.0
    %1140 = vmatprep.mubr.f32.mxu0 0.0
    %1141 = vmatmul.mubr.f32.gmra.mrb[0].mxu0 %v1074
    %v1142 = vpop.f32.mrb[0].mxu0
    %v1143 = vadd.f32 %v107, %v1142
    %v1144 = vpop.f32.mrb[0].mxu0
    %1145 = vdwg.mxu0
    %v1146 = vtanh.pop %v1143
    %1147 = vrot.lane.b32.xlu0 %v1146, 96
    %v1148 = vpop.permute.xlu0 %1147
    %1149 = vrot.lane.b32.xlu0 %v1143, 64
    %v1150 = vpop.permute.xlu0 %1149
    %v1151 = vxor.u32 %v1150, 2147483648
    %v1152 = vmul.f32 %v1151, 1.442695
    %v1153 = vpow.pop %v1152
    %v1154 = vadd.f32 %v1153, 1.0
    %v1155 = vrcp.pop %v1154
    %v1156 = vmul.f32 1.0, %v1155
    %v1157 = vsub.f32 %v1148, %v1146
    %v1158 = vmul.f32 %v1156, %v1157
    %v1159 = vadd.f32 %v1146, %v1158
    %v1160 = vmul.f32 %v1159, %v123
    %1161 = vrot.lane.b32.xlu0 %v971, 6
    %v1162 = vpop.permute.xlu0 %1161
    %v1163 = vadd.f32 %v1160, %v1162
    %v1165 = vsel %vm141, %v1163, 0
    %1167 = vmatprep.subr.mxu0 0.0
    %1168 = vmatpush1.msra.mxu0 %v91
    %1169 = vmatprep.subr.mxu0 0.0
    %1170 = vmatpush1.msra.mxu0 %v92
    %1171 = vmatprep.subr.mxu0 0.0
    %1172 = vmatpush1.msra.mxu0 %v93
    %1173 = vmatprep.subr.mxu0 0.0
    %1174 = vmatpush1.msra.mxu0 %v94
    %1175 = vmatprep.subr.mxu0 0.0
    %1176 = vmatpush1.msra.mxu0 0.0
    %1177 = vmatprep.subr.mxu0 0.0
    %1178 = vmatpush1.msra.mxu0 0.0
    %1179 = vmatprep.subr.mxu0 0.0
    %1180 = vmatpush1.msra.mxu0 0.0
    %1181 = vmatprep.subr.mxu0 0.0
    %1182 = vmatpush1.msra.mxu0 0.0
    %1183 = vmatprep.subr.mxu0 0.0
    %1184 = vmatpush1.msra.mxu0 0.0
    %1185 = vmatprep.subr.mxu0 0.0
    %1186 = vmatpush1.msra.mxu0 0.0
    %1187 = vmatprep.subr.mxu0 0.0
    %1188 = vmatpush1.msra.mxu0 0.0
    %1189 = vmatprep.subr.mxu0 0.0
    %1190 = vmatpush1.msra.mxu0 0.0
    %1191 = vmatprep.subr.mxu0 0.0
    %1192 = vmatpush1.msra.mxu0 0.0
    %1193 = vmatprep.subr.mxu0 0.0
    %1194 = vmatpush1.msra.mxu0 0.0
    %1195 = vmatprep.subr.mxu0 0.0
    %1196 = vmatpush1.msra.mxu0 0.0
    %1197 = vmatprep.subr.mxu0 0.0
    %1198 = vmatpush1.msra.mxu0 0.0
    %1199 = vmatprep.subr.mxu0 0.0
    %1200 = vmatpush1.msra.mxu0 0.0
    %1201 = vmatprep.subr.mxu0 0.0
    %1202 = vmatpush1.msra.mxu0 0.0
    %1203 = vmatprep.subr.mxu0 0.0
    %1204 = vmatpush1.msra.mxu0 0.0
    %1205 = vmatprep.subr.mxu0 0.0
    %1206 = vmatpush1.msra.mxu0 0.0
    %1207 = vmatprep.subr.mxu0 0.0
    %1208 = vmatpush1.msra.mxu0 0.0
    %1209 = vmatprep.subr.mxu0 0.0
    %1210 = vmatpush1.msra.mxu0 0.0
    %1211 = vmatprep.subr.mxu0 0.0
    %1212 = vmatpush1.msra.mxu0 0.0
    %1213 = vmatprep.subr.mxu0 0.0
    %1214 = vmatpush1.msra.mxu0 0.0
    %1215 = vmatprep.subr.mxu0 0.0
    %1216 = vmatpush1.msra.mxu0 0.0
    %1217 = vmatprep.subr.mxu0 0.0
    %1218 = vmatpush1.msra.mxu0 0.0
    %1219 = vmatprep.subr.mxu0 0.0
    %1220 = vmatpush1.msra.mxu0 0.0
    %1221 = vmatprep.subr.mxu0 0.0
    %1222 = vmatpush1.msra.mxu0 0.0
    %1223 = vmatprep.subr.mxu0 0.0
    %1224 = vmatpush1.msra.mxu0 0.0
    %1225 = vmatprep.subr.mxu0 0.0
    %1226 = vmatpush1.msra.mxu0 0.0
    %1227 = vmatprep.subr.mxu0 0.0
    %1228 = vmatpush1.msra.mxu0 0.0
    %1229 = vmatprep.subr.mxu0 0.0
    %1230 = vmatpush1.msra.mxu0 0.0
    %1231 = vmatprep.mubr.f32.mxu0 0.0
    %1232 = vmatmul.mubr.f32.gmra.mrb[0].mxu0 %v1165
    %v1233 = vpop.f32.mrb[0].mxu0
    %v1234 = vadd.f32 %v114, %v1233
    %v1235 = vpop.f32.mrb[0].mxu0
    %1236 = vdwg.mxu0
    %v1237 = vtanh.pop %v1234
    %1238 = vrot.lane.b32.xlu0 %v1237, 96
    %v1239 = vpop.permute.xlu0 %1238
    %1240 = vrot.lane.b32.xlu0 %v1234, 64
    %v1241 = vpop.permute.xlu0 %1240
    %v1242 = vxor.u32 %v1241, 2147483648
    %v1243 = vmul.f32 %v1242, 1.442695
    %v1244 = vpow.pop %v1243
    %v1245 = vadd.f32 %v1244, 1.0
    %v1246 = vrcp.pop %v1245
    %v1247 = vmul.f32 1.0, %v1246
    %v1248 = vsub.f32 %v1239, %v1237
    %v1249 = vmul.f32 %v1247, %v1248
    %v1250 = vadd.f32 %v1237, %v1249
    %v1251 = vmul.f32 %v1250, %v126
    %1252 = vrot.lane.b32.xlu0 %v1251, 3
    %v1253 = vpop.permute.xlu0 %1252
    %v1254 = vadd.f32 %v974, %v1253
    %1255 = vset.pattern.permute.xlu0 4
    %1256 = vperm.xlu0 %1255, %v134
    %v1257 = vpop.permute.xlu0 %1256
    %v1259 = vmul.f32 %v1257, %v132
    %v1261 = vsel %vm141, %v1069, 0
    %1263 = vmatprep.subr.mxu0 0.0
    %1264 = vmatpush1.msra.mxu0 %v83
    %1265 = vmatprep.subr.mxu0 0.0
    %1266 = vmatpush1.msra.mxu0 %v84
    %1267 = vmatprep.subr.mxu0 0.0
    %1268 = vmatpush1.msra.mxu0 %v85
    %1269 = vmatprep.subr.mxu0 0.0
    %1270 = vmatpush1.msra.mxu0 %v86
    %1271 = vmatprep.subr.mxu0 0.0
    %1272 = vmatpush1.msra.mxu0 0.0
    %1273 = vmatprep.subr.mxu0 0.0
    %1274 = vmatpush1.msra.mxu0 0.0
    %1275 = vmatprep.subr.mxu0 0.0
    %1276 = vmatpush1.msra.mxu0 0.0
    %1277 = vmatprep.subr.mxu0 0.0
    %1278 = vmatpush1.msra.mxu0 0.0
    %1279 = vmatprep.subr.mxu0 0.0
    %1280 = vmatpush1.msra.mxu0 0.0
    %1281 = vmatprep.subr.mxu0 0.0
    %1282 = vmatpush1.msra.mxu0 0.0
    %1283 = vmatprep.subr.mxu0 0.0
    %1284 = vmatpush1.msra.mxu0 0.0
    %1285 = vmatprep.subr.mxu0 0.0
    %1286 = vmatpush1.msra.mxu0 0.0
    %1287 = vmatprep.subr.mxu0 0.0
    %1288 = vmatpush1.msra.mxu0 0.0
    %1289 = vmatprep.subr.mxu0 0.0
    %1290 = vmatpush1.msra.mxu0 0.0
    %1291 = vmatprep.subr.mxu0 0.0
    %1292 = vmatpush1.msra.mxu0 0.0
    %1293 = vmatprep.subr.mxu0 0.0
    %1294 = vmatpush1.msra.mxu0 0.0
    %1295 = vmatprep.subr.mxu0 0.0
    %1296 = vmatpush1.msra.mxu0 0.0
    %1297 = vmatprep.subr.mxu0 0.0
    %1298 = vmatpush1.msra.mxu0 0.0
    %1299 = vmatprep.subr.mxu0 0.0
    %1300 = vmatpush1.msra.mxu0 0.0
    %1301 = vmatprep.subr.mxu0 0.0
    %1302 = vmatpush1.msra.mxu0 0.0
    %1303 = vmatprep.subr.mxu0 0.0
    %1304 = vmatpush1.msra.mxu0 0.0
    %1305 = vmatprep.subr.mxu0 0.0
    %1306 = vmatpush1.msra.mxu0 0.0
    %1307 = vmatprep.subr.mxu0 0.0
    %1308 = vmatpush1.msra.mxu0 0.0
    %1309 = vmatprep.subr.mxu0 0.0
    %1310 = vmatpush1.msra.mxu0 0.0
    %1311 = vmatprep.subr.mxu0 0.0
    %1312 = vmatpush1.msra.mxu0 0.0
    %1313 = vmatprep.subr.mxu0 0.0
    %1314 = vmatpush1.msra.mxu0 0.0
    %1315 = vmatprep.subr.mxu0 0.0
    %1316 = vmatpush1.msra.mxu0 0.0
    %1317 = vmatprep.subr.mxu0 0.0
    %1318 = vmatpush1.msra.mxu0 0.0
    %1319 = vmatprep.subr.mxu0 0.0
    %1320 = vmatpush1.msra.mxu0 0.0
    %1321 = vmatprep.subr.mxu0 0.0
    %1322 = vmatpush1.msra.mxu0 0.0
    %1323 = vmatprep.subr.mxu0 0.0
    %1324 = vmatpush1.msra.mxu0 0.0
    %1325 = vmatprep.subr.mxu0 0.0
    %1326 = vmatpush1.msra.mxu0 0.0
    %1327 = vmatprep.mubr.f32.mxu0 0.0
    %1328 = vmatmul.mubr.f32.gmra.mrb[0].mxu0 %v1261
    %v1329 = vpop.f32.mrb[0].mxu0
    %v1330 = vadd.f32 0.0, %v1329
    %v1331 = vpop.f32.mrb[0].mxu0
    %1332 = vdwg.mxu0
    %v1333 = vadd.f32 %v1259, %v1330
    %v1334 = vadd.f32 %v1333, %v100
    %v1335 = vtanh.pop %v1334
    %1336 = vrot.lane.b32.xlu0 %v1335, 96
    %v1337 = vpop.permute.xlu0 %1336
    %1338 = vrot.lane.b32.xlu0 %v1334, 64
    %v1339 = vpop.permute.xlu0 %1338
    %v1340 = vxor.u32 %v1339, 2147483648
    %v1341 = vmul.f32 %v1340, 1.442695
    %v1342 = vpow.pop %v1341
    %v1343 = vadd.f32 %v1342, 1.0
    %v1344 = vrcp.pop %v1343
    %v1345 = vmul.f32 1.0, %v1344
    %v1346 = vsub.f32 %v1337, %v1335
    %v1347 = vmul.f32 %v1345, %v1346
    %v1348 = vadd.f32 %v1335, %v1347
    %v1349 = vmul.f32 %v1348, %v120
    %1350 = vrot.lane.b32.xlu0 %v1160, 9
    %v1351 = vpop.permute.xlu0 %1350
    %v1352 = vadd.f32 %v1349, %v1351
    %v1354 = vsel %vm141, %v1352, 0
    %1356 = vmatprep.subr.mxu0 0.0
    %1357 = vmatpush1.msra.mxu0 %v87
    %1358 = vmatprep.subr.mxu0 0.0
    %1359 = vmatpush1.msra.mxu0 %v88
    %1360 = vmatprep.subr.mxu0 0.0
    %1361 = vmatpush1.msra.mxu0 %v89
    %1362 = vmatprep.subr.mxu0 0.0
    %1363 = vmatpush1.msra.mxu0 %v90
    %1364 = vmatprep.subr.mxu0 0.0
    %1365 = vmatpush1.msra.mxu0 0.0
    %1366 = vmatprep.subr.mxu0 0.0
    %1367 = vmatpush1.msra.mxu0 0.0
    %1368 = vmatprep.subr.mxu0 0.0
    %1369 = vmatpush1.msra.mxu0 0.0
    %1370 = vmatprep.subr.mxu0 0.0
    %1371 = vmatpush1.msra.mxu0 0.0
    %1372 = vmatprep.subr.mxu0 0.0
    %1373 = vmatpush1.msra.mxu0 0.0
    %1374 = vmatprep.subr.mxu0 0.0
    %1375 = vmatpush1.msra.mxu0 0.0
    %1376 = vmatprep.subr.mxu0 0.0
    %1377 = vmatpush1.msra.mxu0 0.0
    %1378 = vmatprep.subr.mxu0 0.0
    %1379 = vmatpush1.msra.mxu0 0.0
    %1380 = vmatprep.subr.mxu0 0.0
    %1381 = vmatpush1.msra.mxu0 0.0
    %1382 = vmatprep.subr.mxu0 0.0
    %1383 = vmatpush1.msra.mxu0 0.0
    %1384 = vmatprep.subr.mxu0 0.0
    %1385 = vmatpush1.msra.mxu0 0.0
    %1386 = vmatprep.subr.mxu0 0.0
    %1387 = vmatpush1.msra.mxu0 0.0
    %1388 = vmatprep.subr.mxu0 0.0
    %1389 = vmatpush1.msra.mxu0 0.0
    %1390 = vmatprep.subr.mxu0 0.0
    %1391 = vmatpush1.msra.mxu0 0.0
    %1392 = vmatprep.subr.mxu0 0.0
    %1393 = vmatpush1.msra.mxu0 0.0
    %1394 = vmatprep.subr.mxu0 0.0
    %1395 = vmatpush1.msra.mxu0 0.0
    %1396 = vmatprep.subr.mxu0 0.0
    %1397 = vmatpush1.msra.mxu0 0.0
    %1398 = vmatprep.subr.mxu0 0.0
    %1399 = vmatpush1.msra.mxu0 0.0
    %1400 = vmatprep.subr.mxu0 0.0
    %1401 = vmatpush1.msra.mxu0 0.0
    %1402 = vmatprep.subr.mxu0 0.0
    %1403 = vmatpush1.msra.mxu0 0.0
    %1404 = vmatprep.subr.mxu0 0.0
    %1405 = vmatpush1.msra.mxu0 0.0
    %1406 = vmatprep.subr.mxu0 0.0
    %1407 = vmatpush1.msra.mxu0 0.0
    %1408 = vmatprep.subr.mxu0 0.0
    %1409 = vmatpush1.msra.mxu0 0.0
    %1410 = vmatprep.subr.mxu0 0.0
    %1411 = vmatpush1.msra.mxu0 0.0
    %1412 = vmatprep.subr.mxu0 0.0
    %1413 = vmatpush1.msra.mxu0 0.0
    %1414 = vmatprep.subr.mxu0 0.0
    %1415 = vmatpush1.msra.mxu0 0.0
    %1416 = vmatprep.subr.mxu0 0.0
    %1417 = vmatpush1.msra.mxu0 0.0
    %1418 = vmatprep.subr.mxu0 0.0
    %1419 = vmatpush1.msra.mxu0 0.0
    %1420 = vmatprep.mubr.f32.mxu0 0.0
    %1421 = vmatmul.mubr.f32.gmra.mrb[0].mxu0 %v1354
    %v1422 = vpop.f32.mrb[0].mxu0
    %v1423 = vadd.f32 %v107, %v1422
    %v1424 = vpop.f32.mrb[0].mxu0
    %1425 = vdwg.mxu0
    %v1426 = vtanh.pop %v1423
    %1427 = vrot.lane.b32.xlu0 %v1426, 96
    %v1428 = vpop.permute.xlu0 %1427
    %1429 = vrot.lane.b32.xlu0 %v1423, 64
    %v1430 = vpop.permute.xlu0 %1429
    %v1431 = vxor.u32 %v1430, 2147483648
    %v1432 = vmul.f32 %v1431, 1.442695
    %v1433 = vpow.pop %v1432
    %v1434 = vadd.f32 %v1433, 1.0
    %v1435 = vrcp.pop %v1434
    %v1436 = vmul.f32 1.0, %v1435
    %v1437 = vsub.f32 %v1428, %v1426
    %v1438 = vmul.f32 %v1436, %v1437
    %v1439 = vadd.f32 %v1426, %v1438
    %v1440 = vmul.f32 %v1439, %v123
    %1441 = vrot.lane.b32.xlu0 %v1251, 6
    %v1442 = vpop.permute.xlu0 %1441
    %v1443 = vadd.f32 %v1440, %v1442
    %v1445 = vsel %vm141, %v1443, 0
    %1447 = vmatprep.subr.mxu0 0.0
    %1448 = vmatpush1.msra.mxu0 %v91
    %1449 = vmatprep.subr.mxu0 0.0
    %1450 = vmatpush1.msra.mxu0 %v92
    %1451 = vmatprep.subr.mxu0 0.0
    %1452 = vmatpush1.msra.mxu0 %v93
    %1453 = vmatprep.subr.mxu0 0.0
    %1454 = vmatpush1.msra.mxu0 %v94
    %1455 = vmatprep.subr.mxu0 0.0
    %1456 = vmatpush1.msra.mxu0 0.0
    %1457 = vmatprep.subr.mxu0 0.0
    %1458 = vmatpush1.msra.mxu0 0.0
    %1459 = vmatprep.subr.mxu0 0.0
    %1460 = vmatpush1.msra.mxu0 0.0
    %1461 = vmatprep.subr.mxu0 0.0
    %1462 = vmatpush1.msra.mxu0 0.0
    %1463 = vmatprep.subr.mxu0 0.0
    %1464 = vmatpush1.msra.mxu0 0.0
    %1465 = vmatprep.subr.mxu0 0.0
    %1466 = vmatpush1.msra.mxu0 0.0
    %1467 = vmatprep.subr.mxu0 0.0
    %1468 = vmatpush1.msra.mxu0 0.0
    %1469 = vmatprep.subr.mxu0 0.0
    %1470 = vmatpush1.msra.mxu0 0.0
    %1471 = vmatprep.subr.mxu0 0.0
    %1472 = vmatpush1.msra.mxu0 0.0
    %1473 = vmatprep.subr.mxu0 0.0
    %1474 = vmatpush1.msra.mxu0 0.0
    %1475 = vmatprep.subr.mxu0 0.0
    %1476 = vmatpush1.msra.mxu0 0.0
    %1477 = vmatprep.subr.mxu0 0.0
    %1478 = vmatpush1.msra.mxu0 0.0
    %1479 = vmatprep.subr.mxu0 0.0
    %1480 = vmatpush1.msra.mxu0 0.0
    %1481 = vmatprep.subr.mxu0 0.0
    %1482 = vmatpush1.msra.mxu0 0.0
    %1483 = vmatprep.subr.mxu0 0.0
    %1484 = vmatpush1.msra.mxu0 0.0
    %1485 = vmatprep.subr.mxu0 0.0
    %1486 = vmatpush1.msra.mxu0 0.0
    %1487 = vmatprep.subr.mxu0 0.0
    %1488 = vmatpush1.msra.mxu0 0.0
    %1489 = vmatprep.subr.mxu0 0.0
    %1490 = vmatpush1.msra.mxu0 0.0
    %1491 = vmatprep.subr.mxu0 0.0
    %1492 = vmatpush1.msra.mxu0 0.0
    %1493 = vmatprep.subr.mxu0 0.0
    %1494 = vmatpush1.msra.mxu0 0.0
    %1495 = vmatprep.subr.mxu0 0.0
    %1496 = vmatpush1.msra.mxu0 0.0
    %1497 = vmatprep.subr.mxu0 0.0
    %1498 = vmatpush1.msra.mxu0 0.0
    %1499 = vmatprep.subr.mxu0 0.0
    %1500 = vmatpush1.msra.mxu0 0.0
    %1501 = vmatprep.subr.mxu0 0.0
    %1502 = vmatpush1.msra.mxu0 0.0
    %1503 = vmatprep.subr.mxu0 0.0
    %1504 = vmatpush1.msra.mxu0 0.0
    %1505 = vmatprep.subr.mxu0 0.0
    %1506 = vmatpush1.msra.mxu0 0.0
    %1507 = vmatprep.subr.mxu0 0.0
    %1508 = vmatpush1.msra.mxu0 0.0
    %1509 = vmatprep.subr.mxu0 0.0
    %1510 = vmatpush1.msra.mxu0 0.0
    %1511 = vmatprep.mubr.f32.mxu0 0.0
    %1512 = vmatmul.mubr.f32.gmra.mrb[0].mxu0 %v1445
    %v1513 = vpop.f32.mrb[0].mxu0
    %v1514 = vadd.f32 %v114, %v1513
    %v1515 = vpop.f32.mrb[0].mxu0
    %1516 = vdwg.mxu0
    %v1517 = vtanh.pop %v1514
    %1518 = vrot.lane.b32.xlu0 %v1517, 96
    %v1519 = vpop.permute.xlu0 %1518
    %1520 = vrot.lane.b32.xlu0 %v1514, 64
    %v1521 = vpop.permute.xlu0 %1520
    %v1522 = vxor.u32 %v1521, 2147483648
    %v1523 = vmul.f32 %v1522, 1.442695
    %v1524 = vpow.pop %v1523
    %v1525 = vadd.f32 %v1524, 1.0
    %v1526 = vrcp.pop %v1525
    %v1527 = vmul.f32 1.0, %v1526
    %v1528 = vsub.f32 %v1519, %v1517
    %v1529 = vmul.f32 %v1527, %v1528
    %v1530 = vadd.f32 %v1517, %v1529
    %v1531 = vmul.f32 %v1530, %v126
    %1532 = vrot.lane.b32.xlu0 %v1531, 4
    %v1533 = vpop.permute.xlu0 %1532
    %v1534 = vadd.f32 %v1254, %v1533
    %1535 = vset.pattern.permute.xlu0 5
    %1536 = vperm.xlu0 %1535, %v134
    %v1537 = vpop.permute.xlu0 %1536
    %v1539 = vmul.f32 %v1537, %v132
    %v1541 = vsel %vm141, %v1349, 0
    %1543 = vmatprep.subr.mxu0 0.0
    %1544 = vmatpush1.msra.mxu0 %v83
    %1545 = vmatprep.subr.mxu0 0.0
    %1546 = vmatpush1.msra.mxu0 %v84
    %1547 = vmatprep.subr.mxu0 0.0
    %1548 = vmatpush1.msra.mxu0 %v85
    %1549 = vmatprep.subr.mxu0 0.0
    %1550 = vmatpush1.msra.mxu0 %v86
    %1551 = vmatprep.subr.mxu0 0.0
    %1552 = vmatpush1.msra.mxu0 0.0
    %1553 = vmatprep.subr.mxu0 0.0
    %1554 = vmatpush1.msra.mxu0 0.0
    %1555 = vmatprep.subr.mxu0 0.0
    %1556 = vmatpush1.msra.mxu0 0.0
    %1557 = vmatprep.subr.mxu0 0.0
    %1558 = vmatpush1.msra.mxu0 0.0
    %1559 = vmatprep.subr.mxu0 0.0
    %1560 = vmatpush1.msra.mxu0 0.0
    %1561 = vmatprep.subr.mxu0 0.0
    %1562 = vmatpush1.msra.mxu0 0.0
    %1563 = vmatprep.subr.mxu0 0.0
    %1564 = vmatpush1.msra.mxu0 0.0
    %1565 = vmatprep.subr.mxu0 0.0
    %1566 = vmatpush1.msra.mxu0 0.0
    %1567 = vmatprep.subr.mxu0 0.0
    %1568 = vmatpush1.msra.mxu0 0.0
    %1569 = vmatprep.subr.mxu0 0.0
    %1570 = vmatpush1.msra.mxu0 0.0
    %1571 = vmatprep.subr.mxu0 0.0
    %1572 = vmatpush1.msra.mxu0 0.0
    %1573 = vmatprep.subr.mxu0 0.0
    %1574 = vmatpush1.msra.mxu0 0.0
    %1575 = vmatprep.subr.mxu0 0.0
    %1576 = vmatpush1.msra.mxu0 0.0
    %1577 = vmatprep.subr.mxu0 0.0
    %1578 = vmatpush1.msra.mxu0 0.0
    %1579 = vmatprep.subr.mxu0 0.0
    %1580 = vmatpush1.msra.mxu0 0.0
    %1581 = vmatprep.subr.mxu0 0.0
    %1582 = vmatpush1.msra.mxu0 0.0
    %1583 = vmatprep.subr.mxu0 0.0
    %1584 = vmatpush1.msra.mxu0 0.0
    %1585 = vmatprep.subr.mxu0 0.0
    %1586 = vmatpush1.msra.mxu0 0.0
    %1587 = vmatprep.subr.mxu0 0.0
    %1588 = vmatpush1.msra.mxu0 0.0
    %1589 = vmatprep.subr.mxu0 0.0
    %1590 = vmatpush1.msra.mxu0 0.0
    %1591 = vmatprep.subr.mxu0 0.0
    %1592 = vmatpush1.msra.mxu0 0.0
    %1593 = vmatprep.subr.mxu0 0.0
    %1594 = vmatpush1.msra.mxu0 0.0
    %1595 = vmatprep.subr.mxu0 0.0
    %1596 = vmatpush1.msra.mxu0 0.0
    %1597 = vmatprep.subr.mxu0 0.0
    %1598 = vmatpush1.msra.mxu0 0.0
    %1599 = vmatprep.subr.mxu0 0.0
    %1600 = vmatpush1.msra.mxu0 0.0
    %1601 = vmatprep.subr.mxu0 0.0
    %1602 = vmatpush1.msra.mxu0 0.0
    %1603 = vmatprep.subr.mxu0 0.0
    %1604 = vmatpush1.msra.mxu0 0.0
    %1605 = vmatprep.subr.mxu0 0.0
    %1606 = vmatpush1.msra.mxu0 0.0
    %1607 = vmatprep.mubr.f32.mxu0 0.0
    %1608 = vmatmul.mubr.f32.gmra.mrb[0].mxu0 %v1541
    %v1609 = vpop.f32.mrb[0].mxu0
    %v1610 = vadd.f32 0.0, %v1609
    %v1611 = vpop.f32.mrb[0].mxu0
    %1612 = vdwg.mxu0
    %v1613 = vadd.f32 %v1539, %v1610
    %v1614 = vadd.f32 %v1613, %v100
    %v1615 = vtanh.pop %v1614
    %1616 = vrot.lane.b32.xlu0 %v1615, 96
    %v1617 = vpop.permute.xlu0 %1616
    %1618 = vrot.lane.b32.xlu0 %v1614, 64
    %v1619 = vpop.permute.xlu0 %1618
    %v1620 = vxor.u32 %v1619, 2147483648
    %v1621 = vmul.f32 %v1620, 1.442695
    %v1622 = vpow.pop %v1621
    %v1623 = vadd.f32 %v1622, 1.0
    %v1624 = vrcp.pop %v1623
    %v1625 = vmul.f32 1.0, %v1624
    %v1626 = vsub.f32 %v1617, %v1615
    %v1627 = vmul.f32 %v1625, %v1626
    %v1628 = vadd.f32 %v1615, %v1627
    %v1629 = vmul.f32 %v1628, %v120
    %1630 = vrot.lane.b32.xlu0 %v1440, 9
    %v1631 = vpop.permute.xlu0 %1630
    %v1632 = vadd.f32 %v1629, %v1631
    %v1634 = vsel %vm141, %v1632, 0
    %1636 = vmatprep.subr.mxu0 0.0
    %1637 = vmatpush1.msra.mxu0 %v87
    %1638 = vmatprep.subr.mxu0 0.0
    %1639 = vmatpush1.msra.mxu0 %v88
    %1640 = vmatprep.subr.mxu0 0.0
    %1641 = vmatpush1.msra.mxu0 %v89
    %1642 = vmatprep.subr.mxu0 0.0
    %1643 = vmatpush1.msra.mxu0 %v90
    %1644 = vmatprep.subr.mxu0 0.0
    %1645 = vmatpush1.msra.mxu0 0.0
    %1646 = vmatprep.subr.mxu0 0.0
    %1647 = vmatpush1.msra.mxu0 0.0
    %1648 = vmatprep.subr.mxu0 0.0
    %1649 = vmatpush1.msra.mxu0 0.0
    %1650 = vmatprep.subr.mxu0 0.0
    %1651 = vmatpush1.msra.mxu0 0.0
    %1652 = vmatprep.subr.mxu0 0.0
    %1653 = vmatpush1.msra.mxu0 0.0
    %1654 = vmatprep.subr.mxu0 0.0
    %1655 = vmatpush1.msra.mxu0 0.0
    %1656 = vmatprep.subr.mxu0 0.0
    %1657 = vmatpush1.msra.mxu0 0.0
    %1658 = vmatprep.subr.mxu0 0.0
    %1659 = vmatpush1.msra.mxu0 0.0
    %1660 = vmatprep.subr.mxu0 0.0
    %1661 = vmatpush1.msra.mxu0 0.0
    %1662 = vmatprep.subr.mxu0 0.0
    %1663 = vmatpush1.msra.mxu0 0.0
    %1664 = vmatprep.subr.mxu0 0.0
    %1665 = vmatpush1.msra.mxu0 0.0
    %1666 = vmatprep.subr.mxu0 0.0
    %1667 = vmatpush1.msra.mxu0 0.0
    %1668 = vmatprep.subr.mxu0 0.0
    %1669 = vmatpush1.msra.mxu0 0.0
    %1670 = vmatprep.subr.mxu0 0.0
    %1671 = vmatpush1.msra.mxu0 0.0
    %1672 = vmatprep.subr.mxu0 0.0
    %1673 = vmatpush1.msra.mxu0 0.0
    %1674 = vmatprep.subr.mxu0 0.0
    %1675 = vmatpush1.msra.mxu0 0.0
    %1676 = vmatprep.subr.mxu0 0.0
    %1677 = vmatpush1.msra.mxu0 0.0
    %1678 = vmatprep.subr.mxu0 0.0
    %1679 = vmatpush1.msra.mxu0 0.0
    %1680 = vmatprep.subr.mxu0 0.0
    %1681 = vmatpush1.msra.mxu0 0.0
    %1682 = vmatprep.subr.mxu0 0.0
    %1683 = vmatpush1.msra.mxu0 0.0
    %1684 = vmatprep.subr.mxu0 0.0
    %1685 = vmatpush1.msra.mxu0 0.0
    %1686 = vmatprep.subr.mxu0 0.0
    %1687 = vmatpush1.msra.mxu0 0.0
    %1688 = vmatprep.subr.mxu0 0.0
    %1689 = vmatpush1.msra.mxu0 0.0
    %1690 = vmatprep.subr.mxu0 0.0
    %1691 = vmatpush1.msra.mxu0 0.0
    %1692 = vmatprep.subr.mxu0 0.0
    %1693 = vmatpush1.msra.mxu0 0.0
    %1694 = vmatprep.subr.mxu0 0.0
    %1695 = vmatpush1.msra.mxu0 0.0
    %1696 = vmatprep.subr.mxu0 0.0
    %1697 = vmatpush1.msra.mxu0 0.0
    %1698 = vmatprep.subr.mxu0 0.0
    %1699 = vmatpush1.msra.mxu0 0.0
    %1700 = vmatprep.mubr.f32.mxu0 0.0
    %1701 = vmatmul.mubr.f32.gmra.mrb[0].mxu0 %v1634
    %v1702 = vpop.f32.mrb[0].mxu0
    %v1703 = vadd.f32 %v107, %v1702
    %v1704 = vpop.f32.mrb[0].mxu0
    %1705 = vdwg.mxu0
    %v1706 = vtanh.pop %v1703
    %1707 = vrot.lane.b32.xlu0 %v1706, 96
    %v1708 = vpop.permute.xlu0 %1707
    %1709 = vrot.lane.b32.xlu0 %v1703, 64
    %v1710 = vpop.permute.xlu0 %1709
    %v1711 = vxor.u32 %v1710, 2147483648
    %v1712 = vmul.f32 %v1711, 1.442695
    %v1713 = vpow.pop %v1712
    %v1714 = vadd.f32 %v1713, 1.0
    %v1715 = vrcp.pop %v1714
    %v1716 = vmul.f32 1.0, %v1715
    %v1717 = vsub.f32 %v1708, %v1706
    %v1718 = vmul.f32 %v1716, %v1717
    %v1719 = vadd.f32 %v1706, %v1718
    %v1720 = vmul.f32 %v1719, %v123
    %1721 = vrot.lane.b32.xlu0 %v1531, 6
    %v1722 = vpop.permute.xlu0 %1721
    %v1723 = vadd.f32 %v1720, %v1722
    %v1725 = vsel %vm141, %v1723, 0
    %1727 = vmatprep.subr.mxu0 0.0
    %1728 = vmatpush1.msra.mxu0 %v91
    %1729 = vmatprep.subr.mxu0 0.0
    %1730 = vmatpush1.msra.mxu0 %v92
    %1731 = vmatprep.subr.mxu0 0.0
    %1732 = vmatpush1.msra.mxu0 %v93
    %1733 = vmatprep.subr.mxu0 0.0
    %1734 = vmatpush1.msra.mxu0 %v94
    %1735 = vmatprep.subr.mxu0 0.0
    %1736 = vmatpush1.msra.mxu0 0.0
    %1737 = vmatprep.subr.mxu0 0.0
    %1738 = vmatpush1.msra.mxu0 0.0
    %1739 = vmatprep.subr.mxu0 0.0
    %1740 = vmatpush1.msra.mxu0 0.0
    %1741 = vmatprep.subr.mxu0 0.0
    %1742 = vmatpush1.msra.mxu0 0.0
    %1743 = vmatprep.subr.mxu0 0.0
    %1744 = vmatpush1.msra.mxu0 0.0
    %1745 = vmatprep.subr.mxu0 0.0
    %1746 = vmatpush1.msra.mxu0 0.0
    %1747 = vmatprep.subr.mxu0 0.0
    %1748 = vmatpush1.msra.mxu0 0.0
    %1749 = vmatprep.subr.mxu0 0.0
    %1750 = vmatpush1.msra.mxu0 0.0
    %1751 = vmatprep.subr.mxu0 0.0
    %1752 = vmatpush1.msra.mxu0 0.0
    %1753 = vmatprep.subr.mxu0 0.0
    %1754 = vmatpush1.msra.mxu0 0.0
    %1755 = vmatprep.subr.mxu0 0.0
    %1756 = vmatpush1.msra.mxu0 0.0
    %1757 = vmatprep.subr.mxu0 0.0
    %1758 = vmatpush1.msra.mxu0 0.0
    %1759 = vmatprep.subr.mxu0 0.0
    %1760 = vmatpush1.msra.mxu0 0.0
    %1761 = vmatprep.subr.mxu0 0.0
    %1762 = vmatpush1.msra.mxu0 0.0
    %1763 = vmatprep.subr.mxu0 0.0
    %1764 = vmatpush1.msra.mxu0 0.0
    %1765 = vmatprep.subr.mxu0 0.0
    %1766 = vmatpush1.msra.mxu0 0.0
    %1767 = vmatprep.subr.mxu0 0.0
    %1768 = vmatpush1.msra.mxu0 0.0
    %1769 = vmatprep.subr.mxu0 0.0
    %1770 = vmatpush1.msra.mxu0 0.0
    %1771 = vmatprep.subr.mxu0 0.0
    %1772 = vmatpush1.msra.mxu0 0.0
    %1773 = vmatprep.subr.mxu0 0.0
    %1774 = vmatpush1.msra.mxu0 0.0
    %1775 = vmatprep.subr.mxu0 0.0
    %1776 = vmatpush1.msra.mxu0 0.0
    %1777 = vmatprep.subr.mxu0 0.0
    %1778 = vmatpush1.msra.mxu0 0.0
    %1779 = vmatprep.subr.mxu0 0.0
    %1780 = vmatpush1.msra.mxu0 0.0
    %1781 = vmatprep.subr.mxu0 0.0
    %1782 = vmatpush1.msra.mxu0 0.0
    %1783 = vmatprep.subr.mxu0 0.0
    %1784 = vmatpush1.msra.mxu0 0.0
    %1785 = vmatprep.subr.mxu0 0.0
    %1786 = vmatpush1.msra.mxu0 0.0
    %1787 = vmatprep.subr.mxu0 0.0
    %1788 = vmatpush1.msra.mxu0 0.0
    %1789 = vmatprep.subr.mxu0 0.0
    %1790 = vmatpush1.msra.mxu0 0.0
    %1791 = vmatprep.mubr.f32.mxu0 0.0
    %1792 = vmatmul.mubr.f32.gmra.mrb[0].mxu0 %v1725
    %v1793 = vpop.f32.mrb[0].mxu0
    %v1794 = vadd.f32 %v114, %v1793
    %v1795 = vpop.f32.mrb[0].mxu0
    %1796 = vdwg.mxu0
    %v1797 = vtanh.pop %v1794
    %1798 = vrot.lane.b32.xlu0 %v1797, 96
    %v1799 = vpop.permute.xlu0 %1798
    %1800 = vrot.lane.b32.xlu0 %v1794, 64
    %v1801 = vpop.permute.xlu0 %1800
    %v1802 = vxor.u32 %v1801, 2147483648
    %v1803 = vmul.f32 %v1802, 1.442695
    %v1804 = vpow.pop %v1803
    %v1805 = vadd.f32 %v1804, 1.0
    %v1806 = vrcp.pop %v1805
    %v1807 = vmul.f32 1.0, %v1806
    %v1808 = vsub.f32 %v1799, %v1797
    %v1809 = vmul.f32 %v1807, %v1808
    %v1810 = vadd.f32 %v1797, %v1809
    %v1811 = vmul.f32 %v1810, %v126
    %1812 = vrot.lane.b32.xlu0 %v1811, 5
    %v1813 = vpop.permute.xlu0 %1812
    %v1814 = vadd.f32 %v1534, %v1813
    %1815 = vset.pattern.permute.xlu0 6
    %1816 = vperm.xlu0 %1815, %v134
    %v1817 = vpop.permute.xlu0 %1816
    %v1819 = vmul.f32 %v1817, %v132
    %v1821 = vsel %vm141, %v1629, 0
    %1823 = vmatprep.subr.mxu0 0.0
    %1824 = vmatpush1.msra.mxu0 %v83
    %1825 = vmatprep.subr.mxu0 0.0
    %1826 = vmatpush1.msra.mxu0 %v84
    %1827 = vmatprep.subr.mxu0 0.0
    %1828 = vmatpush1.msra.mxu0 %v85
    %1829 = vmatprep.subr.mxu0 0.0
    %1830 = vmatpush1.msra.mxu0 %v86
    %1831 = vmatprep.subr.mxu0 0.0
    %1832 = vmatpush1.msra.mxu0 0.0
    %1833 = vmatprep.subr.mxu0 0.0
    %1834 = vmatpush1.msra.mxu0 0.0
    %1835 = vmatprep.subr.mxu0 0.0
    %1836 = vmatpush1.msra.mxu0 0.0
    %1837 = vmatprep.subr.mxu0 0.0
    %1838 = vmatpush1.msra.mxu0 0.0
    %1839 = vmatprep.subr.mxu0 0.0
    %1840 = vmatpush1.msra.mxu0 0.0
    %1841 = vmatprep.subr.mxu0 0.0
    %1842 = vmatpush1.msra.mxu0 0.0
    %1843 = vmatprep.subr.mxu0 0.0
    %1844 = vmatpush1.msra.mxu0 0.0
    %1845 = vmatprep.subr.mxu0 0.0
    %1846 = vmatpush1.msra.mxu0 0.0
    %1847 = vmatprep.subr.mxu0 0.0
    %1848 = vmatpush1.msra.mxu0 0.0
    %1849 = vmatprep.subr.mxu0 0.0
    %1850 = vmatpush1.msra.mxu0 0.0
    %1851 = vmatprep.subr.mxu0 0.0
    %1852 = vmatpush1.msra.mxu0 0.0
    %1853 = vmatprep.subr.mxu0 0.0
    %1854 = vmatpush1.msra.mxu0 0.0
    %1855 = vmatprep.subr.mxu0 0.0
    %1856 = vmatpush1.msra.mxu0 0.0
    %1857 = vmatprep.subr.mxu0 0.0
    %1858 = vmatpush1.msra.mxu0 0.0
    %1859 = vmatprep.subr.mxu0 0.0
    %1860 = vmatpush1.msra.mxu0 0.0
    %1861 = vmatprep.subr.mxu0 0.0
    %1862 = vmatpush1.msra.mxu0 0.0
    %1863 = vmatprep.subr.mxu0 0.0
    %1864 = vmatpush1.msra.mxu0 0.0
    %1865 = vmatprep.subr.mxu0 0.0
    %1866 = vmatpush1.msra.mxu0 0.0
    %1867 = vmatprep.subr.mxu0 0.0
    %1868 = vmatpush1.msra.mxu0 0.0
    %1869 = vmatprep.subr.mxu0 0.0
    %1870 = vmatpush1.msra.mxu0 0.0
    %1871 = vmatprep.subr.mxu0 0.0
    %1872 = vmatpush1.msra.mxu0 0.0
    %1873 = vmatprep.subr.mxu0 0.0
    %1874 = vmatpush1.msra.mxu0 0.0
    %1875 = vmatprep.subr.mxu0 0.0
    %1876 = vmatpush1.msra.mxu0 0.0
    %1877 = vmatprep.subr.mxu0 0.0
    %1878 = vmatpush1.msra.mxu0 0.0
    %1879 = vmatprep.subr.mxu0 0.0
    %1880 = vmatpush1.msra.mxu0 0.0
    %1881 = vmatprep.subr.mxu0 0.0
    %1882 = vmatpush1.msra.mxu0 0.0
    %1883 = vmatprep.subr.mxu0 0.0
    %1884 = vmatpush1.msra.mxu0 0.0
    %1885 = vmatprep.subr.mxu0 0.0
    %1886 = vmatpush1.msra.mxu0 0.0
    %1887 = vmatprep.mubr.f32.mxu0 0.0
    %1888 = vmatmul.mubr.f32.gmra.mrb[0].mxu0 %v1821
    %v1889 = vpop.f32.mrb[0].mxu0
    %v1890 = vadd.f32 0.0, %v1889
    %v1891 = vpop.f32.mrb[0].mxu0
    %1892 = vdwg.mxu0
    %v1893 = vadd.f32 %v1819, %v1890
    %v1894 = vadd.f32 %v1893, %v100
    %v1895 = vtanh.pop %v1894
    %1896 = vrot.lane.b32.xlu0 %v1895, 96
    %v1897 = vpop.permute.xlu0 %1896
    %1898 = vrot.lane.b32.xlu0 %v1894, 64
    %v1899 = vpop.permute.xlu0 %1898
    %v1900 = vxor.u32 %v1899, 2147483648
    %v1901 = vmul.f32 %v1900, 1.442695
    %v1902 = vpow.pop %v1901
    %v1903 = vadd.f32 %v1902, 1.0
    %v1904 = vrcp.pop %v1903
    %v1905 = vmul.f32 1.0, %v1904
    %v1906 = vsub.f32 %v1897, %v1895
    %v1907 = vmul.f32 %v1905, %v1906
    %v1908 = vadd.f32 %v1895, %v1907
    %v1909 = vmul.f32 %v1908, %v120
    %1910 = vrot.lane.b32.xlu0 %v1720, 9
    %v1911 = vpop.permute.xlu0 %1910
    %v1912 = vadd.f32 %v1909, %v1911
    %v1914 = vsel %vm141, %v1912, 0
    %1916 = vmatprep.subr.mxu0 0.0
    %1917 = vmatpush1.msra.mxu0 %v87
    %1918 = vmatprep.subr.mxu0 0.0
    %1919 = vmatpush1.msra.mxu0 %v88
    %1920 = vmatprep.subr.mxu0 0.0
    %1921 = vmatpush1.msra.mxu0 %v89
    %1922 = vmatprep.subr.mxu0 0.0
    %1923 = vmatpush1.msra.mxu0 %v90
    %1924 = vmatprep.subr.mxu0 0.0
    %1925 = vmatpush1.msra.mxu0 0.0
    %1926 = vmatprep.subr.mxu0 0.0
    %1927 = vmatpush1.msra.mxu0 0.0
    %1928 = vmatprep.subr.mxu0 0.0
    %1929 = vmatpush1.msra.mxu0 0.0
    %1930 = vmatprep.subr.mxu0 0.0
    %1931 = vmatpush1.msra.mxu0 0.0
    %1932 = vmatprep.subr.mxu0 0.0
    %1933 = vmatpush1.msra.mxu0 0.0
    %1934 = vmatprep.subr.mxu0 0.0
    %1935 = vmatpush1.msra.mxu0 0.0
    %1936 = vmatprep.subr.mxu0 0.0
    %1937 = vmatpush1.msra.mxu0 0.0
    %1938 = vmatprep.subr.mxu0 0.0
    %1939 = vmatpush1.msra.mxu0 0.0
    %1940 = vmatprep.subr.mxu0 0.0
    %1941 = vmatpush1.msra.mxu0 0.0
    %1942 = vmatprep.subr.mxu0 0.0
    %1943 = vmatpush1.msra.mxu0 0.0
    %1944 = vmatprep.subr.mxu0 0.0
    %1945 = vmatpush1.msra.mxu0 0.0
    %1946 = vmatprep.subr.mxu0 0.0
    %1947 = vmatpush1.msra.mxu0 0.0
    %1948 = vmatprep.subr.mxu0 0.0
    %1949 = vmatpush1.msra.mxu0 0.0
    %1950 = vmatprep.subr.mxu0 0.0
    %1951 = vmatpush1.msra.mxu0 0.0
    %1952 = vmatprep.subr.mxu0 0.0
    %1953 = vmatpush1.msra.mxu0 0.0
    %1954 = vmatprep.subr.mxu0 0.0
    %1955 = vmatpush1.msra.mxu0 0.0
    %1956 = vmatprep.subr.mxu0 0.0
    %1957 = vmatpush1.msra.mxu0 0.0
    %1958 = vmatprep.subr.mxu0 0.0
    %1959 = vmatpush1.msra.mxu0 0.0
    %1960 = vmatprep.subr.mxu0 0.0
    %1961 = vmatpush1.msra.mxu0 0.0
    %1962 = vmatprep.subr.mxu0 0.0
    %1963 = vmatpush1.msra.mxu0 0.0
    %1964 = vmatprep.subr.mxu0 0.0
    %1965 = vmatpush1.msra.mxu0 0.0
    %1966 = vmatprep.subr.mxu0 0.0
    %1967 = vmatpush1.msra.mxu0 0.0
    %1968 = vmatprep.subr.mxu0 0.0
    %1969 = vmatpush1.msra.mxu0 0.0
    %1970 = vmatprep.subr.mxu0 0.0
    %1971 = vmatpush1.msra.mxu0 0.0
    %1972 = vmatprep.subr.mxu0 0.0
    %1973 = vmatpush1.msra.mxu0 0.0
    %1974 = vmatprep.subr.mxu0 0.0
    %1975 = vmatpush1.msra.mxu0 0.0
    %1976 = vmatprep.subr.mxu0 0.0
    %1977 = vmatpush1.msra.mxu0 0.0
    %1978 = vmatprep.subr.mxu0 0.0
    %1979 = vmatpush1.msra.mxu0 0.0
    %1980 = vmatprep.mubr.f32.mxu0 0.0
    %1981 = vmatmul.mubr.f32.gmra.mrb[0].mxu0 %v1914
    %v1982 = vpop.f32.mrb[0].mxu0
    %v1983 = vadd.f32 %v107, %v1982
    %v1984 = vpop.f32.mrb[0].mxu0
    %1985 = vdwg.mxu0
    %v1986 = vtanh.pop %v1983
    %1987 = vrot.lane.b32.xlu0 %v1986, 96
    %v1988 = vpop.permute.xlu0 %1987
    %1989 = vrot.lane.b32.xlu0 %v1983, 64
    %v1990 = vpop.permute.xlu0 %1989
    %v1991 = vxor.u32 %v1990, 2147483648
    %v1992 = vmul.f32 %v1991, 1.442695
    %v1993 = vpow.pop %v1992
    %v1994 = vadd.f32 %v1993, 1.0
    %v1995 = vrcp.pop %v1994
    %v1996 = vmul.f32 1.0, %v1995
    %v1997 = vsub.f32 %v1988, %v1986
    %v1998 = vmul.f32 %v1996, %v1997
    %v1999 = vadd.f32 %v1986, %v1998
    %v2000 = vmul.f32 %v1999, %v123
    %2001 = vrot.lane.b32.xlu0 %v1811, 6
    %v2002 = vpop.permute.xlu0 %2001
    %v2003 = vadd.f32 %v2000, %v2002
    %v2005 = vsel %vm141, %v2003, 0
    %2007 = vmatprep.subr.mxu0 0.0
    %2008 = vmatpush1.msra.mxu0 %v91
    %2009 = vmatprep.subr.mxu0 0.0
    %2010 = vmatpush1.msra.mxu0 %v92
    %2011 = vmatprep.subr.mxu0 0.0
    %2012 = vmatpush1.msra.mxu0 %v93
    %2013 = vmatprep.subr.mxu0 0.0
    %2014 = vmatpush1.msra.mxu0 %v94
    %2015 = vmatprep.subr.mxu0 0.0
    %2016 = vmatpush1.msra.mxu0 0.0
    %2017 = vmatprep.subr.mxu0 0.0
    %2018 = vmatpush1.msra.mxu0 0.0
    %2019 = vmatprep.subr.mxu0 0.0
    %2020 = vmatpush1.msra.mxu0 0.0
    %2021 = vmatprep.subr.mxu0 0.0
    %2022 = vmatpush1.msra.mxu0 0.0
    %2023 = vmatprep.subr.mxu0 0.0
    %2024 = vmatpush1.msra.mxu0 0.0
    %2025 = vmatprep.subr.mxu0 0.0
    %2026 = vmatpush1.msra.mxu0 0.0
    %2027 = vmatprep.subr.mxu0 0.0
    %2028 = vmatpush1.msra.mxu0 0.0
    %2029 = vmatprep.subr.mxu0 0.0
    %2030 = vmatpush1.msra.mxu0 0.0
    %2031 = vmatprep.subr.mxu0 0.0
    %2032 = vmatpush1.msra.mxu0 0.0
    %2033 = vmatprep.subr.mxu0 0.0
    %2034 = vmatpush1.msra.mxu0 0.0
    %2035 = vmatprep.subr.mxu0 0.0
    %2036 = vmatpush1.msra.mxu0 0.0
    %2037 = vmatprep.subr.mxu0 0.0
    %2038 = vmatpush1.msra.mxu0 0.0
    %2039 = vmatprep.subr.mxu0 0.0
    %2040 = vmatpush1.msra.mxu0 0.0
    %2041 = vmatprep.subr.mxu0 0.0
    %2042 = vmatpush1.msra.mxu0 0.0
    %2043 = vmatprep.subr.mxu0 0.0
    %2044 = vmatpush1.msra.mxu0 0.0
    %2045 = vmatprep.subr.mxu0 0.0
    %2046 = vmatpush1.msra.mxu0 0.0
    %2047 = vmatprep.subr.mxu0 0.0
    %2048 = vmatpush1.msra.mxu0 0.0
    %2049 = vmatprep.subr.mxu0 0.0
    %2050 = vmatpush1.msra.mxu0 0.0
    %2051 = vmatprep.subr.mxu0 0.0
    %2052 = vmatpush1.msra.mxu0 0.0
    %2053 = vmatprep.subr.mxu0 0.0
    %2054 = vmatpush1.msra.mxu0 0.0
    %2055 = vmatprep.subr.mxu0 0.0
    %2056 = vmatpush1.msra.mxu0 0.0
    %2057 = vmatprep.subr.mxu0 0.0
    %2058 = vmatpush1.msra.mxu0 0.0
    %2059 = vmatprep.subr.mxu0 0.0
    %2060 = vmatpush1.msra.mxu0 0.0
    %2061 = vmatprep.subr.mxu0 0.0
    %2062 = vmatpush1.msra.mxu0 0.0
    %2063 = vmatprep.subr.mxu0 0.0
    %2064 = vmatpush1.msra.mxu0 0.0
    %2065 = vmatprep.subr.mxu0 0.0
    %2066 = vmatpush1.msra.mxu0 0.0
    %2067 = vmatprep.subr.mxu0 0.0
    %2068 = vmatpush1.msra.mxu0 0.0
    %2069 = vmatprep.subr.mxu0 0.0
    %2070 = vmatpush1.msra.mxu0 0.0
    %2071 = vmatprep.mubr.f32.mxu0 0.0
    %2072 = vmatmul.mubr.f32.gmra.mrb[0].mxu0 %v2005
    %v2073 = vpop.f32.mrb[0].mxu0
    %v2074 = vadd.f32 %v114, %v2073
    %v2075 = vpop.f32.mrb[0].mxu0
    %2076 = vdwg.mxu0
    %v2077 = vtanh.pop %v2074
    %2078 = vrot.lane.b32.xlu0 %v2077, 96
    %v2079 = vpop.permute.xlu0 %2078
    %2080 = vrot.lane.b32.xlu0 %v2074, 64
    %v2081 = vpop.permute.xlu0 %2080
    %v2082 = vxor.u32 %v2081, 2147483648
    %v2083 = vmul.f32 %v2082, 1.442695
    %v2084 = vpow.pop %v2083
    %v2085 = vadd.f32 %v2084, 1.0
    %v2086 = vrcp.pop %v2085
    %v2087 = vmul.f32 1.0, %v2086
    %v2088 = vsub.f32 %v2079, %v2077
    %v2089 = vmul.f32 %v2087, %v2088
    %v2090 = vadd.f32 %v2077, %v2089
    %v2091 = vmul.f32 %v2090, %v126
    %2092 = vrot.lane.b32.xlu0 %v2091, 6
    %v2093 = vpop.permute.xlu0 %2092
    %v2094 = vadd.f32 %v1814, %v2093
    %2095 = vset.pattern.permute.xlu0 7
    %2096 = vperm.xlu0 %2095, %v134
    %v2097 = vpop.permute.xlu0 %2096
    %v2099 = vmul.f32 %v2097, %v132
    %v2101 = vsel %vm141, %v1909, 0
    %2103 = vmatprep.subr.mxu0 0.0
    %2104 = vmatpush1.msra.mxu0 %v83
    %2105 = vmatprep.subr.mxu0 0.0
    %2106 = vmatpush1.msra.mxu0 %v84
    %2107 = vmatprep.subr.mxu0 0.0
    %2108 = vmatpush1.msra.mxu0 %v85
    %2109 = vmatprep.subr.mxu0 0.0
    %2110 = vmatpush1.msra.mxu0 %v86
    %2111 = vmatprep.subr.mxu0 0.0
    %2112 = vmatpush1.msra.mxu0 0.0
    %2113 = vmatprep.subr.mxu0 0.0
    %2114 = vmatpush1.msra.mxu0 0.0
    %2115 = vmatprep.subr.mxu0 0.0
    %2116 = vmatpush1.msra.mxu0 0.0
    %2117 = vmatprep.subr.mxu0 0.0
    %2118 = vmatpush1.msra.mxu0 0.0
    %2119 = vmatprep.subr.mxu0 0.0
    %2120 = vmatpush1.msra.mxu0 0.0
    %2121 = vmatprep.subr.mxu0 0.0
    %2122 = vmatpush1.msra.mxu0 0.0
    %2123 = vmatprep.subr.mxu0 0.0
    %2124 = vmatpush1.msra.mxu0 0.0
    %2125 = vmatprep.subr.mxu0 0.0
    %2126 = vmatpush1.msra.mxu0 0.0
    %2127 = vmatprep.subr.mxu0 0.0
    %2128 = vmatpush1.msra.mxu0 0.0
    %2129 = vmatprep.subr.mxu0 0.0
    %2130 = vmatpush1.msra.mxu0 0.0
    %2131 = vmatprep.subr.mxu0 0.0
    %2132 = vmatpush1.msra.mxu0 0.0
    %2133 = vmatprep.subr.mxu0 0.0
    %2134 = vmatpush1.msra.mxu0 0.0
    %2135 = vmatprep.subr.mxu0 0.0
    %2136 = vmatpush1.msra.mxu0 0.0
    %2137 = vmatprep.subr.mxu0 0.0
    %2138 = vmatpush1.msra.mxu0 0.0
    %2139 = vmatprep.subr.mxu0 0.0
    %2140 = vmatpush1.msra.mxu0 0.0
    %2141 = vmatprep.subr.mxu0 0.0
    %2142 = vmatpush1.msra.mxu0 0.0
    %2143 = vmatprep.subr.mxu0 0.0
    %2144 = vmatpush1.msra.mxu0 0.0
    %2145 = vmatprep.subr.mxu0 0.0
    %2146 = vmatpush1.msra.mxu0 0.0
    %2147 = vmatprep.subr.mxu0 0.0
    %2148 = vmatpush1.msra.mxu0 0.0
    %2149 = vmatprep.subr.mxu0 0.0
    %2150 = vmatpush1.msra.mxu0 0.0
    %2151 = vmatprep.subr.mxu0 0.0
    %2152 = vmatpush1.msra.mxu0 0.0
    %2153 = vmatprep.subr.mxu0 0.0
    %2154 = vmatpush1.msra.mxu0 0.0
    %2155 = vmatprep.subr.mxu0 0.0
    %2156 = vmatpush1.msra.mxu0 0.0
    %2157 = vmatprep.subr.mxu0 0.0
    %2158 = vmatpush1.msra.mxu0 0.0
    %2159 = vmatprep.subr.mxu0 0.0
    %2160 = vmatpush1.msra.mxu0 0.0
    %2161 = vmatprep.subr.mxu0 0.0
    %2162 = vmatpush1.msra.mxu0 0.0
    %2163 = vmatprep.subr.mxu0 0.0
    %2164 = vmatpush1.msra.mxu0 0.0
    %2165 = vmatprep.subr.mxu0 0.0
    %2166 = vmatpush1.msra.mxu0 0.0
    %2167 = vmatprep.mubr.f32.mxu0 0.0
    %2168 = vmatmul.mubr.f32.gmra.mrb[0].mxu0 %v2101
    %v2169 = vpop.f32.mrb[0].mxu0
    %v2170 = vadd.f32 0.0, %v2169
    %v2171 = vpop.f32.mrb[0].mxu0
    %2172 = vdwg.mxu0
    %v2173 = vadd.f32 %v2099, %v2170
    %v2174 = vadd.f32 %v2173, %v100
    %v2175 = vtanh.pop %v2174
    %2176 = vrot.lane.b32.xlu0 %v2175, 96
    %v2177 = vpop.permute.xlu0 %2176
    %2178 = vrot.lane.b32.xlu0 %v2174, 64
    %v2179 = vpop.permute.xlu0 %2178
    %v2180 = vxor.u32 %v2179, 2147483648
    %v2181 = vmul.f32 %v2180, 1.442695
    %v2182 = vpow.pop %v2181
    %v2183 = vadd.f32 %v2182, 1.0
    %v2184 = vrcp.pop %v2183
    %v2185 = vmul.f32 1.0, %v2184
    %v2186 = vsub.f32 %v2177, %v2175
    %v2187 = vmul.f32 %v2185, %v2186
    %v2188 = vadd.f32 %v2175, %v2187
    %v2189 = vmul.f32 %v2188, %v120
    %2190 = vrot.lane.b32.xlu0 %v2000, 9
    %v2191 = vpop.permute.xlu0 %2190
    %v2192 = vadd.f32 %v2189, %v2191
    %v2194 = vsel %vm141, %v2192, 0
    %2196 = vmatprep.subr.mxu0 0.0
    %2197 = vmatpush1.msra.mxu0 %v87
    %2198 = vmatprep.subr.mxu0 0.0
    %2199 = vmatpush1.msra.mxu0 %v88
    %2200 = vmatprep.subr.mxu0 0.0
    %2201 = vmatpush1.msra.mxu0 %v89
    %2202 = vmatprep.subr.mxu0 0.0
    %2203 = vmatpush1.msra.mxu0 %v90
    %2204 = vmatprep.subr.mxu0 0.0
    %2205 = vmatpush1.msra.mxu0 0.0
    %2206 = vmatprep.subr.mxu0 0.0
    %2207 = vmatpush1.msra.mxu0 0.0
    %2208 = vmatprep.subr.mxu0 0.0
    %2209 = vmatpush1.msra.mxu0 0.0
    %2210 = vmatprep.subr.mxu0 0.0
    %2211 = vmatpush1.msra.mxu0 0.0
    %2212 = vmatprep.subr.mxu0 0.0
    %2213 = vmatpush1.msra.mxu0 0.0
    %2214 = vmatprep.subr.mxu0 0.0
    %2215 = vmatpush1.msra.mxu0 0.0
    %2216 = vmatprep.subr.mxu0 0.0
    %2217 = vmatpush1.msra.mxu0 0.0
    %2218 = vmatprep.subr.mxu0 0.0
    %2219 = vmatpush1.msra.mxu0 0.0
    %2220 = vmatprep.subr.mxu0 0.0
    %2221 = vmatpush1.msra.mxu0 0.0
    %2222 = vmatprep.subr.mxu0 0.0
    %2223 = vmatpush1.msra.mxu0 0.0
    %2224 = vmatprep.subr.mxu0 0.0
    %2225 = vmatpush1.msra.mxu0 0.0
    %2226 = vmatprep.subr.mxu0 0.0
    %2227 = vmatpush1.msra.mxu0 0.0
    %2228 = vmatprep.subr.mxu0 0.0
    %2229 = vmatpush1.msra.mxu0 0.0
    %2230 = vmatprep.subr.mxu0 0.0
    %2231 = vmatpush1.msra.mxu0 0.0
    %2232 = vmatprep.subr.mxu0 0.0
    %2233 = vmatpush1.msra.mxu0 0.0
    %2234 = vmatprep.subr.mxu0 0.0
    %2235 = vmatpush1.msra.mxu0 0.0
    %2236 = vmatprep.subr.mxu0 0.0
    %2237 = vmatpush1.msra.mxu0 0.0
    %2238 = vmatprep.subr.mxu0 0.0
    %2239 = vmatpush1.msra.mxu0 0.0
    %2240 = vmatprep.subr.mxu0 0.0
    %2241 = vmatpush1.msra.mxu0 0.0
    %2242 = vmatprep.subr.mxu0 0.0
    %2243 = vmatpush1.msra.mxu0 0.0
    %2244 = vmatprep.subr.mxu0 0.0
    %2245 = vmatpush1.msra.mxu0 0.0
    %2246 = vmatprep.subr.mxu0 0.0
    %2247 = vmatpush1.msra.mxu0 0.0
    %2248 = vmatprep.subr.mxu0 0.0
    %2249 = vmatpush1.msra.mxu0 0.0
    %2250 = vmatprep.subr.mxu0 0.0
    %2251 = vmatpush1.msra.mxu0 0.0
    %2252 = vmatprep.subr.mxu0 0.0
    %2253 = vmatpush1.msra.mxu0 0.0
    %2254 = vmatprep.subr.mxu0 0.0
    %2255 = vmatpush1.msra.mxu0 0.0
    %2256 = vmatprep.subr.mxu0 0.0
    %2257 = vmatpush1.msra.mxu0 0.0
    %2258 = vmatprep.subr.mxu0 0.0
    %2259 = vmatpush1.msra.mxu0 0.0
    %2260 = vmatprep.mubr.f32.mxu0 0.0
    %2261 = vmatmul.mubr.f32.gmra.mrb[0].mxu0 %v2194
    %v2262 = vpop.f32.mrb[0].mxu0
    %v2263 = vadd.f32 %v107, %v2262
    %v2264 = vpop.f32.mrb[0].mxu0
    %2265 = vdwg.mxu0
    %v2266 = vtanh.pop %v2263
    %2267 = vrot.lane.b32.xlu0 %v2266, 96
    %v2268 = vpop.permute.xlu0 %2267
    %2269 = vrot.lane.b32.xlu0 %v2263, 64
    %v2270 = vpop.permute.xlu0 %2269
    %v2271 = vxor.u32 %v2270, 2147483648
    %v2272 = vmul.f32 %v2271, 1.442695
    %v2273 = vpow.pop %v2272
    %v2274 = vadd.f32 %v2273, 1.0
    %v2275 = vrcp.pop %v2274
    %v2276 = vmul.f32 1.0, %v2275
    %v2277 = vsub.f32 %v2268, %v2266
    %v2278 = vmul.f32 %v2276, %v2277
    %v2279 = vadd.f32 %v2266, %v2278
    %v2280 = vmul.f32 %v2279, %v123
    %v2281 = vadd.f32 %v2280, %v2093
    %v2283 = vsel %vm141, %v2281, 0
    %2285 = vmatprep.subr.mxu0 0.0
    %2286 = vmatpush1.msra.mxu0 %v91
    %2287 = vmatprep.subr.mxu0 0.0
    %2288 = vmatpush1.msra.mxu0 %v92
    %2289 = vmatprep.subr.mxu0 0.0
    %2290 = vmatpush1.msra.mxu0 %v93
    %2291 = vmatprep.subr.mxu0 0.0
    %2292 = vmatpush1.msra.mxu0 %v94
    %2293 = vmatprep.subr.mxu0 0.0
    %2294 = vmatpush1.msra.mxu0 0.0
    %2295 = vmatprep.subr.mxu0 0.0
    %2296 = vmatpush1.msra.mxu0 0.0
    %2297 = vmatprep.subr.mxu0 0.0
    %2298 = vmatpush1.msra.mxu0 0.0
    %2299 = vmatprep.subr.mxu0 0.0
    %2300 = vmatpush1.msra.mxu0 0.0
    %2301 = vmatprep.subr.mxu0 0.0
    %2302 = vmatpush1.msra.mxu0 0.0
    %2303 = vmatprep.subr.mxu0 0.0
    %2304 = vmatpush1.msra.mxu0 0.0
    %2305 = vmatprep.subr.mxu0 0.0
    %2306 = vmatpush1.msra.mxu0 0.0
    %2307 = vmatprep.subr.mxu0 0.0
    %2308 = vmatpush1.msra.mxu0 0.0
    %2309 = vmatprep.subr.mxu0 0.0
    %2310 = vmatpush1.msra.mxu0 0.0
    %2311 = vmatprep.subr.mxu0 0.0
    %2312 = vmatpush1.msra.mxu0 0.0
    %2313 = vmatprep.subr.mxu0 0.0
    %2314 = vmatpush1.msra.mxu0 0.0
    %2315 = vmatprep.subr.mxu0 0.0
    %2316 = vmatpush1.msra.mxu0 0.0
    %2317 = vmatprep.subr.mxu0 0.0
    %2318 = vmatpush1.msra.mxu0 0.0
    %2319 = vmatprep.subr.mxu0 0.0
    %2320 = vmatpush1.msra.mxu0 0.0
    %2321 = vmatprep.subr.mxu0 0.0
    %2322 = vmatpush1.msra.mxu0 0.0
    %2323 = vmatprep.subr.mxu0 0.0
    %2324 = vmatpush1.msra.mxu0 0.0
    %2325 = vmatprep.subr.mxu0 0.0
    %2326 = vmatpush1.msra.mxu0 0.0
    %2327 = vmatprep.subr.mxu0 0.0
    %2328 = vmatpush1.msra.mxu0 0.0
    %2329 = vmatprep.subr.mxu0 0.0
    %2330 = vmatpush1.msra.mxu0 0.0
    %2331 = vmatprep.subr.mxu0 0.0
    %2332 = vmatpush1.msra.mxu0 0.0
    %2333 = vmatprep.subr.mxu0 0.0
    %2334 = vmatpush1.msra.mxu0 0.0
    %2335 = vmatprep.subr.mxu0 0.0
    %2336 = vmatpush1.msra.mxu0 0.0
    %2337 = vmatprep.subr.mxu0 0.0
    %2338 = vmatpush1.msra.mxu0 0.0
    %2339 = vmatprep.subr.mxu0 0.0
    %2340 = vmatpush1.msra.mxu0 0.0
    %2341 = vmatprep.subr.mxu0 0.0
    %2342 = vmatpush1.msra.mxu0 0.0
    %2343 = vmatprep.subr.mxu0 0.0
    %2344 = vmatpush1.msra.mxu0 0.0
    %2345 = vmatprep.subr.mxu0 0.0
    %2346 = vmatpush1.msra.mxu0 0.0
    %2347 = vmatprep.subr.mxu0 0.0
    %2348 = vmatpush1.msra.mxu0 0.0
    %2349 = vmatprep.mubr.f32.mxu0 0.0
    %2350 = vmatmul.mubr.f32.gmra.mrb[0].mxu0 %v2283
    %v2351 = vpop.f32.mrb[0].mxu0
    %v2352 = vadd.f32 %v114, %v2351
    %v2353 = vpop.f32.mrb[0].mxu0
    %2354 = vdwg.mxu0
    %v2355 = vtanh.pop %v2352
    %2356 = vrot.lane.b32.xlu0 %v2355, 96
    %v2357 = vpop.permute.xlu0 %2356
    %2358 = vrot.lane.b32.xlu0 %v2352, 64
    %v2359 = vpop.permute.xlu0 %2358
    %v2360 = vxor.u32 %v2359, 2147483648
    %v2361 = vmul.f32 %v2360, 1.442695
    %v2362 = vpow.pop %v2361
    %v2363 = vadd.f32 %v2362, 1.0
    %v2364 = vrcp.pop %v2363
    %v2365 = vmul.f32 1.0, %v2364
    %v2366 = vsub.f32 %v2357, %v2355
    %v2367 = vmul.f32 %v2365, %v2366
    %v2368 = vadd.f32 %v2355, %v2367
    %v2369 = vmul.f32 %v2368, %v126
    %2370 = vrot.lane.b32.xlu0 %v2369, 7
    %v2371 = vpop.permute.xlu0 %2370
    %v2372 = vadd.f32 %v2094, %v2371
    %2373 = vset.pattern.permute.xlu0 8
    %2374 = vperm.xlu0 %2373, %v134
    %v2375 = vpop.permute.xlu0 %2374
    %v2377 = vmul.f32 %v2375, %v132
    %v2379 = vsel %vm141, %v2189, 0
    %2381 = vmatprep.subr.mxu0 0.0
    %2382 = vmatpush1.msra.mxu0 %v83
    %2383 = vmatprep.subr.mxu0 0.0
    %2384 = vmatpush1.msra.mxu0 %v84
    %2385 = vmatprep.subr.mxu0 0.0
    %2386 = vmatpush1.msra.mxu0 %v85
    %2387 = vmatprep.subr.mxu0 0.0
    %2388 = vmatpush1.msra.mxu0 %v86
    %2389 = vmatprep.subr.mxu0 0.0
    %2390 = vmatpush1.msra.mxu0 0.0
    %2391 = vmatprep.subr.mxu0 0.0
    %2392 = vmatpush1.msra.mxu0 0.0
    %2393 = vmatprep.subr.mxu0 0.0
    %2394 = vmatpush1.msra.mxu0 0.0
    %2395 = vmatprep.subr.mxu0 0.0
    %2396 = vmatpush1.msra.mxu0 0.0
    %2397 = vmatprep.subr.mxu0 0.0
    %2398 = vmatpush1.msra.mxu0 0.0
    %2399 = vmatprep.subr.mxu0 0.0
    %2400 = vmatpush1.msra.mxu0 0.0
    %2401 = vmatprep.subr.mxu0 0.0
    %2402 = vmatpush1.msra.mxu0 0.0
    %2403 = vmatprep.subr.mxu0 0.0
    %2404 = vmatpush1.msra.mxu0 0.0
    %2405 = vmatprep.subr.mxu0 0.0
    %2406 = vmatpush1.msra.mxu0 0.0
    %2407 = vmatprep.subr.mxu0 0.0
    %2408 = vmatpush1.msra.mxu0 0.0
    %2409 = vmatprep.subr.mxu0 0.0
    %2410 = vmatpush1.msra.mxu0 0.0
    %2411 = vmatprep.subr.mxu0 0.0
    %2412 = vmatpush1.msra.mxu0 0.0
    %2413 = vmatprep.subr.mxu0 0.0
    %2414 = vmatpush1.msra.mxu0 0.0
    %2415 = vmatprep.subr.mxu0 0.0
    %2416 = vmatpush1.msra.mxu0 0.0
    %2417 = vmatprep.subr.mxu0 0.0
    %2418 = vmatpush1.msra.mxu0 0.0
    %2419 = vmatprep.subr.mxu0 0.0
    %2420 = vmatpush1.msra.mxu0 0.0
    %2421 = vmatprep.subr.mxu0 0.0
    %2422 = vmatpush1.msra.mxu0 0.0
    %2423 = vmatprep.subr.mxu0 0.0
    %2424 = vmatpush1.msra.mxu0 0.0
    %2425 = vmatprep.subr.mxu0 0.0
    %2426 = vmatpush1.msra.mxu0 0.0
    %2427 = vmatprep.subr.mxu0 0.0
    %2428 = vmatpush1.msra.mxu0 0.0
    %2429 = vmatprep.subr.mxu0 0.0
    %2430 = vmatpush1.msra.mxu0 0.0
    %2431 = vmatprep.subr.mxu0 0.0
    %2432 = vmatpush1.msra.mxu0 0.0
    %2433 = vmatprep.subr.mxu0 0.0
    %2434 = vmatpush1.msra.mxu0 0.0
    %2435 = vmatprep.subr.mxu0 0.0
    %2436 = vmatpush1.msra.mxu0 0.0
    %2437 = vmatprep.subr.mxu0 0.0
    %2438 = vmatpush1.msra.mxu0 0.0
    %2439 = vmatprep.subr.mxu0 0.0
    %2440 = vmatpush1.msra.mxu0 0.0
    %2441 = vmatprep.subr.mxu0 0.0
    %2442 = vmatpush1.msra.mxu0 0.0
    %2443 = vmatprep.subr.mxu0 0.0
    %2444 = vmatpush1.msra.mxu0 0.0
    %2445 = vmatprep.mubr.f32.mxu0 0.0
    %2446 = vmatmul.mubr.f32.gmra.mrb[0].mxu0 %v2379
    %v2447 = vpop.f32.mrb[0].mxu0
    %v2448 = vadd.f32 0.0, %v2447
    %v2449 = vpop.f32.mrb[0].mxu0
    %2450 = vdwg.mxu0
    %v2451 = vadd.f32 %v2377, %v2448
    %v2452 = vadd.f32 %v2451, %v100
    %v2453 = vtanh.pop %v2452
    %2454 = vrot.lane.b32.xlu0 %v2453, 96
    %v2455 = vpop.permute.xlu0 %2454
    %2456 = vrot.lane.b32.xlu0 %v2452, 64
    %v2457 = vpop.permute.xlu0 %2456
    %v2458 = vxor.u32 %v2457, 2147483648
    %v2459 = vmul.f32 %v2458, 1.442695
    %v2460 = vpow.pop %v2459
    %v2461 = vadd.f32 %v2460, 1.0
    %v2462 = vrcp.pop %v2461
    %v2463 = vmul.f32 1.0, %v2462
    %v2464 = vsub.f32 %v2455, %v2453
    %v2465 = vmul.f32 %v2463, %v2464
    %v2466 = vadd.f32 %v2453, %v2465
    %v2467 = vmul.f32 %v2466, %v120
    %2468 = vrot.lane.b32.xlu0 %v2280, 9
    %v2469 = vpop.permute.xlu0 %2468
    %v2470 = vadd.f32 %v2467, %v2469
    %v2472 = vsel %vm141, %v2470, 0
    %2474 = vmatprep.subr.mxu0 0.0
    %2475 = vmatpush1.msra.mxu0 %v87
    %2476 = vmatprep.subr.mxu0 0.0
    %2477 = vmatpush1.msra.mxu0 %v88
    %2478 = vmatprep.subr.mxu0 0.0
    %2479 = vmatpush1.msra.mxu0 %v89
    %2480 = vmatprep.subr.mxu0 0.0
    %2481 = vmatpush1.msra.mxu0 %v90
    %2482 = vmatprep.subr.mxu0 0.0
    %2483 = vmatpush1.msra.mxu0 0.0
    %2484 = vmatprep.subr.mxu0 0.0
    %2485 = vmatpush1.msra.mxu0 0.0
    %2486 = vmatprep.subr.mxu0 0.0
    %2487 = vmatpush1.msra.mxu0 0.0
    %2488 = vmatprep.subr.mxu0 0.0
    %2489 = vmatpush1.msra.mxu0 0.0
    %2490 = vmatprep.subr.mxu0 0.0
    %2491 = vmatpush1.msra.mxu0 0.0
    %2492 = vmatprep.subr.mxu0 0.0
    %2493 = vmatpush1.msra.mxu0 0.0
    %2494 = vmatprep.subr.mxu0 0.0
    %2495 = vmatpush1.msra.mxu0 0.0
    %2496 = vmatprep.subr.mxu0 0.0
    %2497 = vmatpush1.msra.mxu0 0.0
    %2498 = vmatprep.subr.mxu0 0.0
    %2499 = vmatpush1.msra.mxu0 0.0
    %2500 = vmatprep.subr.mxu0 0.0
    %2501 = vmatpush1.msra.mxu0 0.0
    %2502 = vmatprep.subr.mxu0 0.0
    %2503 = vmatpush1.msra.mxu0 0.0
    %2504 = vmatprep.subr.mxu0 0.0
    %2505 = vmatpush1.msra.mxu0 0.0
    %2506 = vmatprep.subr.mxu0 0.0
    %2507 = vmatpush1.msra.mxu0 0.0
    %2508 = vmatprep.subr.mxu0 0.0
    %2509 = vmatpush1.msra.mxu0 0.0
    %2510 = vmatprep.subr.mxu0 0.0
    %2511 = vmatpush1.msra.mxu0 0.0
    %2512 = vmatprep.subr.mxu0 0.0
    %2513 = vmatpush1.msra.mxu0 0.0
    %2514 = vmatprep.subr.mxu0 0.0
    %2515 = vmatpush1.msra.mxu0 0.0
    %2516 = vmatprep.subr.mxu0 0.0
    %2517 = vmatpush1.msra.mxu0 0.0
    %2518 = vmatprep.subr.mxu0 0.0
    %2519 = vmatpush1.msra.mxu0 0.0
    %2520 = vmatprep.subr.mxu0 0.0
    %2521 = vmatpush1.msra.mxu0 0.0
    %2522 = vmatprep.subr.mxu0 0.0
    %2523 = vmatpush1.msra.mxu0 0.0
    %2524 = vmatprep.subr.mxu0 0.0
    %2525 = vmatpush1.msra.mxu0 0.0
    %2526 = vmatprep.subr.mxu0 0.0
    %2527 = vmatpush1.msra.mxu0 0.0
    %2528 = vmatprep.subr.mxu0 0.0
    %2529 = vmatpush1.msra.mxu0 0.0
    %2530 = vmatprep.subr.mxu0 0.0
    %2531 = vmatpush1.msra.mxu0 0.0
    %2532 = vmatprep.subr.mxu0 0.0
    %2533 = vmatpush1.msra.mxu0 0.0
    %2534 = vmatprep.subr.mxu0 0.0
    %2535 = vmatpush1.msra.mxu0 0.0
    %2536 = vmatprep.subr.mxu0 0.0
    %2537 = vmatpush1.msra.mxu0 0.0
    %2538 = vmatprep.mubr.f32.mxu0 0.0
    %2539 = vmatmul.mubr.f32.gmra.mrb[0].mxu0 %v2472
    %v2540 = vpop.f32.mrb[0].mxu0
    %v2541 = vadd.f32 %v107, %v2540
    %v2542 = vpop.f32.mrb[0].mxu0
    %2543 = vdwg.mxu0
    %v2544 = vtanh.pop %v2541
    %2545 = vrot.lane.b32.xlu0 %v2544, 96
    %v2546 = vpop.permute.xlu0 %2545
    %2547 = vrot.lane.b32.xlu0 %v2541, 64
    %v2548 = vpop.permute.xlu0 %2547
    %v2549 = vxor.u32 %v2548, 2147483648
    %v2550 = vmul.f32 %v2549, 1.442695
    %v2551 = vpow.pop %v2550
    %v2552 = vadd.f32 %v2551, 1.0
    %v2553 = vrcp.pop %v2552
    %v2554 = vmul.f32 1.0, %v2553
    %v2555 = vsub.f32 %v2546, %v2544
    %v2556 = vmul.f32 %v2554, %v2555
    %v2557 = vadd.f32 %v2544, %v2556
    %v2558 = vmul.f32 %v2557, %v123
    %2559 = vrot.lane.b32.xlu0 %v2369, 6
    %v2560 = vpop.permute.xlu0 %2559
    %v2561 = vadd.f32 %v2558, %v2560
    %v2563 = vsel %vm141, %v2561, 0
    %2565 = vmatprep.subr.mxu0 0.0
    %2566 = vmatpush1.msra.mxu0 %v91
    %2567 = vmatprep.subr.mxu0 0.0
    %2568 = vmatpush1.msra.mxu0 %v92
    %2569 = vmatprep.subr.mxu0 0.0
    %2570 = vmatpush1.msra.mxu0 %v93
    %2571 = vmatprep.subr.mxu0 0.0
    %2572 = vmatpush1.msra.mxu0 %v94
    %2573 = vmatprep.subr.mxu0 0.0
    %2574 = vmatpush1.msra.mxu0 0.0
    %2575 = vmatprep.subr.mxu0 0.0
    %2576 = vmatpush1.msra.mxu0 0.0
    %2577 = vmatprep.subr.mxu0 0.0
    %2578 = vmatpush1.msra.mxu0 0.0
    %2579 = vmatprep.subr.mxu0 0.0
    %2580 = vmatpush1.msra.mxu0 0.0
    %2581 = vmatprep.subr.mxu0 0.0
    %2582 = vmatpush1.msra.mxu0 0.0
    %2583 = vmatprep.subr.mxu0 0.0
    %2584 = vmatpush1.msra.mxu0 0.0
    %2585 = vmatprep.subr.mxu0 0.0
    %2586 = vmatpush1.msra.mxu0 0.0
    %2587 = vmatprep.subr.mxu0 0.0
    %2588 = vmatpush1.msra.mxu0 0.0
    %2589 = vmatprep.subr.mxu0 0.0
    %2590 = vmatpush1.msra.mxu0 0.0
    %2591 = vmatprep.subr.mxu0 0.0
    %2592 = vmatpush1.msra.mxu0 0.0
    %2593 = vmatprep.subr.mxu0 0.0
    %2594 = vmatpush1.msra.mxu0 0.0
    %2595 = vmatprep.subr.mxu0 0.0
    %2596 = vmatpush1.msra.mxu0 0.0
    %2597 = vmatprep.subr.mxu0 0.0
    %2598 = vmatpush1.msra.mxu0 0.0
    %2599 = vmatprep.subr.mxu0 0.0
    %2600 = vmatpush1.msra.mxu0 0.0
    %2601 = vmatprep.subr.mxu0 0.0
    %2602 = vmatpush1.msra.mxu0 0.0
    %2603 = vmatprep.subr.mxu0 0.0
    %2604 = vmatpush1.msra.mxu0 0.0
    %2605 = vmatprep.subr.mxu0 0.0
    %2606 = vmatpush1.msra.mxu0 0.0
    %2607 = vmatprep.subr.mxu0 0.0
    %2608 = vmatpush1.msra.mxu0 0.0
    %2609 = vmatprep.subr.mxu0 0.0
    %2610 = vmatpush1.msra.mxu0 0.0
    %2611 = vmatprep.subr.mxu0 0.0
    %2612 = vmatpush1.msra.mxu0 0.0
    %2613 = vmatprep.subr.mxu0 0.0
    %2614 = vmatpush1.msra.mxu0 0.0
    %2615 = vmatprep.subr.mxu0 0.0
    %2616 = vmatpush1.msra.mxu0 0.0
    %2617 = vmatprep.subr.mxu0 0.0
    %2618 = vmatpush1.msra.mxu0 0.0
    %2619 = vmatprep.subr.mxu0 0.0
    %2620 = vmatpush1.msra.mxu0 0.0
    %2621 = vmatprep.subr.mxu0 0.0
    %2622 = vmatpush1.msra.mxu0 0.0
    %2623 = vmatprep.subr.mxu0 0.0
    %2624 = vmatpush1.msra.mxu0 0.0
    %2625 = vmatprep.subr.mxu0 0.0
    %2626 = vmatpush1.msra.mxu0 0.0
    %2627 = vmatprep.subr.mxu0 0.0
    %2628 = vmatpush1.msra.mxu0 0.0
    %2629 = vmatprep.mubr.f32.mxu0 0.0
    %2630 = vmatmul.mubr.f32.gmra.mrb[0].mxu0 %v2563
    %v2631 = vpop.f32.mrb[0].mxu0
    %v2632 = vadd.f32 %v114, %v2631
    %v2633 = vpop.f32.mrb[0].mxu0
    %2634 = vdwg.mxu0
    %v2635 = vtanh.pop %v2632
    %2636 = vrot.lane.b32.xlu0 %v2635, 96
    %v2637 = vpop.permute.xlu0 %2636
    %2638 = vrot.lane.b32.xlu0 %v2632, 64
    %v2639 = vpop.permute.xlu0 %2638
    %v2640 = vxor.u32 %v2639, 2147483648
    %v2641 = vmul.f32 %v2640, 1.442695
    %v2642 = vpow.pop %v2641
    %v2643 = vadd.f32 %v2642, 1.0
    %v2644 = vrcp.pop %v2643
    %v2645 = vmul.f32 1.0, %v2644
    %v2646 = vsub.f32 %v2637, %v2635
    %v2647 = vmul.f32 %v2645, %v2646
    %v2648 = vadd.f32 %v2635, %v2647
    %v2649 = vmul.f32 %v2648, %v126
    %2650 = vrot.lane.b32.xlu0 %v2649, 8
    %v2651 = vpop.permute.xlu0 %2650
    %v2652 = vadd.f32 %v2372, %v2651
    %2653 = vset.pattern.permute.xlu0 9
    %2654 = vperm.xlu0 %2653, %v134
    %v2655 = vpop.permute.xlu0 %2654
    %v2657 = vmul.f32 %v2655, %v132
    %v2659 = vsel %vm141, %v2467, 0
    %2661 = vmatprep.subr.mxu0 0.0
    %2662 = vmatpush1.msra.mxu0 %v83
    %2663 = vmatprep.subr.mxu0 0.0
    %2664 = vmatpush1.msra.mxu0 %v84
    %2665 = vmatprep.subr.mxu0 0.0
    %2666 = vmatpush1.msra.mxu0 %v85
    %2667 = vmatprep.subr.mxu0 0.0
    %2668 = vmatpush1.msra.mxu0 %v86
    %2669 = vmatprep.subr.mxu0 0.0
    %2670 = vmatpush1.msra.mxu0 0.0
    %2671 = vmatprep.subr.mxu0 0.0
    %2672 = vmatpush1.msra.mxu0 0.0
    %2673 = vmatprep.subr.mxu0 0.0
    %2674 = vmatpush1.msra.mxu0 0.0
    %2675 = vmatprep.subr.mxu0 0.0
    %2676 = vmatpush1.msra.mxu0 0.0
    %2677 = vmatprep.subr.mxu0 0.0
    %2678 = vmatpush1.msra.mxu0 0.0
    %2679 = vmatprep.subr.mxu0 0.0
    %2680 = vmatpush1.msra.mxu0 0.0
    %2681 = vmatprep.subr.mxu0 0.0
    %2682 = vmatpush1.msra.mxu0 0.0
    %2683 = vmatprep.subr.mxu0 0.0
    %2684 = vmatpush1.msra.mxu0 0.0
    %2685 = vmatprep.subr.mxu0 0.0
    %2686 = vmatpush1.msra.mxu0 0.0
    %2687 = vmatprep.subr.mxu0 0.0
    %2688 = vmatpush1.msra.mxu0 0.0
    %2689 = vmatprep.subr.mxu0 0.0
    %2690 = vmatpush1.msra.mxu0 0.0
    %2691 = vmatprep.subr.mxu0 0.0
    %2692 = vmatpush1.msra.mxu0 0.0
    %2693 = vmatprep.subr.mxu0 0.0
    %2694 = vmatpush1.msra.mxu0 0.0
    %2695 = vmatprep.subr.mxu0 0.0
    %2696 = vmatpush1.msra.mxu0 0.0
    %2697 = vmatprep.subr.mxu0 0.0
    %2698 = vmatpush1.msra.mxu0 0.0
    %2699 = vmatprep.subr.mxu0 0.0
    %2700 = vmatpush1.msra.mxu0 0.0
    %2701 = vmatprep.subr.mxu0 0.0
    %2702 = vmatpush1.msra.mxu0 0.0
    %2703 = vmatprep.subr.mxu0 0.0
    %2704 = vmatpush1.msra.mxu0 0.0
    %2705 = vmatprep.subr.mxu0 0.0
    %2706 = vmatpush1.msra.mxu0 0.0
    %2707 = vmatprep.subr.mxu0 0.0
    %2708 = vmatpush1.msra.mxu0 0.0
    %2709 = vmatprep.subr.mxu0 0.0
    %2710 = vmatpush1.msra.mxu0 0.0
    %2711 = vmatprep.subr.mxu0 0.0
    %2712 = vmatpush1.msra.mxu0 0.0
    %2713 = vmatprep.subr.mxu0 0.0
    %2714 = vmatpush1.msra.mxu0 0.0
    %2715 = vmatprep.subr.mxu0 0.0
    %2716 = vmatpush1.msra.mxu0 0.0
    %2717 = vmatprep.subr.mxu0 0.0
    %2718 = vmatpush1.msra.mxu0 0.0
    %2719 = vmatprep.subr.mxu0 0.0
    %2720 = vmatpush1.msra.mxu0 0.0
    %2721 = vmatprep.subr.mxu0 0.0
    %2722 = vmatpush1.msra.mxu0 0.0
    %2723 = vmatprep.subr.mxu0 0.0
    %2724 = vmatpush1.msra.mxu0 0.0
    %2725 = vmatprep.mubr.f32.mxu0 0.0
    %2726 = vmatmul.mubr.f32.gmra.mrb[0].mxu0 %v2659
    %v2727 = vpop.f32.mrb[0].mxu0
    %v2728 = vadd.f32 0.0, %v2727
    %v2729 = vpop.f32.mrb[0].mxu0
    %2730 = vdwg.mxu0
    %v2731 = vadd.f32 %v2657, %v2728
    %v2732 = vadd.f32 %v2731, %v100
    %v2733 = vtanh.pop %v2732
    %2734 = vrot.lane.b32.xlu0 %v2733, 96
    %v2735 = vpop.permute.xlu0 %2734
    %2736 = vrot.lane.b32.xlu0 %v2732, 64
    %v2737 = vpop.permute.xlu0 %2736
    %v2738 = vxor.u32 %v2737, 2147483648
    %v2739 = vmul.f32 %v2738, 1.442695
    %v2740 = vpow.pop %v2739
    %v2741 = vadd.f32 %v2740, 1.0
    %v2742 = vrcp.pop %v2741
    %v2743 = vmul.f32 1.0, %v2742
    %v2744 = vsub.f32 %v2735, %v2733
    %v2745 = vmul.f32 %v2743, %v2744
    %v2746 = vadd.f32 %v2733, %v2745
    %v2747 = vmul.f32 %v2746, %v120
    %2748 = vrot.lane.b32.xlu0 %v2558, 9
    %v2749 = vpop.permute.xlu0 %2748
    %v2750 = vadd.f32 %v2747, %v2749
    %v2752 = vsel %vm141, %v2750, 0
    %2754 = vmatprep.subr.mxu0 0.0
    %2755 = vmatpush1.msra.mxu0 %v87
    %2756 = vmatprep.subr.mxu0 0.0
    %2757 = vmatpush1.msra.mxu0 %v88
    %2758 = vmatprep.subr.mxu0 0.0
    %2759 = vmatpush1.msra.mxu0 %v89
    %2760 = vmatprep.subr.mxu0 0.0
    %2761 = vmatpush1.msra.mxu0 %v90
    %2762 = vmatprep.subr.mxu0 0.0
    %2763 = vmatpush1.msra.mxu0 0.0
    %2764 = vmatprep.subr.mxu0 0.0
    %2765 = vmatpush1.msra.mxu0 0.0
    %2766 = vmatprep.subr.mxu0 0.0
    %2767 = vmatpush1.msra.mxu0 0.0
    %2768 = vmatprep.subr.mxu0 0.0
    %2769 = vmatpush1.msra.mxu0 0.0
    %2770 = vmatprep.subr.mxu0 0.0
    %2771 = vmatpush1.msra.mxu0 0.0
    %2772 = vmatprep.subr.mxu0 0.0
    %2773 = vmatpush1.msra.mxu0 0.0
    %2774 = vmatprep.subr.mxu0 0.0
    %2775 = vmatpush1.msra.mxu0 0.0
    %2776 = vmatprep.subr.mxu0 0.0
    %2777 = vmatpush1.msra.mxu0 0.0
    %2778 = vmatprep.subr.mxu0 0.0
    %2779 = vmatpush1.msra.mxu0 0.0
    %2780 = vmatprep.subr.mxu0 0.0
    %2781 = vmatpush1.msra.mxu0 0.0
    %2782 = vmatprep.subr.mxu0 0.0
    %2783 = vmatpush1.msra.mxu0 0.0
    %2784 = vmatprep.subr.mxu0 0.0
    %2785 = vmatpush1.msra.mxu0 0.0
    %2786 = vmatprep.subr.mxu0 0.0
    %2787 = vmatpush1.msra.mxu0 0.0
    %2788 = vmatprep.subr.mxu0 0.0
    %2789 = vmatpush1.msra.mxu0 0.0
    %2790 = vmatprep.subr.mxu0 0.0
    %2791 = vmatpush1.msra.mxu0 0.0
    %2792 = vmatprep.subr.mxu0 0.0
    %2793 = vmatpush1.msra.mxu0 0.0
    %2794 = vmatprep.subr.mxu0 0.0
    %2795 = vmatpush1.msra.mxu0 0.0
    %2796 = vmatprep.subr.mxu0 0.0
    %2797 = vmatpush1.msra.mxu0 0.0
    %2798 = vmatprep.subr.mxu0 0.0
    %2799 = vmatpush1.msra.mxu0 0.0
    %2800 = vmatprep.subr.mxu0 0.0
    %2801 = vmatpush1.msra.mxu0 0.0
    %2802 = vmatprep.subr.mxu0 0.0
    %2803 = vmatpush1.msra.mxu0 0.0
    %2804 = vmatprep.subr.mxu0 0.0
    %2805 = vmatpush1.msra.mxu0 0.0
    %2806 = vmatprep.subr.mxu0 0.0
    %2807 = vmatpush1.msra.mxu0 0.0
    %2808 = vmatprep.subr.mxu0 0.0
    %2809 = vmatpush1.msra.mxu0 0.0
    %2810 = vmatprep.subr.mxu0 0.0
    %2811 = vmatpush1.msra.mxu0 0.0
    %2812 = vmatprep.subr.mxu0 0.0
    %2813 = vmatpush1.msra.mxu0 0.0
    %2814 = vmatprep.subr.mxu0 0.0
    %2815 = vmatpush1.msra.mxu0 0.0
    %2816 = vmatprep.subr.mxu0 0.0
    %2817 = vmatpush1.msra.mxu0 0.0
    %2818 = vmatprep.mubr.f32.mxu0 0.0
    %2819 = vmatmul.mubr.f32.gmra.mrb[0].mxu0 %v2752
    %v2820 = vpop.f32.mrb[0].mxu0
    %v2821 = vadd.f32 %v107, %v2820
    %v2822 = vpop.f32.mrb[0].mxu0
    %2823 = vdwg.mxu0
    %v2824 = vtanh.pop %v2821
    %2825 = vrot.lane.b32.xlu0 %v2824, 96
    %v2826 = vpop.permute.xlu0 %2825
    %2827 = vrot.lane.b32.xlu0 %v2821, 64
    %v2828 = vpop.permute.xlu0 %2827
    %v2829 = vxor.u32 %v2828, 2147483648
    %v2830 = vmul.f32 %v2829, 1.442695
    %v2831 = vpow.pop %v2830
    %v2832 = vadd.f32 %v2831, 1.0
    %v2833 = vrcp.pop %v2832
    %v2834 = vmul.f32 1.0, %v2833
    %v2835 = vsub.f32 %v2826, %v2824
    %v2836 = vmul.f32 %v2834, %v2835
    %v2837 = vadd.f32 %v2824, %v2836
    %v2838 = vmul.f32 %v2837, %v123
    %2839 = vrot.lane.b32.xlu0 %v2649, 6
    %v2840 = vpop.permute.xlu0 %2839
    %v2841 = vadd.f32 %v2838, %v2840
    %v2843 = vsel %vm141, %v2841, 0
    %2845 = vmatprep.subr.mxu0 0.0
    %2846 = vmatpush1.msra.mxu0 %v91
    %2847 = vmatprep.subr.mxu0 0.0
    %2848 = vmatpush1.msra.mxu0 %v92
    %2849 = vmatprep.subr.mxu0 0.0
    %2850 = vmatpush1.msra.mxu0 %v93
    %2851 = vmatprep.subr.mxu0 0.0
    %2852 = vmatpush1.msra.mxu0 %v94
    %2853 = vmatprep.subr.mxu0 0.0
    %2854 = vmatpush1.msra.mxu0 0.0
    %2855 = vmatprep.subr.mxu0 0.0
    %2856 = vmatpush1.msra.mxu0 0.0
    %2857 = vmatprep.subr.mxu0 0.0
    %2858 = vmatpush1.msra.mxu0 0.0
    %2859 = vmatprep.subr.mxu0 0.0
    %2860 = vmatpush1.msra.mxu0 0.0
    %2861 = vmatprep.subr.mxu0 0.0
    %2862 = vmatpush1.msra.mxu0 0.0
    %2863 = vmatprep.subr.mxu0 0.0
    %2864 = vmatpush1.msra.mxu0 0.0
    %2865 = vmatprep.subr.mxu0 0.0
    %2866 = vmatpush1.msra.mxu0 0.0
    %2867 = vmatprep.subr.mxu0 0.0
    %2868 = vmatpush1.msra.mxu0 0.0
    %2869 = vmatprep.subr.mxu0 0.0
    %2870 = vmatpush1.msra.mxu0 0.0
    %2871 = vmatprep.subr.mxu0 0.0
    %2872 = vmatpush1.msra.mxu0 0.0
    %2873 = vmatprep.subr.mxu0 0.0
    %2874 = vmatpush1.msra.mxu0 0.0
    %2875 = vmatprep.subr.mxu0 0.0
    %2876 = vmatpush1.msra.mxu0 0.0
    %2877 = vmatprep.subr.mxu0 0.0
    %2878 = vmatpush1.msra.mxu0 0.0
    %2879 = vmatprep.subr.mxu0 0.0
    %2880 = vmatpush1.msra.mxu0 0.0
    %2881 = vmatprep.subr.mxu0 0.0
    %2882 = vmatpush1.msra.mxu0 0.0
    %2883 = vmatprep.subr.mxu0 0.0
    %2884 = vmatpush1.msra.mxu0 0.0
    %2885 = vmatprep.subr.mxu0 0.0
    %2886 = vmatpush1.msra.mxu0 0.0
    %2887 = vmatprep.subr.mxu0 0.0
    %2888 = vmatpush1.msra.mxu0 0.0
    %2889 = vmatprep.subr.mxu0 0.0
    %2890 = vmatpush1.msra.mxu0 0.0
    %2891 = vmatprep.subr.mxu0 0.0
    %2892 = vmatpush1.msra.mxu0 0.0
    %2893 = vmatprep.subr.mxu0 0.0
    %2894 = vmatpush1.msra.mxu0 0.0
    %2895 = vmatprep.subr.mxu0 0.0
    %2896 = vmatpush1.msra.mxu0 0.0
    %2897 = vmatprep.subr.mxu0 0.0
    %2898 = vmatpush1.msra.mxu0 0.0
    %2899 = vmatprep.subr.mxu0 0.0
    %2900 = vmatpush1.msra.mxu0 0.0
    %2901 = vmatprep.subr.mxu0 0.0
    %2902 = vmatpush1.msra.mxu0 0.0
    %2903 = vmatprep.subr.mxu0 0.0
    %2904 = vmatpush1.msra.mxu0 0.0
    %2905 = vmatprep.subr.mxu0 0.0
    %2906 = vmatpush1.msra.mxu0 0.0
    %2907 = vmatprep.subr.mxu0 0.0
    %2908 = vmatpush1.msra.mxu0 0.0
    %2909 = vmatprep.mubr.f32.mxu0 0.0
    %2910 = vmatmul.mubr.f32.gmra.mrb[0].mxu0 %v2843
    %v2911 = vpop.f32.mrb[0].mxu0
    %v2912 = vadd.f32 %v114, %v2911
    %v2913 = vpop.f32.mrb[0].mxu0
    %2914 = vdwg.mxu0
    %v2915 = vtanh.pop %v2912
    %2916 = vrot.lane.b32.xlu0 %v2915, 96
    %v2917 = vpop.permute.xlu0 %2916
    %2918 = vrot.lane.b32.xlu0 %v2912, 64
    %v2919 = vpop.permute.xlu0 %2918
    %v2920 = vxor.u32 %v2919, 2147483648
    %v2921 = vmul.f32 %v2920, 1.442695
    %v2922 = vpow.pop %v2921
    %v2923 = vadd.f32 %v2922, 1.0
    %v2924 = vrcp.pop %v2923
    %v2925 = vmul.f32 1.0, %v2924
    %v2926 = vsub.f32 %v2917, %v2915
    %v2927 = vmul.f32 %v2925, %v2926
    %v2928 = vadd.f32 %v2915, %v2927
    %v2929 = vmul.f32 %v2928, %v126
    %2930 = vrot.lane.b32.xlu0 %v2929, 9
    %v2931 = vpop.permute.xlu0 %2930
    %v2932 = vadd.f32 %v2652, %v2931
    %2933 = vset.pattern.permute.xlu0 10
    %2934 = vperm.xlu0 %2933, %v134
    %v2935 = vpop.permute.xlu0 %2934
    %v2937 = vmul.f32 %v2935, %v132
    %v2939 = vsel %vm141, %v2747, 0
    %2941 = vmatprep.subr.mxu0 0.0
    %2942 = vmatpush1.msra.mxu0 %v83
    %2943 = vmatprep.subr.mxu0 0.0
    %2944 = vmatpush1.msra.mxu0 %v84
    %2945 = vmatprep.subr.mxu0 0.0
    %2946 = vmatpush1.msra.mxu0 %v85
    %2947 = vmatprep.subr.mxu0 0.0
    %2948 = vmatpush1.msra.mxu0 %v86
    %2949 = vmatprep.subr.mxu0 0.0
    %2950 = vmatpush1.msra.mxu0 0.0
    %2951 = vmatprep.subr.mxu0 0.0
    %2952 = vmatpush1.msra.mxu0 0.0
    %2953 = vmatprep.subr.mxu0 0.0
    %2954 = vmatpush1.msra.mxu0 0.0
    %2955 = vmatprep.subr.mxu0 0.0
    %2956 = vmatpush1.msra.mxu0 0.0
    %2957 = vmatprep.subr.mxu0 0.0
    %2958 = vmatpush1.msra.mxu0 0.0
    %2959 = vmatprep.subr.mxu0 0.0
    %2960 = vmatpush1.msra.mxu0 0.0
    %2961 = vmatprep.subr.mxu0 0.0
    %2962 = vmatpush1.msra.mxu0 0.0
    %2963 = vmatprep.subr.mxu0 0.0
    %2964 = vmatpush1.msra.mxu0 0.0
    %2965 = vmatprep.subr.mxu0 0.0
    %2966 = vmatpush1.msra.mxu0 0.0
    %2967 = vmatprep.subr.mxu0 0.0
    %2968 = vmatpush1.msra.mxu0 0.0
    %2969 = vmatprep.subr.mxu0 0.0
    %2970 = vmatpush1.msra.mxu0 0.0
    %2971 = vmatprep.subr.mxu0 0.0
    %2972 = vmatpush1.msra.mxu0 0.0
    %2973 = vmatprep.subr.mxu0 0.0
    %2974 = vmatpush1.msra.mxu0 0.0
    %2975 = vmatprep.subr.mxu0 0.0
    %2976 = vmatpush1.msra.mxu0 0.0
    %2977 = vmatprep.subr.mxu0 0.0
    %2978 = vmatpush1.msra.mxu0 0.0
    %2979 = vmatprep.subr.mxu0 0.0
    %2980 = vmatpush1.msra.mxu0 0.0
    %2981 = vmatprep.subr.mxu0 0.0
    %2982 = vmatpush1.msra.mxu0 0.0
    %2983 = vmatprep.subr.mxu0 0.0
    %2984 = vmatpush1.msra.mxu0 0.0
    %2985 = vmatprep.subr.mxu0 0.0
    %2986 = vmatpush1.msra.mxu0 0.0
    %2987 = vmatprep.subr.mxu0 0.0
    %2988 = vmatpush1.msra.mxu0 0.0
    %2989 = vmatprep.subr.mxu0 0.0
    %2990 = vmatpush1.msra.mxu0 0.0
    %2991 = vmatprep.subr.mxu0 0.0
    %2992 = vmatpush1.msra.mxu0 0.0
    %2993 = vmatprep.subr.mxu0 0.0
    %2994 = vmatpush1.msra.mxu0 0.0
    %2995 = vmatprep.subr.mxu0 0.0
    %2996 = vmatpush1.msra.mxu0 0.0
    %2997 = vmatprep.subr.mxu0 0.0
    %2998 = vmatpush1.msra.mxu0 0.0
    %2999 = vmatprep.subr.mxu0 0.0
    %3000 = vmatpush1.msra.mxu0 0.0
    %3001 = vmatprep.subr.mxu0 0.0
    %3002 = vmatpush1.msra.mxu0 0.0
    %3003 = vmatprep.subr.mxu0 0.0
    %3004 = vmatpush1.msra.mxu0 0.0
    %3005 = vmatprep.mubr.f32.mxu0 0.0
    %3006 = vmatmul.mubr.f32.gmra.mrb[0].mxu0 %v2939
    %v3007 = vpop.f32.mrb[0].mxu0
    %v3008 = vadd.f32 0.0, %v3007
    %v3009 = vpop.f32.mrb[0].mxu0
    %3010 = vdwg.mxu0
    %v3011 = vadd.f32 %v2937, %v3008
    %v3012 = vadd.f32 %v3011, %v100
    %v3013 = vtanh.pop %v3012
    %3014 = vrot.lane.b32.xlu0 %v3013, 96
    %v3015 = vpop.permute.xlu0 %3014
    %3016 = vrot.lane.b32.xlu0 %v3012, 64
    %v3017 = vpop.permute.xlu0 %3016
    %v3018 = vxor.u32 %v3017, 2147483648
    %v3019 = vmul.f32 %v3018, 1.442695
    %v3020 = vpow.pop %v3019
    %v3021 = vadd.f32 %v3020, 1.0
    %v3022 = vrcp.pop %v3021
    %v3023 = vmul.f32 1.0, %v3022
    %v3024 = vsub.f32 %v3015, %v3013
    %v3025 = vmul.f32 %v3023, %v3024
    %v3026 = vadd.f32 %v3013, %v3025
    %v3027 = vmul.f32 %v3026, %v120
    %3028 = vrot.lane.b32.xlu0 %v2838, 9
    %v3029 = vpop.permute.xlu0 %3028
    %v3030 = vadd.f32 %v3027, %v3029
    %v3032 = vsel %vm141, %v3030, 0
    %3034 = vmatprep.subr.mxu0 0.0
    %3035 = vmatpush1.msra.mxu0 %v87
    %3036 = vmatprep.subr.mxu0 0.0
    %3037 = vmatpush1.msra.mxu0 %v88
    %3038 = vmatprep.subr.mxu0 0.0
    %3039 = vmatpush1.msra.mxu0 %v89
    %3040 = vmatprep.subr.mxu0 0.0
    %3041 = vmatpush1.msra.mxu0 %v90
    %3042 = vmatprep.subr.mxu0 0.0
    %3043 = vmatpush1.msra.mxu0 0.0
    %3044 = vmatprep.subr.mxu0 0.0
    %3045 = vmatpush1.msra.mxu0 0.0
    %3046 = vmatprep.subr.mxu0 0.0
    %3047 = vmatpush1.msra.mxu0 0.0
    %3048 = vmatprep.subr.mxu0 0.0
    %3049 = vmatpush1.msra.mxu0 0.0
    %3050 = vmatprep.subr.mxu0 0.0
    %3051 = vmatpush1.msra.mxu0 0.0
    %3052 = vmatprep.subr.mxu0 0.0
    %3053 = vmatpush1.msra.mxu0 0.0
    %3054 = vmatprep.subr.mxu0 0.0
    %3055 = vmatpush1.msra.mxu0 0.0
    %3056 = vmatprep.subr.mxu0 0.0
    %3057 = vmatpush1.msra.mxu0 0.0
    %3058 = vmatprep.subr.mxu0 0.0
    %3059 = vmatpush1.msra.mxu0 0.0
    %3060 = vmatprep.subr.mxu0 0.0
    %3061 = vmatpush1.msra.mxu0 0.0
    %3062 = vmatprep.subr.mxu0 0.0
    %3063 = vmatpush1.msra.mxu0 0.0
    %3064 = vmatprep.subr.mxu0 0.0
    %3065 = vmatpush1.msra.mxu0 0.0
    %3066 = vmatprep.subr.mxu0 0.0
    %3067 = vmatpush1.msra.mxu0 0.0
    %3068 = vmatprep.subr.mxu0 0.0
    %3069 = vmatpush1.msra.mxu0 0.0
    %3070 = vmatprep.subr.mxu0 0.0
    %3071 = vmatpush1.msra.mxu0 0.0
    %3072 = vmatprep.subr.mxu0 0.0
    %3073 = vmatpush1.msra.mxu0 0.0
    %3074 = vmatprep.subr.mxu0 0.0
    %3075 = vmatpush1.msra.mxu0 0.0
    %3076 = vmatprep.subr.mxu0 0.0
    %3077 = vmatpush1.msra.mxu0 0.0
    %3078 = vmatprep.subr.mxu0 0.0
    %3079 = vmatpush1.msra.mxu0 0.0
    %3080 = vmatprep.subr.mxu0 0.0
    %3081 = vmatpush1.msra.mxu0 0.0
    %3082 = vmatprep.subr.mxu0 0.0
    %3083 = vmatpush1.msra.mxu0 0.0
    %3084 = vmatprep.subr.mxu0 0.0
    %3085 = vmatpush1.msra.mxu0 0.0
    %3086 = vmatprep.subr.mxu0 0.0
    %3087 = vmatpush1.msra.mxu0 0.0
    %3088 = vmatprep.subr.mxu0 0.0
    %3089 = vmatpush1.msra.mxu0 0.0
    %3090 = vmatprep.subr.mxu0 0.0
    %3091 = vmatpush1.msra.mxu0 0.0
    %3092 = vmatprep.subr.mxu0 0.0
    %3093 = vmatpush1.msra.mxu0 0.0
    %3094 = vmatprep.subr.mxu0 0.0
    %3095 = vmatpush1.msra.mxu0 0.0
    %3096 = vmatprep.subr.mxu0 0.0
    %3097 = vmatpush1.msra.mxu0 0.0
    %3098 = vmatprep.mubr.f32.mxu0 0.0
    %3099 = vmatmul.mubr.f32.gmra.mrb[0].mxu0 %v3032
    %v3100 = vpop.f32.mrb[0].mxu0
    %v3101 = vadd.f32 %v107, %v3100
    %v3102 = vpop.f32.mrb[0].mxu0
    %3103 = vdwg.mxu0
    %v3104 = vtanh.pop %v3101
    %3105 = vrot.lane.b32.xlu0 %v3104, 96
    %v3106 = vpop.permute.xlu0 %3105
    %3107 = vrot.lane.b32.xlu0 %v3101, 64
    %v3108 = vpop.permute.xlu0 %3107
    %v3109 = vxor.u32 %v3108, 2147483648
    %v3110 = vmul.f32 %v3109, 1.442695
    %v3111 = vpow.pop %v3110
    %v3112 = vadd.f32 %v3111, 1.0
    %v3113 = vrcp.pop %v3112
    %v3114 = vmul.f32 1.0, %v3113
    %v3115 = vsub.f32 %v3106, %v3104
    %v3116 = vmul.f32 %v3114, %v3115
    %v3117 = vadd.f32 %v3104, %v3116
    %v3118 = vmul.f32 %v3117, %v123
    %3119 = vrot.lane.b32.xlu0 %v2929, 6
    %v3120 = vpop.permute.xlu0 %3119
    %v3121 = vadd.f32 %v3118, %v3120
    %v3123 = vsel %vm141, %v3121, 0
    %3125 = vmatprep.subr.mxu0 0.0
    %3126 = vmatpush1.msra.mxu0 %v91
    %3127 = vmatprep.subr.mxu0 0.0
    %3128 = vmatpush1.msra.mxu0 %v92
    %3129 = vmatprep.subr.mxu0 0.0
    %3130 = vmatpush1.msra.mxu0 %v93
    %3131 = vmatprep.subr.mxu0 0.0
    %3132 = vmatpush1.msra.mxu0 %v94
    %3133 = vmatprep.subr.mxu0 0.0
    %3134 = vmatpush1.msra.mxu0 0.0
    %3135 = vmatprep.subr.mxu0 0.0
    %3136 = vmatpush1.msra.mxu0 0.0
    %3137 = vmatprep.subr.mxu0 0.0
    %3138 = vmatpush1.msra.mxu0 0.0
    %3139 = vmatprep.subr.mxu0 0.0
    %3140 = vmatpush1.msra.mxu0 0.0
    %3141 = vmatprep.subr.mxu0 0.0
    %3142 = vmatpush1.msra.mxu0 0.0
    %3143 = vmatprep.subr.mxu0 0.0
    %3144 = vmatpush1.msra.mxu0 0.0
    %3145 = vmatprep.subr.mxu0 0.0
    %3146 = vmatpush1.msra.mxu0 0.0
    %3147 = vmatprep.subr.mxu0 0.0
    %3148 = vmatpush1.msra.mxu0 0.0
    %3149 = vmatprep.subr.mxu0 0.0
    %3150 = vmatpush1.msra.mxu0 0.0
    %3151 = vmatprep.subr.mxu0 0.0
    %3152 = vmatpush1.msra.mxu0 0.0
    %3153 = vmatprep.subr.mxu0 0.0
    %3154 = vmatpush1.msra.mxu0 0.0
    %3155 = vmatprep.subr.mxu0 0.0
    %3156 = vmatpush1.msra.mxu0 0.0
    %3157 = vmatprep.subr.mxu0 0.0
    %3158 = vmatpush1.msra.mxu0 0.0
    %3159 = vmatprep.subr.mxu0 0.0
    %3160 = vmatpush1.msra.mxu0 0.0
    %3161 = vmatprep.subr.mxu0 0.0
    %3162 = vmatpush1.msra.mxu0 0.0
    %3163 = vmatprep.subr.mxu0 0.0
    %3164 = vmatpush1.msra.mxu0 0.0
    %3165 = vmatprep.subr.mxu0 0.0
    %3166 = vmatpush1.msra.mxu0 0.0
    %3167 = vmatprep.subr.mxu0 0.0
    %3168 = vmatpush1.msra.mxu0 0.0
    %3169 = vmatprep.subr.mxu0 0.0
    %3170 = vmatpush1.msra.mxu0 0.0
    %3171 = vmatprep.subr.mxu0 0.0
    %3172 = vmatpush1.msra.mxu0 0.0
    %3173 = vmatprep.subr.mxu0 0.0
    %3174 = vmatpush1.msra.mxu0 0.0
    %3175 = vmatprep.subr.mxu0 0.0
    %3176 = vmatpush1.msra.mxu0 0.0
    %3177 = vmatprep.subr.mxu0 0.0
    %3178 = vmatpush1.msra.mxu0 0.0
    %3179 = vmatprep.subr.mxu0 0.0
    %3180 = vmatpush1.msra.mxu0 0.0
    %3181 = vmatprep.subr.mxu0 0.0
    %3182 = vmatpush1.msra.mxu0 0.0
    %3183 = vmatprep.subr.mxu0 0.0
    %3184 = vmatpush1.msra.mxu0 0.0
    %3185 = vmatprep.subr.mxu0 0.0
    %3186 = vmatpush1.msra.mxu0 0.0
    %3187 = vmatprep.subr.mxu0 0.0
    %3188 = vmatpush1.msra.mxu0 0.0
    %3189 = vmatprep.mubr.f32.mxu0 0.0
    %3190 = vmatmul.mubr.f32.gmra.mrb[0].mxu0 %v3123
    %v3191 = vpop.f32.mrb[0].mxu0
    %v3192 = vadd.f32 %v114, %v3191
    %v3193 = vpop.f32.mrb[0].mxu0
    %3194 = vdwg.mxu0
    %v3195 = vtanh.pop %v3192
    %3196 = vrot.lane.b32.xlu0 %v3195, 96
    %v3197 = vpop.permute.xlu0 %3196
    %3198 = vrot.lane.b32.xlu0 %v3192, 64
    %v3199 = vpop.permute.xlu0 %3198
    %v3200 = vxor.u32 %v3199, 2147483648
    %v3201 = vmul.f32 %v3200, 1.442695
    %v3202 = vpow.pop %v3201
    %v3203 = vadd.f32 %v3202, 1.0
    %v3204 = vrcp.pop %v3203
    %v3205 = vmul.f32 1.0, %v3204
    %v3206 = vsub.f32 %v3197, %v3195
    %v3207 = vmul.f32 %v3205, %v3206
    %v3208 = vadd.f32 %v3195, %v3207
    %v3209 = vmul.f32 %v3208, %v126
    %3210 = vrot.lane.b32.xlu0 %v3209, 10
    %v3211 = vpop.permute.xlu0 %3210
    %v3212 = vadd.f32 %v2932, %v3211
    %3213 = vset.pattern.permute.xlu0 11
    %3214 = vperm.xlu0 %3213, %v134
    %v3215 = vpop.permute.xlu0 %3214
    %v3217 = vmul.f32 %v3215, %v132
    %v3219 = vsel %vm141, %v3027, 0
    %3221 = vmatprep.subr.mxu0 0.0
    %3222 = vmatpush1.msra.mxu0 %v83
    %3223 = vmatprep.subr.mxu0 0.0
    %3224 = vmatpush1.msra.mxu0 %v84
    %3225 = vmatprep.subr.mxu0 0.0
    %3226 = vmatpush1.msra.mxu0 %v85
    %3227 = vmatprep.subr.mxu0 0.0
    %3228 = vmatpush1.msra.mxu0 %v86
    %3229 = vmatprep.subr.mxu0 0.0
    %3230 = vmatpush1.msra.mxu0 0.0
    %3231 = vmatprep.subr.mxu0 0.0
    %3232 = vmatpush1.msra.mxu0 0.0
    %3233 = vmatprep.subr.mxu0 0.0
    %3234 = vmatpush1.msra.mxu0 0.0
    %3235 = vmatprep.subr.mxu0 0.0
    %3236 = vmatpush1.msra.mxu0 0.0
    %3237 = vmatprep.subr.mxu0 0.0
    %3238 = vmatpush1.msra.mxu0 0.0
    %3239 = vmatprep.subr.mxu0 0.0
    %3240 = vmatpush1.msra.mxu0 0.0
    %3241 = vmatprep.subr.mxu0 0.0
    %3242 = vmatpush1.msra.mxu0 0.0
    %3243 = vmatprep.subr.mxu0 0.0
    %3244 = vmatpush1.msra.mxu0 0.0
    %3245 = vmatprep.subr.mxu0 0.0
    %3246 = vmatpush1.msra.mxu0 0.0
    %3247 = vmatprep.subr.mxu0 0.0
    %3248 = vmatpush1.msra.mxu0 0.0
    %3249 = vmatprep.subr.mxu0 0.0
    %3250 = vmatpush1.msra.mxu0 0.0
    %3251 = vmatprep.subr.mxu0 0.0
    %3252 = vmatpush1.msra.mxu0 0.0
    %3253 = vmatprep.subr.mxu0 0.0
    %3254 = vmatpush1.msra.mxu0 0.0
    %3255 = vmatprep.subr.mxu0 0.0
    %3256 = vmatpush1.msra.mxu0 0.0
    %3257 = vmatprep.subr.mxu0 0.0
    %3258 = vmatpush1.msra.mxu0 0.0
    %3259 = vmatprep.subr.mxu0 0.0
    %3260 = vmatpush1.msra.mxu0 0.0
    %3261 = vmatprep.subr.mxu0 0.0
    %3262 = vmatpush1.msra.mxu0 0.0
    %3263 = vmatprep.subr.mxu0 0.0
    %3264 = vmatpush1.msra.mxu0 0.0
    %3265 = vmatprep.subr.mxu0 0.0
    %3266 = vmatpush1.msra.mxu0 0.0
    %3267 = vmatprep.subr.mxu0 0.0
    %3268 = vmatpush1.msra.mxu0 0.0
    %3269 = vmatprep.subr.mxu0 0.0
    %3270 = vmatpush1.msra.mxu0 0.0
    %3271 = vmatprep.subr.mxu0 0.0
    %3272 = vmatpush1.msra.mxu0 0.0
    %3273 = vmatprep.subr.mxu0 0.0
    %3274 = vmatpush1.msra.mxu0 0.0
    %3275 = vmatprep.subr.mxu0 0.0
    %3276 = vmatpush1.msra.mxu0 0.0
    %3277 = vmatprep.subr.mxu0 0.0
    %3278 = vmatpush1.msra.mxu0 0.0
    %3279 = vmatprep.subr.mxu0 0.0
    %3280 = vmatpush1.msra.mxu0 0.0
    %3281 = vmatprep.subr.mxu0 0.0
    %3282 = vmatpush1.msra.mxu0 0.0
    %3283 = vmatprep.subr.mxu0 0.0
    %3284 = vmatpush1.msra.mxu0 0.0
    %3285 = vmatprep.mubr.f32.mxu0 0.0
    %3286 = vmatmul.mubr.f32.gmra.mrb[0].mxu0 %v3219
    %v3287 = vpop.f32.mrb[0].mxu0
    %v3288 = vadd.f32 0.0, %v3287
    %v3289 = vpop.f32.mrb[0].mxu0
    %3290 = vdwg.mxu0
    %v3291 = vadd.f32 %v3217, %v3288
    %v3292 = vadd.f32 %v3291, %v100
    %v3293 = vtanh.pop %v3292
    %3294 = vrot.lane.b32.xlu0 %v3293, 96
    %v3295 = vpop.permute.xlu0 %3294
    %3296 = vrot.lane.b32.xlu0 %v3292, 64
    %v3297 = vpop.permute.xlu0 %3296
    %v3298 = vxor.u32 %v3297, 2147483648
    %v3299 = vmul.f32 %v3298, 1.442695
    %v3300 = vpow.pop %v3299
    %v3301 = vadd.f32 %v3300, 1.0
    %v3302 = vrcp.pop %v3301
    %v3303 = vmul.f32 1.0, %v3302
    %v3304 = vsub.f32 %v3295, %v3293
    %v3305 = vmul.f32 %v3303, %v3304
    %v3306 = vadd.f32 %v3293, %v3305
    %v3307 = vmul.f32 %v3306, %v120
    %3308 = vrot.lane.b32.xlu0 %v3118, 9
    %v3309 = vpop.permute.xlu0 %3308
    %v3310 = vadd.f32 %v3307, %v3309
    %v3312 = vsel %vm141, %v3310, 0
    %3314 = vmatprep.subr.mxu0 0.0
    %3315 = vmatpush1.msra.mxu0 %v87
    %3316 = vmatprep.subr.mxu0 0.0
    %3317 = vmatpush1.msra.mxu0 %v88
    %3318 = vmatprep.subr.mxu0 0.0
    %3319 = vmatpush1.msra.mxu0 %v89
    %3320 = vmatprep.subr.mxu0 0.0
    %3321 = vmatpush1.msra.mxu0 %v90
    %3322 = vmatprep.subr.mxu0 0.0
    %3323 = vmatpush1.msra.mxu0 0.0
    %3324 = vmatprep.subr.mxu0 0.0
    %3325 = vmatpush1.msra.mxu0 0.0
    %3326 = vmatprep.subr.mxu0 0.0
    %3327 = vmatpush1.msra.mxu0 0.0
    %3328 = vmatprep.subr.mxu0 0.0
    %3329 = vmatpush1.msra.mxu0 0.0
    %3330 = vmatprep.subr.mxu0 0.0
    %3331 = vmatpush1.msra.mxu0 0.0
    %3332 = vmatprep.subr.mxu0 0.0
    %3333 = vmatpush1.msra.mxu0 0.0
    %3334 = vmatprep.subr.mxu0 0.0
    %3335 = vmatpush1.msra.mxu0 0.0
    %3336 = vmatprep.subr.mxu0 0.0
    %3337 = vmatpush1.msra.mxu0 0.0
    %3338 = vmatprep.subr.mxu0 0.0
    %3339 = vmatpush1.msra.mxu0 0.0
    %3340 = vmatprep.subr.mxu0 0.0
    %3341 = vmatpush1.msra.mxu0 0.0
    %3342 = vmatprep.subr.mxu0 0.0
    %3343 = vmatpush1.msra.mxu0 0.0
    %3344 = vmatprep.subr.mxu0 0.0
    %3345 = vmatpush1.msra.mxu0 0.0
    %3346 = vmatprep.subr.mxu0 0.0
    %3347 = vmatpush1.msra.mxu0 0.0
    %3348 = vmatprep.subr.mxu0 0.0
    %3349 = vmatpush1.msra.mxu0 0.0
    %3350 = vmatprep.subr.mxu0 0.0
    %3351 = vmatpush1.msra.mxu0 0.0
    %3352 = vmatprep.subr.mxu0 0.0
    %3353 = vmatpush1.msra.mxu0 0.0
    %3354 = vmatprep.subr.mxu0 0.0
    %3355 = vmatpush1.msra.mxu0 0.0
    %3356 = vmatprep.subr.mxu0 0.0
    %3357 = vmatpush1.msra.mxu0 0.0
    %3358 = vmatprep.subr.mxu0 0.0
    %3359 = vmatpush1.msra.mxu0 0.0
    %3360 = vmatprep.subr.mxu0 0.0
    %3361 = vmatpush1.msra.mxu0 0.0
    %3362 = vmatprep.subr.mxu0 0.0
    %3363 = vmatpush1.msra.mxu0 0.0
    %3364 = vmatprep.subr.mxu0 0.0
    %3365 = vmatpush1.msra.mxu0 0.0
    %3366 = vmatprep.subr.mxu0 0.0
    %3367 = vmatpush1.msra.mxu0 0.0
    %3368 = vmatprep.subr.mxu0 0.0
    %3369 = vmatpush1.msra.mxu0 0.0
    %3370 = vmatprep.subr.mxu0 0.0
    %3371 = vmatpush1.msra.mxu0 0.0
    %3372 = vmatprep.subr.mxu0 0.0
    %3373 = vmatpush1.msra.mxu0 0.0
    %3374 = vmatprep.subr.mxu0 0.0
    %3375 = vmatpush1.msra.mxu0 0.0
    %3376 = vmatprep.subr.mxu0 0.0
    %3377 = vmatpush1.msra.mxu0 0.0
    %3378 = vmatprep.mubr.f32.mxu0 0.0
    %3379 = vmatmul.mubr.f32.gmra.mrb[0].mxu0 %v3312
    %v3380 = vpop.f32.mrb[0].mxu0
    %v3381 = vadd.f32 %v107, %v3380
    %v3382 = vpop.f32.mrb[0].mxu0
    %3383 = vdwg.mxu0
    %v3384 = vtanh.pop %v3381
    %3385 = vrot.lane.b32.xlu0 %v3384, 96
    %v3386 = vpop.permute.xlu0 %3385
    %3387 = vrot.lane.b32.xlu0 %v3381, 64
    %v3388 = vpop.permute.xlu0 %3387
    %v3389 = vxor.u32 %v3388, 2147483648
    %v3390 = vmul.f32 %v3389, 1.442695
    %v3391 = vpow.pop %v3390
    %v3392 = vadd.f32 %v3391, 1.0
    %v3393 = vrcp.pop %v3392
    %v3394 = vmul.f32 1.0, %v3393
    %v3395 = vsub.f32 %v3386, %v3384
    %v3396 = vmul.f32 %v3394, %v3395
    %v3397 = vadd.f32 %v3384, %v3396
    %v3398 = vmul.f32 %v3397, %v123
    %3399 = vrot.lane.b32.xlu0 %v3209, 6
    %v3400 = vpop.permute.xlu0 %3399
    %v3401 = vadd.f32 %v3398, %v3400
    %v3403 = vsel %vm141, %v3401, 0
    %3405 = vmatprep.subr.mxu0 0.0
    %3406 = vmatpush1.msra.mxu0 %v91
    %3407 = vmatprep.subr.mxu0 0.0
    %3408 = vmatpush1.msra.mxu0 %v92
    %3409 = vmatprep.subr.mxu0 0.0
    %3410 = vmatpush1.msra.mxu0 %v93
    %3411 = vmatprep.subr.mxu0 0.0
    %3412 = vmatpush1.msra.mxu0 %v94
    %3413 = vmatprep.subr.mxu0 0.0
    %3414 = vmatpush1.msra.mxu0 0.0
    %3415 = vmatprep.subr.mxu0 0.0
    %3416 = vmatpush1.msra.mxu0 0.0
    %3417 = vmatprep.subr.mxu0 0.0
    %3418 = vmatpush1.msra.mxu0 0.0
    %3419 = vmatprep.subr.mxu0 0.0
    %3420 = vmatpush1.msra.mxu0 0.0
    %3421 = vmatprep.subr.mxu0 0.0
    %3422 = vmatpush1.msra.mxu0 0.0
    %3423 = vmatprep.subr.mxu0 0.0
    %3424 = vmatpush1.msra.mxu0 0.0
    %3425 = vmatprep.subr.mxu0 0.0
    %3426 = vmatpush1.msra.mxu0 0.0
    %3427 = vmatprep.subr.mxu0 0.0
    %3428 = vmatpush1.msra.mxu0 0.0
    %3429 = vmatprep.subr.mxu0 0.0
    %3430 = vmatpush1.msra.mxu0 0.0
    %3431 = vmatprep.subr.mxu0 0.0
    %3432 = vmatpush1.msra.mxu0 0.0
    %3433 = vmatprep.subr.mxu0 0.0
    %3434 = vmatpush1.msra.mxu0 0.0
    %3435 = vmatprep.subr.mxu0 0.0
    %3436 = vmatpush1.msra.mxu0 0.0
    %3437 = vmatprep.subr.mxu0 0.0
    %3438 = vmatpush1.msra.mxu0 0.0
    %3439 = vmatprep.subr.mxu0 0.0
    %3440 = vmatpush1.msra.mxu0 0.0
    %3441 = vmatprep.subr.mxu0 0.0
    %3442 = vmatpush1.msra.mxu0 0.0
    %3443 = vmatprep.subr.mxu0 0.0
    %3444 = vmatpush1.msra.mxu0 0.0
    %3445 = vmatprep.subr.mxu0 0.0
    %3446 = vmatpush1.msra.mxu0 0.0
    %3447 = vmatprep.subr.mxu0 0.0
    %3448 = vmatpush1.msra.mxu0 0.0
    %3449 = vmatprep.subr.mxu0 0.0
    %3450 = vmatpush1.msra.mxu0 0.0
    %3451 = vmatprep.subr.mxu0 0.0
    %3452 = vmatpush1.msra.mxu0 0.0
    %3453 = vmatprep.subr.mxu0 0.0
    %3454 = vmatpush1.msra.mxu0 0.0
    %3455 = vmatprep.subr.mxu0 0.0
    %3456 = vmatpush1.msra.mxu0 0.0
    %3457 = vmatprep.subr.mxu0 0.0
    %3458 = vmatpush1.msra.mxu0 0.0
    %3459 = vmatprep.subr.mxu0 0.0
    %3460 = vmatpush1.msra.mxu0 0.0
    %3461 = vmatprep.subr.mxu0 0.0
    %3462 = vmatpush1.msra.mxu0 0.0
    %3463 = vmatprep.subr.mxu0 0.0
    %3464 = vmatpush1.msra.mxu0 0.0
    %3465 = vmatprep.subr.mxu0 0.0
    %3466 = vmatpush1.msra.mxu0 0.0
    %3467 = vmatprep.subr.mxu0 0.0
    %3468 = vmatpush1.msra.mxu0 0.0
    %3469 = vmatprep.mubr.f32.mxu0 0.0
    %3470 = vmatmul.mubr.f32.gmra.mrb[0].mxu0 %v3403
    %v3471 = vpop.f32.mrb[0].mxu0
    %v3472 = vadd.f32 %v114, %v3471
    %v3473 = vpop.f32.mrb[0].mxu0
    %3474 = vdwg.mxu0
    %v3475 = vtanh.pop %v3472
    %3476 = vrot.lane.b32.xlu0 %v3475, 96
    %v3477 = vpop.permute.xlu0 %3476
    %3478 = vrot.lane.b32.xlu0 %v3472, 64
    %v3479 = vpop.permute.xlu0 %3478
    %v3480 = vxor.u32 %v3479, 2147483648
    %v3481 = vmul.f32 %v3480, 1.442695
    %v3482 = vpow.pop %v3481
    %v3483 = vadd.f32 %v3482, 1.0
    %v3484 = vrcp.pop %v3483
    %v3485 = vmul.f32 1.0, %v3484
    %v3486 = vsub.f32 %v3477, %v3475
    %v3487 = vmul.f32 %v3485, %v3486
    %v3488 = vadd.f32 %v3475, %v3487
    %v3489 = vmul.f32 %v3488, %v126
    %3490 = vrot.lane.b32.xlu0 %v3489, 11
    %v3491 = vpop.permute.xlu0 %3490
    %v3492 = vadd.f32 %v3212, %v3491
    %3493 = vset.pattern.permute.xlu0 12
    %3494 = vperm.xlu0 %3493, %v134
    %v3495 = vpop.permute.xlu0 %3494
    %v3497 = vmul.f32 %v3495, %v132
    %v3499 = vsel %vm141, %v3307, 0
    %3501 = vmatprep.subr.mxu0 0.0
    %3502 = vmatpush1.msra.mxu0 %v83
    %3503 = vmatprep.subr.mxu0 0.0
    %3504 = vmatpush1.msra.mxu0 %v84
    %3505 = vmatprep.subr.mxu0 0.0
    %3506 = vmatpush1.msra.mxu0 %v85
    %3507 = vmatprep.subr.mxu0 0.0
    %3508 = vmatpush1.msra.mxu0 %v86
    %3509 = vmatprep.subr.mxu0 0.0
    %3510 = vmatpush1.msra.mxu0 0.0
    %3511 = vmatprep.subr.mxu0 0.0
    %3512 = vmatpush1.msra.mxu0 0.0
    %3513 = vmatprep.subr.mxu0 0.0
    %3514 = vmatpush1.msra.mxu0 0.0
    %3515 = vmatprep.subr.mxu0 0.0
    %3516 = vmatpush1.msra.mxu0 0.0
    %3517 = vmatprep.subr.mxu0 0.0
    %3518 = vmatpush1.msra.mxu0 0.0
    %3519 = vmatprep.subr.mxu0 0.0
    %3520 = vmatpush1.msra.mxu0 0.0
    %3521 = vmatprep.subr.mxu0 0.0
    %3522 = vmatpush1.msra.mxu0 0.0
    %3523 = vmatprep.subr.mxu0 0.0
    %3524 = vmatpush1.msra.mxu0 0.0
    %3525 = vmatprep.subr.mxu0 0.0
    %3526 = vmatpush1.msra.mxu0 0.0
    %3527 = vmatprep.subr.mxu0 0.0
    %3528 = vmatpush1.msra.mxu0 0.0
    %3529 = vmatprep.subr.mxu0 0.0
    %3530 = vmatpush1.msra.mxu0 0.0
    %3531 = vmatprep.subr.mxu0 0.0
    %3532 = vmatpush1.msra.mxu0 0.0
    %3533 = vmatprep.subr.mxu0 0.0
    %3534 = vmatpush1.msra.mxu0 0.0
    %3535 = vmatprep.subr.mxu0 0.0
    %3536 = vmatpush1.msra.mxu0 0.0
    %3537 = vmatprep.subr.mxu0 0.0
    %3538 = vmatpush1.msra.mxu0 0.0
    %3539 = vmatprep.subr.mxu0 0.0
    %3540 = vmatpush1.msra.mxu0 0.0
    %3541 = vmatprep.subr.mxu0 0.0
    %3542 = vmatpush1.msra.mxu0 0.0
    %3543 = vmatprep.subr.mxu0 0.0
    %3544 = vmatpush1.msra.mxu0 0.0
    %3545 = vmatprep.subr.mxu0 0.0
    %3546 = vmatpush1.msra.mxu0 0.0
    %3547 = vmatprep.subr.mxu0 0.0
    %3548 = vmatpush1.msra.mxu0 0.0
    %3549 = vmatprep.subr.mxu0 0.0
    %3550 = vmatpush1.msra.mxu0 0.0
    %3551 = vmatprep.subr.mxu0 0.0
    %3552 = vmatpush1.msra.mxu0 0.0
    %3553 = vmatprep.subr.mxu0 0.0
    %3554 = vmatpush1.msra.mxu0 0.0
    %3555 = vmatprep.subr.mxu0 0.0
    %3556 = vmatpush1.msra.mxu0 0.0
    %3557 = vmatprep.subr.mxu0 0.0
    %3558 = vmatpush1.msra.mxu0 0.0
    %3559 = vmatprep.subr.mxu0 0.0
    %3560 = vmatpush1.msra.mxu0 0.0
    %3561 = vmatprep.subr.mxu0 0.0
    %3562 = vmatpush1.msra.mxu0 0.0
    %3563 = vmatprep.subr.mxu0 0.0
    %3564 = vmatpush1.msra.mxu0 0.0
    %3565 = vmatprep.mubr.f32.mxu0 0.0
    %3566 = vmatmul.mubr.f32.gmra.mrb[0].mxu0 %v3499
    %v3567 = vpop.f32.mrb[0].mxu0
    %v3568 = vadd.f32 0.0, %v3567
    %v3569 = vpop.f32.mrb[0].mxu0
    %3570 = vdwg.mxu0
    %v3571 = vadd.f32 %v3497, %v3568
    %v3572 = vadd.f32 %v3571, %v100
    %v3573 = vtanh.pop %v3572
    %3574 = vrot.lane.b32.xlu0 %v3573, 96
    %v3575 = vpop.permute.xlu0 %3574
    %3576 = vrot.lane.b32.xlu0 %v3572, 64
    %v3577 = vpop.permute.xlu0 %3576
    %v3578 = vxor.u32 %v3577, 2147483648
    %v3579 = vmul.f32 %v3578, 1.442695
    %v3580 = vpow.pop %v3579
    %v3581 = vadd.f32 %v3580, 1.0
    %v3582 = vrcp.pop %v3581
    %v3583 = vmul.f32 1.0, %v3582
    %v3584 = vsub.f32 %v3575, %v3573
    %v3585 = vmul.f32 %v3583, %v3584
    %v3586 = vadd.f32 %v3573, %v3585
    %v3587 = vmul.f32 %v3586, %v120
    %3588 = vrot.lane.b32.xlu0 %v3398, 9
    %v3589 = vpop.permute.xlu0 %3588
    %v3590 = vadd.f32 %v3587, %v3589
    %v3592 = vsel %vm141, %v3590, 0
    %3594 = vmatprep.subr.mxu0 0.0
    %3595 = vmatpush1.msra.mxu0 %v87
    %3596 = vmatprep.subr.mxu0 0.0
    %3597 = vmatpush1.msra.mxu0 %v88
    %3598 = vmatprep.subr.mxu0 0.0
    %3599 = vmatpush1.msra.mxu0 %v89
    %3600 = vmatprep.subr.mxu0 0.0
    %3601 = vmatpush1.msra.mxu0 %v90
    %3602 = vmatprep.subr.mxu0 0.0
    %3603 = vmatpush1.msra.mxu0 0.0
    %3604 = vmatprep.subr.mxu0 0.0
    %3605 = vmatpush1.msra.mxu0 0.0
    %3606 = vmatprep.subr.mxu0 0.0
    %3607 = vmatpush1.msra.mxu0 0.0
    %3608 = vmatprep.subr.mxu0 0.0
    %3609 = vmatpush1.msra.mxu0 0.0
    %3610 = vmatprep.subr.mxu0 0.0
    %3611 = vmatpush1.msra.mxu0 0.0
    %3612 = vmatprep.subr.mxu0 0.0
    %3613 = vmatpush1.msra.mxu0 0.0
    %3614 = vmatprep.subr.mxu0 0.0
    %3615 = vmatpush1.msra.mxu0 0.0
    %3616 = vmatprep.subr.mxu0 0.0
    %3617 = vmatpush1.msra.mxu0 0.0
    %3618 = vmatprep.subr.mxu0 0.0
    %3619 = vmatpush1.msra.mxu0 0.0
    %3620 = vmatprep.subr.mxu0 0.0
    %3621 = vmatpush1.msra.mxu0 0.0
    %3622 = vmatprep.subr.mxu0 0.0
    %3623 = vmatpush1.msra.mxu0 0.0
    %3624 = vmatprep.subr.mxu0 0.0
    %3625 = vmatpush1.msra.mxu0 0.0
    %3626 = vmatprep.subr.mxu0 0.0
    %3627 = vmatpush1.msra.mxu0 0.0
    %3628 = vmatprep.subr.mxu0 0.0
    %3629 = vmatpush1.msra.mxu0 0.0
    %3630 = vmatprep.subr.mxu0 0.0
    %3631 = vmatpush1.msra.mxu0 0.0
    %3632 = vmatprep.subr.mxu0 0.0
    %3633 = vmatpush1.msra.mxu0 0.0
    %3634 = vmatprep.subr.mxu0 0.0
    %3635 = vmatpush1.msra.mxu0 0.0
    %3636 = vmatprep.subr.mxu0 0.0
    %3637 = vmatpush1.msra.mxu0 0.0
    %3638 = vmatprep.subr.mxu0 0.0
    %3639 = vmatpush1.msra.mxu0 0.0
    %3640 = vmatprep.subr.mxu0 0.0
    %3641 = vmatpush1.msra.mxu0 0.0
    %3642 = vmatprep.subr.mxu0 0.0
    %3643 = vmatpush1.msra.mxu0 0.0
    %3644 = vmatprep.subr.mxu0 0.0
    %3645 = vmatpush1.msra.mxu0 0.0
    %3646 = vmatprep.subr.mxu0 0.0
    %3647 = vmatpush1.msra.mxu0 0.0
    %3648 = vmatprep.subr.mxu0 0.0
    %3649 = vmatpush1.msra.mxu0 0.0
    %3650 = vmatprep.subr.mxu0 0.0
    %3651 = vmatpush1.msra.mxu0 0.0
    %3652 = vmatprep.subr.mxu0 0.0
    %3653 = vmatpush1.msra.mxu0 0.0
    %3654 = vmatprep.subr.mxu0 0.0
    %3655 = vmatpush1.msra.mxu0 0.0
    %3656 = vmatprep.subr.mxu0 0.0
    %3657 = vmatpush1.msra.mxu0 0.0
    %3658 = vmatprep.mubr.f32.mxu0 0.0
    %3659 = vmatmul.mubr.f32.gmra.mrb[0].mxu0 %v3592
    %v3660 = vpop.f32.mrb[0].mxu0
    %v3661 = vadd.f32 %v107, %v3660
    %v3662 = vpop.f32.mrb[0].mxu0
    %3663 = vdwg.mxu0
    %v3664 = vtanh.pop %v3661
    %3665 = vrot.lane.b32.xlu0 %v3664, 96
    %v3666 = vpop.permute.xlu0 %3665
    %3667 = vrot.lane.b32.xlu0 %v3661, 64
    %v3668 = vpop.permute.xlu0 %3667
    %v3669 = vxor.u32 %v3668, 2147483648
    %v3670 = vmul.f32 %v3669, 1.442695
    %v3671 = vpow.pop %v3670
    %v3672 = vadd.f32 %v3671, 1.0
    %v3673 = vrcp.pop %v3672
    %v3674 = vmul.f32 1.0, %v3673
    %v3675 = vsub.f32 %v3666, %v3664
    %v3676 = vmul.f32 %v3674, %v3675
    %v3677 = vadd.f32 %v3664, %v3676
    %v3678 = vmul.f32 %v3677, %v123
    %3679 = vrot.lane.b32.xlu0 %v3489, 6
    %v3680 = vpop.permute.xlu0 %3679
    %v3681 = vadd.f32 %v3678, %v3680
    %v3683 = vsel %vm141, %v3681, 0
    %3685 = vmatprep.subr.mxu0 0.0
    %3686 = vmatpush1.msra.mxu0 %v91
    %3687 = vmatprep.subr.mxu0 0.0
    %3688 = vmatpush1.msra.mxu0 %v92
    %3689 = vmatprep.subr.mxu0 0.0
    %3690 = vmatpush1.msra.mxu0 %v93
    %3691 = vmatprep.subr.mxu0 0.0
    %3692 = vmatpush1.msra.mxu0 %v94
    %3693 = vmatprep.subr.mxu0 0.0
    %3694 = vmatpush1.msra.mxu0 0.0
    %3695 = vmatprep.subr.mxu0 0.0
    %3696 = vmatpush1.msra.mxu0 0.0
    %3697 = vmatprep.subr.mxu0 0.0
    %3698 = vmatpush1.msra.mxu0 0.0
    %3699 = vmatprep.subr.mxu0 0.0
    %3700 = vmatpush1.msra.mxu0 0.0
    %3701 = vmatprep.subr.mxu0 0.0
    %3702 = vmatpush1.msra.mxu0 0.0
    %3703 = vmatprep.subr.mxu0 0.0
    %3704 = vmatpush1.msra.mxu0 0.0
    %3705 = vmatprep.subr.mxu0 0.0
    %3706 = vmatpush1.msra.mxu0 0.0
    %3707 = vmatprep.subr.mxu0 0.0
    %3708 = vmatpush1.msra.mxu0 0.0
    %3709 = vmatprep.subr.mxu0 0.0
    %3710 = vmatpush1.msra.mxu0 0.0
    %3711 = vmatprep.subr.mxu0 0.0
    %3712 = vmatpush1.msra.mxu0 0.0
    %3713 = vmatprep.subr.mxu0 0.0
    %3714 = vmatpush1.msra.mxu0 0.0
    %3715 = vmatprep.subr.mxu0 0.0
    %3716 = vmatpush1.msra.mxu0 0.0
    %3717 = vmatprep.subr.mxu0 0.0
    %3718 = vmatpush1.msra.mxu0 0.0
    %3719 = vmatprep.subr.mxu0 0.0
    %3720 = vmatpush1.msra.mxu0 0.0
    %3721 = vmatprep.subr.mxu0 0.0
    %3722 = vmatpush1.msra.mxu0 0.0
    %3723 = vmatprep.subr.mxu0 0.0
    %3724 = vmatpush1.msra.mxu0 0.0
    %3725 = vmatprep.subr.mxu0 0.0
    %3726 = vmatpush1.msra.mxu0 0.0
    %3727 = vmatprep.subr.mxu0 0.0
    %3728 = vmatpush1.msra.mxu0 0.0
    %3729 = vmatprep.subr.mxu0 0.0
    %3730 = vmatpush1.msra.mxu0 0.0
    %3731 = vmatprep.subr.mxu0 0.0
    %3732 = vmatpush1.msra.mxu0 0.0
    %3733 = vmatprep.subr.mxu0 0.0
    %3734 = vmatpush1.msra.mxu0 0.0
    %3735 = vmatprep.subr.mxu0 0.0
    %3736 = vmatpush1.msra.mxu0 0.0
    %3737 = vmatprep.subr.mxu0 0.0
    %3738 = vmatpush1.msra.mxu0 0.0
    %3739 = vmatprep.subr.mxu0 0.0
    %3740 = vmatpush1.msra.mxu0 0.0
    %3741 = vmatprep.subr.mxu0 0.0
    %3742 = vmatpush1.msra.mxu0 0.0
    %3743 = vmatprep.subr.mxu0 0.0
    %3744 = vmatpush1.msra.mxu0 0.0
    %3745 = vmatprep.subr.mxu0 0.0
    %3746 = vmatpush1.msra.mxu0 0.0
    %3747 = vmatprep.subr.mxu0 0.0
    %3748 = vmatpush1.msra.mxu0 0.0
    %3749 = vmatprep.mubr.f32.mxu0 0.0
    %3750 = vmatmul.mubr.f32.gmra.mrb[0].mxu0 %v3683
    %v3751 = vpop.f32.mrb[0].mxu0
    %v3752 = vadd.f32 %v114, %v3751
    %v3753 = vpop.f32.mrb[0].mxu0
    %3754 = vdwg.mxu0
    %v3755 = vtanh.pop %v3752
    %3756 = vrot.lane.b32.xlu0 %v3755, 96
    %v3757 = vpop.permute.xlu0 %3756
    %3758 = vrot.lane.b32.xlu0 %v3752, 64
    %v3759 = vpop.permute.xlu0 %3758
    %v3760 = vxor.u32 %v3759, 2147483648
    %v3761 = vmul.f32 %v3760, 1.442695
    %v3762 = vpow.pop %v3761
    %v3763 = vadd.f32 %v3762, 1.0
    %v3764 = vrcp.pop %v3763
    %v3765 = vmul.f32 1.0, %v3764
    %v3766 = vsub.f32 %v3757, %v3755
    %v3767 = vmul.f32 %v3765, %v3766
    %v3768 = vadd.f32 %v3755, %v3767
    %v3769 = vmul.f32 %v3768, %v126
    %3770 = vrot.lane.b32.xlu0 %v3769, 12
    %v3771 = vpop.permute.xlu0 %3770
    %v3772 = vadd.f32 %v3492, %v3771
    %3773 = vset.pattern.permute.xlu0 13
    %3774 = vperm.xlu0 %3773, %v134
    %v3775 = vpop.permute.xlu0 %3774
    %v3777 = vmul.f32 %v3775, %v132
    %v3779 = vsel %vm141, %v3587, 0
    %3781 = vmatprep.subr.mxu0 0.0
    %3782 = vmatpush1.msra.mxu0 %v83
    %3783 = vmatprep.subr.mxu0 0.0
    %3784 = vmatpush1.msra.mxu0 %v84
    %3785 = vmatprep.subr.mxu0 0.0
    %3786 = vmatpush1.msra.mxu0 %v85
    %3787 = vmatprep.subr.mxu0 0.0
    %3788 = vmatpush1.msra.mxu0 %v86
    %3789 = vmatprep.subr.mxu0 0.0
    %3790 = vmatpush1.msra.mxu0 0.0
    %3791 = vmatprep.subr.mxu0 0.0
    %3792 = vmatpush1.msra.mxu0 0.0
    %3793 = vmatprep.subr.mxu0 0.0
    %3794 = vmatpush1.msra.mxu0 0.0
    %3795 = vmatprep.subr.mxu0 0.0
    %3796 = vmatpush1.msra.mxu0 0.0
    %3797 = vmatprep.subr.mxu0 0.0
    %3798 = vmatpush1.msra.mxu0 0.0
    %3799 = vmatprep.subr.mxu0 0.0
    %3800 = vmatpush1.msra.mxu0 0.0
    %3801 = vmatprep.subr.mxu0 0.0
    %3802 = vmatpush1.msra.mxu0 0.0
    %3803 = vmatprep.subr.mxu0 0.0
    %3804 = vmatpush1.msra.mxu0 0.0
    %3805 = vmatprep.subr.mxu0 0.0
    %3806 = vmatpush1.msra.mxu0 0.0
    %3807 = vmatprep.subr.mxu0 0.0
    %3808 = vmatpush1.msra.mxu0 0.0
    %3809 = vmatprep.subr.mxu0 0.0
    %3810 = vmatpush1.msra.mxu0 0.0
    %3811 = vmatprep.subr.mxu0 0.0
    %3812 = vmatpush1.msra.mxu0 0.0
    %3813 = vmatprep.subr.mxu0 0.0
    %3814 = vmatpush1.msra.mxu0 0.0
    %3815 = vmatprep.subr.mxu0 0.0
    %3816 = vmatpush1.msra.mxu0 0.0
    %3817 = vmatprep.subr.mxu0 0.0
    %3818 = vmatpush1.msra.mxu0 0.0
    %3819 = vmatprep.subr.mxu0 0.0
    %3820 = vmatpush1.msra.mxu0 0.0
    %3821 = vmatprep.subr.mxu0 0.0
    %3822 = vmatpush1.msra.mxu0 0.0
    %3823 = vmatprep.subr.mxu0 0.0
    %3824 = vmatpush1.msra.mxu0 0.0
    %3825 = vmatprep.subr.mxu0 0.0
    %3826 = vmatpush1.msra.mxu0 0.0
    %3827 = vmatprep.subr.mxu0 0.0
    %3828 = vmatpush1.msra.mxu0 0.0
    %3829 = vmatprep.subr.mxu0 0.0
    %3830 = vmatpush1.msra.mxu0 0.0
    %3831 = vmatprep.subr.mxu0 0.0
    %3832 = vmatpush1.msra.mxu0 0.0
    %3833 = vmatprep.subr.mxu0 0.0
    %3834 = vmatpush1.msra.mxu0 0.0
    %3835 = vmatprep.subr.mxu0 0.0
    %3836 = vmatpush1.msra.mxu0 0.0
    %3837 = vmatprep.subr.mxu0 0.0
    %3838 = vmatpush1.msra.mxu0 0.0
    %3839 = vmatprep.subr.mxu0 0.0
    %3840 = vmatpush1.msra.mxu0 0.0
    %3841 = vmatprep.subr.mxu0 0.0
    %3842 = vmatpush1.msra.mxu0 0.0
    %3843 = vmatprep.subr.mxu0 0.0
    %3844 = vmatpush1.msra.mxu0 0.0
    %3845 = vmatprep.mubr.f32.mxu0 0.0
    %3846 = vmatmul.mubr.f32.gmra.mrb[0].mxu0 %v3779
    %v3847 = vpop.f32.mrb[0].mxu0
    %v3848 = vadd.f32 0.0, %v3847
    %v3849 = vpop.f32.mrb[0].mxu0
    %3850 = vdwg.mxu0
    %v3851 = vadd.f32 %v3777, %v3848
    %v3852 = vadd.f32 %v3851, %v100
    %v3853 = vtanh.pop %v3852
    %3854 = vrot.lane.b32.xlu0 %v3853, 96
    %v3855 = vpop.permute.xlu0 %3854
    %3856 = vrot.lane.b32.xlu0 %v3852, 64
    %v3857 = vpop.permute.xlu0 %3856
    %v3858 = vxor.u32 %v3857, 2147483648
    %v3859 = vmul.f32 %v3858, 1.442695
    %v3860 = vpow.pop %v3859
    %v3861 = vadd.f32 %v3860, 1.0
    %v3862 = vrcp.pop %v3861
    %v3863 = vmul.f32 1.0, %v3862
    %v3864 = vsub.f32 %v3855, %v3853
    %v3865 = vmul.f32 %v3863, %v3864
    %v3866 = vadd.f32 %v3853, %v3865
    %v3867 = vmul.f32 %v3866, %v120
    %3868 = vrot.lane.b32.xlu0 %v3678, 9
    %v3869 = vpop.permute.xlu0 %3868
    %v3870 = vadd.f32 %v3867, %v3869
    %v3872 = vsel %vm141, %v3870, 0
    %3874 = vmatprep.subr.mxu0 0.0
    %3875 = vmatpush1.msra.mxu0 %v87
    %3876 = vmatprep.subr.mxu0 0.0
    %3877 = vmatpush1.msra.mxu0 %v88
    %3878 = vmatprep.subr.mxu0 0.0
    %3879 = vmatpush1.msra.mxu0 %v89
    %3880 = vmatprep.subr.mxu0 0.0
    %3881 = vmatpush1.msra.mxu0 %v90
    %3882 = vmatprep.subr.mxu0 0.0
    %3883 = vmatpush1.msra.mxu0 0.0
    %3884 = vmatprep.subr.mxu0 0.0
    %3885 = vmatpush1.msra.mxu0 0.0
    %3886 = vmatprep.subr.mxu0 0.0
    %3887 = vmatpush1.msra.mxu0 0.0
    %3888 = vmatprep.subr.mxu0 0.0
    %3889 = vmatpush1.msra.mxu0 0.0
    %3890 = vmatprep.subr.mxu0 0.0
    %3891 = vmatpush1.msra.mxu0 0.0
    %3892 = vmatprep.subr.mxu0 0.0
    %3893 = vmatpush1.msra.mxu0 0.0
    %3894 = vmatprep.subr.mxu0 0.0
    %3895 = vmatpush1.msra.mxu0 0.0
    %3896 = vmatprep.subr.mxu0 0.0
    %3897 = vmatpush1.msra.mxu0 0.0
    %3898 = vmatprep.subr.mxu0 0.0
    %3899 = vmatpush1.msra.mxu0 0.0
    %3900 = vmatprep.subr.mxu0 0.0
    %3901 = vmatpush1.msra.mxu0 0.0
    %3902 = vmatprep.subr.mxu0 0.0
    %3903 = vmatpush1.msra.mxu0 0.0
    %3904 = vmatprep.subr.mxu0 0.0
    %3905 = vmatpush1.msra.mxu0 0.0
    %3906 = vmatprep.subr.mxu0 0.0
    %3907 = vmatpush1.msra.mxu0 0.0
    %3908 = vmatprep.subr.mxu0 0.0
    %3909 = vmatpush1.msra.mxu0 0.0
    %3910 = vmatprep.subr.mxu0 0.0
    %3911 = vmatpush1.msra.mxu0 0.0
    %3912 = vmatprep.subr.mxu0 0.0
    %3913 = vmatpush1.msra.mxu0 0.0
    %3914 = vmatprep.subr.mxu0 0.0
    %3915 = vmatpush1.msra.mxu0 0.0
    %3916 = vmatprep.subr.mxu0 0.0
    %3917 = vmatpush1.msra.mxu0 0.0
    %3918 = vmatprep.subr.mxu0 0.0
    %3919 = vmatpush1.msra.mxu0 0.0
    %3920 = vmatprep.subr.mxu0 0.0
    %3921 = vmatpush1.msra.mxu0 0.0
    %3922 = vmatprep.subr.mxu0 0.0
    %3923 = vmatpush1.msra.mxu0 0.0
    %3924 = vmatprep.subr.mxu0 0.0
    %3925 = vmatpush1.msra.mxu0 0.0
    %3926 = vmatprep.subr.mxu0 0.0
    %3927 = vmatpush1.msra.mxu0 0.0
    %3928 = vmatprep.subr.mxu0 0.0
    %3929 = vmatpush1.msra.mxu0 0.0
    %3930 = vmatprep.subr.mxu0 0.0
    %3931 = vmatpush1.msra.mxu0 0.0
    %3932 = vmatprep.subr.mxu0 0.0
    %3933 = vmatpush1.msra.mxu0 0.0
    %3934 = vmatprep.subr.mxu0 0.0
    %3935 = vmatpush1.msra.mxu0 0.0
    %3936 = vmatprep.subr.mxu0 0.0
    %3937 = vmatpush1.msra.mxu0 0.0
    %3938 = vmatprep.mubr.f32.mxu0 0.0
    %3939 = vmatmul.mubr.f32.gmra.mrb[0].mxu0 %v3872
    %v3940 = vpop.f32.mrb[0].mxu0
    %v3941 = vadd.f32 %v107, %v3940
    %v3942 = vpop.f32.mrb[0].mxu0
    %3943 = vdwg.mxu0
    %v3944 = vtanh.pop %v3941
    %3945 = vrot.lane.b32.xlu0 %v3944, 96
    %v3946 = vpop.permute.xlu0 %3945
    %3947 = vrot.lane.b32.xlu0 %v3941, 64
    %v3948 = vpop.permute.xlu0 %3947
    %v3949 = vxor.u32 %v3948, 2147483648
    %v3950 = vmul.f32 %v3949, 1.442695
    %v3951 = vpow.pop %v3950
    %v3952 = vadd.f32 %v3951, 1.0
    %v3953 = vrcp.pop %v3952
    %v3954 = vmul.f32 1.0, %v3953
    %v3955 = vsub.f32 %v3946, %v3944
    %v3956 = vmul.f32 %v3954, %v3955
    %v3957 = vadd.f32 %v3944, %v3956
    %v3958 = vmul.f32 %v3957, %v123
    %3959 = vrot.lane.b32.xlu0 %v3769, 6
    %v3960 = vpop.permute.xlu0 %3959
    %v3961 = vadd.f32 %v3958, %v3960
    %v3963 = vsel %vm141, %v3961, 0
    %3965 = vmatprep.subr.mxu0 0.0
    %3966 = vmatpush1.msra.mxu0 %v91
    %3967 = vmatprep.subr.mxu0 0.0
    %3968 = vmatpush1.msra.mxu0 %v92
    %3969 = vmatprep.subr.mxu0 0.0
    %3970 = vmatpush1.msra.mxu0 %v93
    %3971 = vmatprep.subr.mxu0 0.0
    %3972 = vmatpush1.msra.mxu0 %v94
    %3973 = vmatprep.subr.mxu0 0.0
    %3974 = vmatpush1.msra.mxu0 0.0
    %3975 = vmatprep.subr.mxu0 0.0
    %3976 = vmatpush1.msra.mxu0 0.0
    %3977 = vmatprep.subr.mxu0 0.0
    %3978 = vmatpush1.msra.mxu0 0.0
    %3979 = vmatprep.subr.mxu0 0.0
    %3980 = vmatpush1.msra.mxu0 0.0
    %3981 = vmatprep.subr.mxu0 0.0
    %3982 = vmatpush1.msra.mxu0 0.0
    %3983 = vmatprep.subr.mxu0 0.0
    %3984 = vmatpush1.msra.mxu0 0.0
    %3985 = vmatprep.subr.mxu0 0.0
    %3986 = vmatpush1.msra.mxu0 0.0
    %3987 = vmatprep.subr.mxu0 0.0
    %3988 = vmatpush1.msra.mxu0 0.0
    %3989 = vmatprep.subr.mxu0 0.0
    %3990 = vmatpush1.msra.mxu0 0.0
    %3991 = vmatprep.subr.mxu0 0.0
    %3992 = vmatpush1.msra.mxu0 0.0
    %3993 = vmatprep.subr.mxu0 0.0
    %3994 = vmatpush1.msra.mxu0 0.0
    %3995 = vmatprep.subr.mxu0 0.0
    %3996 = vmatpush1.msra.mxu0 0.0
    %3997 = vmatprep.subr.mxu0 0.0
    %3998 = vmatpush1.msra.mxu0 0.0
    %3999 = vmatprep.subr.mxu0 0.0
    %4000 = vmatpush1.msra.mxu0 0.0
    %4001 = vmatprep.subr.mxu0 0.0
    %4002 = vmatpush1.msra.mxu0 0.0
    %4003 = vmatprep.subr.mxu0 0.0
    %4004 = vmatpush1.msra.mxu0 0.0
    %4005 = vmatprep.subr.mxu0 0.0
    %4006 = vmatpush1.msra.mxu0 0.0
    %4007 = vmatprep.subr.mxu0 0.0
    %4008 = vmatpush1.msra.mxu0 0.0
    %4009 = vmatprep.subr.mxu0 0.0
    %4010 = vmatpush1.msra.mxu0 0.0
    %4011 = vmatprep.subr.mxu0 0.0
    %4012 = vmatpush1.msra.mxu0 0.0
    %4013 = vmatprep.subr.mxu0 0.0
    %4014 = vmatpush1.msra.mxu0 0.0
    %4015 = vmatprep.subr.mxu0 0.0
    %4016 = vmatpush1.msra.mxu0 0.0
    %4017 = vmatprep.subr.mxu0 0.0
    %4018 = vmatpush1.msra.mxu0 0.0
    %4019 = vmatprep.subr.mxu0 0.0
    %4020 = vmatpush1.msra.mxu0 0.0
    %4021 = vmatprep.subr.mxu0 0.0
    %4022 = vmatpush1.msra.mxu0 0.0
    %4023 = vmatprep.subr.mxu0 0.0
    %4024 = vmatpush1.msra.mxu0 0.0
    %4025 = vmatprep.subr.mxu0 0.0
    %4026 = vmatpush1.msra.mxu0 0.0
    %4027 = vmatprep.subr.mxu0 0.0
    %4028 = vmatpush1.msra.mxu0 0.0
    %4029 = vmatprep.mubr.f32.mxu0 0.0
    %4030 = vmatmul.mubr.f32.gmra.mrb[0].mxu0 %v3963
    %v4031 = vpop.f32.mrb[0].mxu0
    %v4032 = vadd.f32 %v114, %v4031
    %v4033 = vpop.f32.mrb[0].mxu0
    %4034 = vdwg.mxu0
    %v4035 = vtanh.pop %v4032
    %4036 = vrot.lane.b32.xlu0 %v4035, 96
    %v4037 = vpop.permute.xlu0 %4036
    %4038 = vrot.lane.b32.xlu0 %v4032, 64
    %v4039 = vpop.permute.xlu0 %4038
    %v4040 = vxor.u32 %v4039, 2147483648
    %v4041 = vmul.f32 %v4040, 1.442695
    %v4042 = vpow.pop %v4041
    %v4043 = vadd.f32 %v4042, 1.0
    %v4044 = vrcp.pop %v4043
    %v4045 = vmul.f32 1.0, %v4044
    %v4046 = vsub.f32 %v4037, %v4035
    %v4047 = vmul.f32 %v4045, %v4046
    %v4048 = vadd.f32 %v4035, %v4047
    %v4049 = vmul.f32 %v4048, %v126
    %4050 = vrot.lane.b32.xlu0 %v4049, 13
    %v4051 = vpop.permute.xlu0 %4050
    %v4052 = vadd.f32 %v3772, %v4051
    %4053 = vset.pattern.permute.xlu0 14
    %4054 = vperm.xlu0 %4053, %v134
    %v4055 = vpop.permute.xlu0 %4054
    %v4057 = vmul.f32 %v4055, %v132
    %v4059 = vsel %vm141, %v3867, 0
    %4061 = vmatprep.subr.mxu0 0.0
    %4062 = vmatpush1.msra.mxu0 %v83
    %4063 = vmatprep.subr.mxu0 0.0
    %4064 = vmatpush1.msra.mxu0 %v84
    %4065 = vmatprep.subr.mxu0 0.0
    %4066 = vmatpush1.msra.mxu0 %v85
    %4067 = vmatprep.subr.mxu0 0.0
    %4068 = vmatpush1.msra.mxu0 %v86
    %4069 = vmatprep.subr.mxu0 0.0
    %4070 = vmatpush1.msra.mxu0 0.0
    %4071 = vmatprep.subr.mxu0 0.0
    %4072 = vmatpush1.msra.mxu0 0.0
    %4073 = vmatprep.subr.mxu0 0.0
    %4074 = vmatpush1.msra.mxu0 0.0
    %4075 = vmatprep.subr.mxu0 0.0
    %4076 = vmatpush1.msra.mxu0 0.0
    %4077 = vmatprep.subr.mxu0 0.0
    %4078 = vmatpush1.msra.mxu0 0.0
    %4079 = vmatprep.subr.mxu0 0.0
    %4080 = vmatpush1.msra.mxu0 0.0
    %4081 = vmatprep.subr.mxu0 0.0
    %4082 = vmatpush1.msra.mxu0 0.0
    %4083 = vmatprep.subr.mxu0 0.0
    %4084 = vmatpush1.msra.mxu0 0.0
    %4085 = vmatprep.subr.mxu0 0.0
    %4086 = vmatpush1.msra.mxu0 0.0
    %4087 = vmatprep.subr.mxu0 0.0
    %4088 = vmatpush1.msra.mxu0 0.0
    %4089 = vmatprep.subr.mxu0 0.0
    %4090 = vmatpush1.msra.mxu0 0.0
    %4091 = vmatprep.subr.mxu0 0.0
    %4092 = vmatpush1.msra.mxu0 0.0
    %4093 = vmatprep.subr.mxu0 0.0
    %4094 = vmatpush1.msra.mxu0 0.0
    %4095 = vmatprep.subr.mxu0 0.0
    %4096 = vmatpush1.msra.mxu0 0.0
    %4097 = vmatprep.subr.mxu0 0.0
    %4098 = vmatpush1.msra.mxu0 0.0
    %4099 = vmatprep.subr.mxu0 0.0
    %4100 = vmatpush1.msra.mxu0 0.0
    %4101 = vmatprep.subr.mxu0 0.0
    %4102 = vmatpush1.msra.mxu0 0.0
    %4103 = vmatprep.subr.mxu0 0.0
    %4104 = vmatpush1.msra.mxu0 0.0
    %4105 = vmatprep.subr.mxu0 0.0
    %4106 = vmatpush1.msra.mxu0 0.0
    %4107 = vmatprep.subr.mxu0 0.0
    %4108 = vmatpush1.msra.mxu0 0.0
    %4109 = vmatprep.subr.mxu0 0.0
    %4110 = vmatpush1.msra.mxu0 0.0
    %4111 = vmatprep.subr.mxu0 0.0
    %4112 = vmatpush1.msra.mxu0 0.0
    %4113 = vmatprep.subr.mxu0 0.0
    %4114 = vmatpush1.msra.mxu0 0.0
    %4115 = vmatprep.subr.mxu0 0.0
    %4116 = vmatpush1.msra.mxu0 0.0
    %4117 = vmatprep.subr.mxu0 0.0
    %4118 = vmatpush1.msra.mxu0 0.0
    %4119 = vmatprep.subr.mxu0 0.0
    %4120 = vmatpush1.msra.mxu0 0.0
    %4121 = vmatprep.subr.mxu0 0.0
    %4122 = vmatpush1.msra.mxu0 0.0
    %4123 = vmatprep.subr.mxu0 0.0
    %4124 = vmatpush1.msra.mxu0 0.0
    %4125 = vmatprep.mubr.f32.mxu0 0.0
    %4126 = vmatmul.mubr.f32.gmra.mrb[0].mxu0 %v4059
    %v4127 = vpop.f32.mrb[0].mxu0
    %v4128 = vadd.f32 0.0, %v4127
    %v4129 = vpop.f32.mrb[0].mxu0
    %4130 = vdwg.mxu0
    %v4131 = vadd.f32 %v4057, %v4128
    %v4132 = vadd.f32 %v4131, %v100
    %v4133 = vtanh.pop %v4132
    %4134 = vrot.lane.b32.xlu0 %v4133, 96
    %v4135 = vpop.permute.xlu0 %4134
    %4136 = vrot.lane.b32.xlu0 %v4132, 64
    %v4137 = vpop.permute.xlu0 %4136
    %v4138 = vxor.u32 %v4137, 2147483648
    %v4139 = vmul.f32 %v4138, 1.442695
    %v4140 = vpow.pop %v4139
    %v4141 = vadd.f32 %v4140, 1.0
    %v4142 = vrcp.pop %v4141
    %v4143 = vmul.f32 1.0, %v4142
    %v4144 = vsub.f32 %v4135, %v4133
    %v4145 = vmul.f32 %v4143, %v4144
    %v4146 = vadd.f32 %v4133, %v4145
    %v4147 = vmul.f32 %v4146, %v120
    %4148 = vrot.lane.b32.xlu0 %v3958, 9
    %v4149 = vpop.permute.xlu0 %4148
    %v4150 = vadd.f32 %v4147, %v4149
    %v4152 = vsel %vm141, %v4150, 0
    %4154 = vmatprep.subr.mxu0 0.0
    %4155 = vmatpush1.msra.mxu0 %v87
    %4156 = vmatprep.subr.mxu0 0.0
    %4157 = vmatpush1.msra.mxu0 %v88
    %4158 = vmatprep.subr.mxu0 0.0
    %4159 = vmatpush1.msra.mxu0 %v89
    %4160 = vmatprep.subr.mxu0 0.0
    %4161 = vmatpush1.msra.mxu0 %v90
    %4162 = vmatprep.subr.mxu0 0.0
    %4163 = vmatpush1.msra.mxu0 0.0
    %4164 = vmatprep.subr.mxu0 0.0
    %4165 = vmatpush1.msra.mxu0 0.0
    %4166 = vmatprep.subr.mxu0 0.0
    %4167 = vmatpush1.msra.mxu0 0.0
    %4168 = vmatprep.subr.mxu0 0.0
    %4169 = vmatpush1.msra.mxu0 0.0
    %4170 = vmatprep.subr.mxu0 0.0
    %4171 = vmatpush1.msra.mxu0 0.0
    %4172 = vmatprep.subr.mxu0 0.0
    %4173 = vmatpush1.msra.mxu0 0.0
    %4174 = vmatprep.subr.mxu0 0.0
    %4175 = vmatpush1.msra.mxu0 0.0
    %4176 = vmatprep.subr.mxu0 0.0
    %4177 = vmatpush1.msra.mxu0 0.0
    %4178 = vmatprep.subr.mxu0 0.0
    %4179 = vmatpush1.msra.mxu0 0.0
    %4180 = vmatprep.subr.mxu0 0.0
    %4181 = vmatpush1.msra.mxu0 0.0
    %4182 = vmatprep.subr.mxu0 0.0
    %4183 = vmatpush1.msra.mxu0 0.0
    %4184 = vmatprep.subr.mxu0 0.0
    %4185 = vmatpush1.msra.mxu0 0.0
    %4186 = vmatprep.subr.mxu0 0.0
    %4187 = vmatpush1.msra.mxu0 0.0
    %4188 = vmatprep.subr.mxu0 0.0
    %4189 = vmatpush1.msra.mxu0 0.0
    %4190 = vmatprep.subr.mxu0 0.0
    %4191 = vmatpush1.msra.mxu0 0.0
    %4192 = vmatprep.subr.mxu0 0.0
    %4193 = vmatpush1.msra.mxu0 0.0
    %4194 = vmatprep.subr.mxu0 0.0
    %4195 = vmatpush1.msra.mxu0 0.0
    %4196 = vmatprep.subr.mxu0 0.0
    %4197 = vmatpush1.msra.mxu0 0.0
    %4198 = vmatprep.subr.mxu0 0.0
    %4199 = vmatpush1.msra.mxu0 0.0
    %4200 = vmatprep.subr.mxu0 0.0
    %4201 = vmatpush1.msra.mxu0 0.0
    %4202 = vmatprep.subr.mxu0 0.0
    %4203 = vmatpush1.msra.mxu0 0.0
    %4204 = vmatprep.subr.mxu0 0.0
    %4205 = vmatpush1.msra.mxu0 0.0
    %4206 = vmatprep.subr.mxu0 0.0
    %4207 = vmatpush1.msra.mxu0 0.0
    %4208 = vmatprep.subr.mxu0 0.0
    %4209 = vmatpush1.msra.mxu0 0.0
    %4210 = vmatprep.subr.mxu0 0.0
    %4211 = vmatpush1.msra.mxu0 0.0
    %4212 = vmatprep.subr.mxu0 0.0
    %4213 = vmatpush1.msra.mxu0 0.0
    %4214 = vmatprep.subr.mxu0 0.0
    %4215 = vmatpush1.msra.mxu0 0.0
    %4216 = vmatprep.subr.mxu0 0.0
    %4217 = vmatpush1.msra.mxu0 0.0
    %4218 = vmatprep.mubr.f32.mxu0 0.0
    %4219 = vmatmul.mubr.f32.gmra.mrb[0].mxu0 %v4152
    %v4220 = vpop.f32.mrb[0].mxu0
    %v4221 = vadd.f32 %v107, %v4220
    %v4222 = vpop.f32.mrb[0].mxu0
    %4223 = vdwg.mxu0
    %v4224 = vtanh.pop %v4221
    %4225 = vrot.lane.b32.xlu0 %v4224, 96
    %v4226 = vpop.permute.xlu0 %4225
    %4227 = vrot.lane.b32.xlu0 %v4221, 64
    %v4228 = vpop.permute.xlu0 %4227
    %v4229 = vxor.u32 %v4228, 2147483648
    %v4230 = vmul.f32 %v4229, 1.442695
    %v4231 = vpow.pop %v4230
    %v4232 = vadd.f32 %v4231, 1.0
    %v4233 = vrcp.pop %v4232
    %v4234 = vmul.f32 1.0, %v4233
    %v4235 = vsub.f32 %v4226, %v4224
    %v4236 = vmul.f32 %v4234, %v4235
    %v4237 = vadd.f32 %v4224, %v4236
    %v4238 = vmul.f32 %v4237, %v123
    %4239 = vrot.lane.b32.xlu0 %v4049, 6
    %v4240 = vpop.permute.xlu0 %4239
    %v4241 = vadd.f32 %v4238, %v4240
    %v4243 = vsel %vm141, %v4241, 0
    %4245 = vmatprep.subr.mxu0 0.0
    %4246 = vmatpush1.msra.mxu0 %v91
    %4247 = vmatprep.subr.mxu0 0.0
    %4248 = vmatpush1.msra.mxu0 %v92
    %4249 = vmatprep.subr.mxu0 0.0
    %4250 = vmatpush1.msra.mxu0 %v93
    %4251 = vmatprep.subr.mxu0 0.0
    %4252 = vmatpush1.msra.mxu0 %v94
    %4253 = vmatprep.subr.mxu0 0.0
    %4254 = vmatpush1.msra.mxu0 0.0
    %4255 = vmatprep.subr.mxu0 0.0
    %4256 = vmatpush1.msra.mxu0 0.0
    %4257 = vmatprep.subr.mxu0 0.0
    %4258 = vmatpush1.msra.mxu0 0.0
    %4259 = vmatprep.subr.mxu0 0.0
    %4260 = vmatpush1.msra.mxu0 0.0
    %4261 = vmatprep.subr.mxu0 0.0
    %4262 = vmatpush1.msra.mxu0 0.0
    %4263 = vmatprep.subr.mxu0 0.0
    %4264 = vmatpush1.msra.mxu0 0.0
    %4265 = vmatprep.subr.mxu0 0.0
    %4266 = vmatpush1.msra.mxu0 0.0
    %4267 = vmatprep.subr.mxu0 0.0
    %4268 = vmatpush1.msra.mxu0 0.0
    %4269 = vmatprep.subr.mxu0 0.0
    %4270 = vmatpush1.msra.mxu0 0.0
    %4271 = vmatprep.subr.mxu0 0.0
    %4272 = vmatpush1.msra.mxu0 0.0
    %4273 = vmatprep.subr.mxu0 0.0
    %4274 = vmatpush1.msra.mxu0 0.0
    %4275 = vmatprep.subr.mxu0 0.0
    %4276 = vmatpush1.msra.mxu0 0.0
    %4277 = vmatprep.subr.mxu0 0.0
    %4278 = vmatpush1.msra.mxu0 0.0
    %4279 = vmatprep.subr.mxu0 0.0
    %4280 = vmatpush1.msra.mxu0 0.0
    %4281 = vmatprep.subr.mxu0 0.0
    %4282 = vmatpush1.msra.mxu0 0.0
    %4283 = vmatprep.subr.mxu0 0.0
    %4284 = vmatpush1.msra.mxu0 0.0
    %4285 = vmatprep.subr.mxu0 0.0
    %4286 = vmatpush1.msra.mxu0 0.0
    %4287 = vmatprep.subr.mxu0 0.0
    %4288 = vmatpush1.msra.mxu0 0.0
    %4289 = vmatprep.subr.mxu0 0.0
    %4290 = vmatpush1.msra.mxu0 0.0
    %4291 = vmatprep.subr.mxu0 0.0
    %4292 = vmatpush1.msra.mxu0 0.0
    %4293 = vmatprep.subr.mxu0 0.0
    %4294 = vmatpush1.msra.mxu0 0.0
    %4295 = vmatprep.subr.mxu0 0.0
    %4296 = vmatpush1.msra.mxu0 0.0
    %4297 = vmatprep.subr.mxu0 0.0
    %4298 = vmatpush1.msra.mxu0 0.0
    %4299 = vmatprep.subr.mxu0 0.0
    %4300 = vmatpush1.msra.mxu0 0.0
    %4301 = vmatprep.subr.mxu0 0.0
    %4302 = vmatpush1.msra.mxu0 0.0
    %4303 = vmatprep.subr.mxu0 0.0
    %4304 = vmatpush1.msra.mxu0 0.0
    %4305 = vmatprep.subr.mxu0 0.0
    %4306 = vmatpush1.msra.mxu0 0.0
    %4307 = vmatprep.subr.mxu0 0.0
    %4308 = vmatpush1.msra.mxu0 0.0
    %4309 = vmatprep.mubr.f32.mxu0 0.0
    %4310 = vmatmul.mubr.f32.gmra.mrb[0].mxu0 %v4243
    %v4311 = vpop.f32.mrb[0].mxu0
    %v4312 = vadd.f32 %v114, %v4311
    %v4313 = vpop.f32.mrb[0].mxu0
    %4314 = vdwg.mxu0
    %v4315 = vtanh.pop %v4312
    %4316 = vrot.lane.b32.xlu0 %v4315, 96
    %v4317 = vpop.permute.xlu0 %4316
    %4318 = vrot.lane.b32.xlu0 %v4312, 64
    %v4319 = vpop.permute.xlu0 %4318
    %v4320 = vxor.u32 %v4319, 2147483648
    %v4321 = vmul.f32 %v4320, 1.442695
    %v4322 = vpow.pop %v4321
    %v4323 = vadd.f32 %v4322, 1.0
    %v4324 = vrcp.pop %v4323
    %v4325 = vmul.f32 1.0, %v4324
    %v4326 = vsub.f32 %v4317, %v4315
    %v4327 = vmul.f32 %v4325, %v4326
    %v4328 = vadd.f32 %v4315, %v4327
    %v4329 = vmul.f32 %v4328, %v126
    %4330 = vrot.lane.b32.xlu0 %v4329, 14
    %v4331 = vpop.permute.xlu0 %4330
    %v4332 = vadd.f32 %v4052, %v4331
    %4333 = vset.pattern.permute.xlu0 15
    %4334 = vperm.xlu0 %4333, %v134
    %v4335 = vpop.permute.xlu0 %4334
    %v4337 = vmul.f32 %v4335, %v132
    %v4339 = vsel %vm141, %v4147, 0
    %4341 = vmatprep.subr.mxu0 0.0
    %4342 = vmatpush1.msra.mxu0 %v83
    %4343 = vmatprep.subr.mxu0 0.0
    %4344 = vmatpush1.msra.mxu0 %v84
    %4345 = vmatprep.subr.mxu0 0.0
    %4346 = vmatpush1.msra.mxu0 %v85
    %4347 = vmatprep.subr.mxu0 0.0
    %4348 = vmatpush1.msra.mxu0 %v86
    %4349 = vmatprep.subr.mxu0 0.0
    %4350 = vmatpush1.msra.mxu0 0.0
    %4351 = vmatprep.subr.mxu0 0.0
    %4352 = vmatpush1.msra.mxu0 0.0
    %4353 = vmatprep.subr.mxu0 0.0
    %4354 = vmatpush1.msra.mxu0 0.0
    %4355 = vmatprep.subr.mxu0 0.0
    %4356 = vmatpush1.msra.mxu0 0.0
    %4357 = vmatprep.subr.mxu0 0.0
    %4358 = vmatpush1.msra.mxu0 0.0
    %4359 = vmatprep.subr.mxu0 0.0
    %4360 = vmatpush1.msra.mxu0 0.0
    %4361 = vmatprep.subr.mxu0 0.0
    %4362 = vmatpush1.msra.mxu0 0.0
    %4363 = vmatprep.subr.mxu0 0.0
    %4364 = vmatpush1.msra.mxu0 0.0
    %4365 = vmatprep.subr.mxu0 0.0
    %4366 = vmatpush1.msra.mxu0 0.0
    %4367 = vmatprep.subr.mxu0 0.0
    %4368 = vmatpush1.msra.mxu0 0.0
    %4369 = vmatprep.subr.mxu0 0.0
    %4370 = vmatpush1.msra.mxu0 0.0
    %4371 = vmatprep.subr.mxu0 0.0
    %4372 = vmatpush1.msra.mxu0 0.0
    %4373 = vmatprep.subr.mxu0 0.0
    %4374 = vmatpush1.msra.mxu0 0.0
    %4375 = vmatprep.subr.mxu0 0.0
    %4376 = vmatpush1.msra.mxu0 0.0
    %4377 = vmatprep.subr.mxu0 0.0
    %4378 = vmatpush1.msra.mxu0 0.0
    %4379 = vmatprep.subr.mxu0 0.0
    %4380 = vmatpush1.msra.mxu0 0.0
    %4381 = vmatprep.subr.mxu0 0.0
    %4382 = vmatpush1.msra.mxu0 0.0
    %4383 = vmatprep.subr.mxu0 0.0
    %4384 = vmatpush1.msra.mxu0 0.0
    %4385 = vmatprep.subr.mxu0 0.0
    %4386 = vmatpush1.msra.mxu0 0.0
    %4387 = vmatprep.subr.mxu0 0.0
    %4388 = vmatpush1.msra.mxu0 0.0
    %4389 = vmatprep.subr.mxu0 0.0
    %4390 = vmatpush1.msra.mxu0 0.0
    %4391 = vmatprep.subr.mxu0 0.0
    %4392 = vmatpush1.msra.mxu0 0.0
    %4393 = vmatprep.subr.mxu0 0.0
    %4394 = vmatpush1.msra.mxu0 0.0
    %4395 = vmatprep.subr.mxu0 0.0
    %4396 = vmatpush1.msra.mxu0 0.0
    %4397 = vmatprep.subr.mxu0 0.0
    %4398 = vmatpush1.msra.mxu0 0.0
    %4399 = vmatprep.subr.mxu0 0.0
    %4400 = vmatpush1.msra.mxu0 0.0
    %4401 = vmatprep.subr.mxu0 0.0
    %4402 = vmatpush1.msra.mxu0 0.0
    %4403 = vmatprep.subr.mxu0 0.0
    %4404 = vmatpush1.msra.mxu0 0.0
    %4405 = vmatprep.mubr.f32.mxu0 0.0
    %4406 = vmatmul.mubr.f32.gmra.mrb[0].mxu0 %v4339
    %v4407 = vpop.f32.mrb[0].mxu0
    %v4408 = vadd.f32 0.0, %v4407
    %v4409 = vpop.f32.mrb[0].mxu0
    %4410 = vdwg.mxu0
    %v4411 = vadd.f32 %v4337, %v4408
    %v4412 = vadd.f32 %v4411, %v100
    %v4413 = vtanh.pop %v4412
    %4414 = vrot.lane.b32.xlu0 %v4413, 96
    %v4415 = vpop.permute.xlu0 %4414
    %4416 = vrot.lane.b32.xlu0 %v4412, 64
    %v4417 = vpop.permute.xlu0 %4416
    %v4418 = vxor.u32 %v4417, 2147483648
    %v4419 = vmul.f32 %v4418, 1.442695
    %v4420 = vpow.pop %v4419
    %v4421 = vadd.f32 %v4420, 1.0
    %v4422 = vrcp.pop %v4421
    %v4423 = vmul.f32 1.0, %v4422
    %v4424 = vsub.f32 %v4415, %v4413
    %v4425 = vmul.f32 %v4423, %v4424
    %v4426 = vadd.f32 %v4413, %v4425
    %v4427 = vmul.f32 %v4426, %v120
    %4428 = vrot.lane.b32.xlu0 %v4238, 9
    %v4429 = vpop.permute.xlu0 %4428
    %v4430 = vadd.f32 %v4427, %v4429
    %v4432 = vsel %vm141, %v4430, 0
    %4434 = vmatprep.subr.mxu0 0.0
    %4435 = vmatpush1.msra.mxu0 %v87
    %4436 = vmatprep.subr.mxu0 0.0
    %4437 = vmatpush1.msra.mxu0 %v88
    %4438 = vmatprep.subr.mxu0 0.0
    %4439 = vmatpush1.msra.mxu0 %v89
    %4440 = vmatprep.subr.mxu0 0.0
    %4441 = vmatpush1.msra.mxu0 %v90
    %4442 = vmatprep.subr.mxu0 0.0
    %4443 = vmatpush1.msra.mxu0 0.0
    %4444 = vmatprep.subr.mxu0 0.0
    %4445 = vmatpush1.msra.mxu0 0.0
    %4446 = vmatprep.subr.mxu0 0.0
    %4447 = vmatpush1.msra.mxu0 0.0
    %4448 = vmatprep.subr.mxu0 0.0
    %4449 = vmatpush1.msra.mxu0 0.0
    %4450 = vmatprep.subr.mxu0 0.0
    %4451 = vmatpush1.msra.mxu0 0.0
    %4452 = vmatprep.subr.mxu0 0.0
    %4453 = vmatpush1.msra.mxu0 0.0
    %4454 = vmatprep.subr.mxu0 0.0
    %4455 = vmatpush1.msra.mxu0 0.0
    %4456 = vmatprep.subr.mxu0 0.0
    %4457 = vmatpush1.msra.mxu0 0.0
    %4458 = vmatprep.subr.mxu0 0.0
    %4459 = vmatpush1.msra.mxu0 0.0
    %4460 = vmatprep.subr.mxu0 0.0
    %4461 = vmatpush1.msra.mxu0 0.0
    %4462 = vmatprep.subr.mxu0 0.0
    %4463 = vmatpush1.msra.mxu0 0.0
    %4464 = vmatprep.subr.mxu0 0.0
    %4465 = vmatpush1.msra.mxu0 0.0
    %4466 = vmatprep.subr.mxu0 0.0
    %4467 = vmatpush1.msra.mxu0 0.0
    %4468 = vmatprep.subr.mxu0 0.0
    %4469 = vmatpush1.msra.mxu0 0.0
    %4470 = vmatprep.subr.mxu0 0.0
    %4471 = vmatpush1.msra.mxu0 0.0
    %4472 = vmatprep.subr.mxu0 0.0
    %4473 = vmatpush1.msra.mxu0 0.0
    %4474 = vmatprep.subr.mxu0 0.0
    %4475 = vmatpush1.msra.mxu0 0.0
    %4476 = vmatprep.subr.mxu0 0.0
    %4477 = vmatpush1.msra.mxu0 0.0
    %4478 = vmatprep.subr.mxu0 0.0
    %4479 = vmatpush1.msra.mxu0 0.0
    %4480 = vmatprep.subr.mxu0 0.0
    %4481 = vmatpush1.msra.mxu0 0.0
    %4482 = vmatprep.subr.mxu0 0.0
    %4483 = vmatpush1.msra.mxu0 0.0
    %4484 = vmatprep.subr.mxu0 0.0
    %4485 = vmatpush1.msra.mxu0 0.0
    %4486 = vmatprep.subr.mxu0 0.0
    %4487 = vmatpush1.msra.mxu0 0.0
    %4488 = vmatprep.subr.mxu0 0.0
    %4489 = vmatpush1.msra.mxu0 0.0
    %4490 = vmatprep.subr.mxu0 0.0
    %4491 = vmatpush1.msra.mxu0 0.0
    %4492 = vmatprep.subr.mxu0 0.0
    %4493 = vmatpush1.msra.mxu0 0.0
    %4494 = vmatprep.subr.mxu0 0.0
    %4495 = vmatpush1.msra.mxu0 0.0
    %4496 = vmatprep.subr.mxu0 0.0
    %4497 = vmatpush1.msra.mxu0 0.0
    %4498 = vmatprep.mubr.f32.mxu0 0.0
    %4499 = vmatmul.mubr.f32.gmra.mrb[0].mxu0 %v4432
    %v4500 = vpop.f32.mrb[0].mxu0
    %v4501 = vadd.f32 %v107, %v4500
    %v4502 = vpop.f32.mrb[0].mxu0
    %4503 = vdwg.mxu0
    %v4504 = vtanh.pop %v4501
    %4505 = vrot.lane.b32.xlu0 %v4504, 96
    %v4506 = vpop.permute.xlu0 %4505
    %4507 = vrot.lane.b32.xlu0 %v4501, 64
    %v4508 = vpop.permute.xlu0 %4507
    %v4509 = vxor.u32 %v4508, 2147483648
    %v4510 = vmul.f32 %v4509, 1.442695
    %v4511 = vpow.pop %v4510
    %v4512 = vadd.f32 %v4511, 1.0
    %v4513 = vrcp.pop %v4512
    %v4514 = vmul.f32 1.0, %v4513
    %v4515 = vsub.f32 %v4506, %v4504
    %v4516 = vmul.f32 %v4514, %v4515
    %v4517 = vadd.f32 %v4504, %v4516
    %v4518 = vmul.f32 %v4517, %v123
    %4519 = vrot.lane.b32.xlu0 %v4329, 6
    %v4520 = vpop.permute.xlu0 %4519
    %v4521 = vadd.f32 %v4518, %v4520
    %v4523 = vsel %vm141, %v4521, 0
    %4525 = vmatprep.subr.mxu0 0.0
    %4526 = vmatpush1.msra.mxu0 %v91
    %4527 = vmatprep.subr.mxu0 0.0
    %4528 = vmatpush1.msra.mxu0 %v92
    %4529 = vmatprep.subr.mxu0 0.0
    %4530 = vmatpush1.msra.mxu0 %v93
    %4531 = vmatprep.subr.mxu0 0.0
    %4532 = vmatpush1.msra.mxu0 %v94
    %4533 = vmatprep.subr.mxu0 0.0
    %4534 = vmatpush1.msra.mxu0 0.0
    %4535 = vmatprep.subr.mxu0 0.0
    %4536 = vmatpush1.msra.mxu0 0.0
    %4537 = vmatprep.subr.mxu0 0.0
    %4538 = vmatpush1.msra.mxu0 0.0
    %4539 = vmatprep.subr.mxu0 0.0
    %4540 = vmatpush1.msra.mxu0 0.0
    %4541 = vmatprep.subr.mxu0 0.0
    %4542 = vmatpush1.msra.mxu0 0.0
    %4543 = vmatprep.subr.mxu0 0.0
    %4544 = vmatpush1.msra.mxu0 0.0
    %4545 = vmatprep.subr.mxu0 0.0
    %4546 = vmatpush1.msra.mxu0 0.0
    %4547 = vmatprep.subr.mxu0 0.0
    %4548 = vmatpush1.msra.mxu0 0.0
    %4549 = vmatprep.subr.mxu0 0.0
    %4550 = vmatpush1.msra.mxu0 0.0
    %4551 = vmatprep.subr.mxu0 0.0
    %4552 = vmatpush1.msra.mxu0 0.0
    %4553 = vmatprep.subr.mxu0 0.0
    %4554 = vmatpush1.msra.mxu0 0.0
    %4555 = vmatprep.subr.mxu0 0.0
    %4556 = vmatpush1.msra.mxu0 0.0
    %4557 = vmatprep.subr.mxu0 0.0
    %4558 = vmatpush1.msra.mxu0 0.0
    %4559 = vmatprep.subr.mxu0 0.0
    %4560 = vmatpush1.msra.mxu0 0.0
    %4561 = vmatprep.subr.mxu0 0.0
    %4562 = vmatpush1.msra.mxu0 0.0
    %4563 = vmatprep.subr.mxu0 0.0
    %4564 = vmatpush1.msra.mxu0 0.0
    %4565 = vmatprep.subr.mxu0 0.0
    %4566 = vmatpush1.msra.mxu0 0.0
    %4567 = vmatprep.subr.mxu0 0.0
    %4568 = vmatpush1.msra.mxu0 0.0
    %4569 = vmatprep.subr.mxu0 0.0
    %4570 = vmatpush1.msra.mxu0 0.0
    %4571 = vmatprep.subr.mxu0 0.0
    %4572 = vmatpush1.msra.mxu0 0.0
    %4573 = vmatprep.subr.mxu0 0.0
    %4574 = vmatpush1.msra.mxu0 0.0
    %4575 = vmatprep.subr.mxu0 0.0
    %4576 = vmatpush1.msra.mxu0 0.0
    %4577 = vmatprep.subr.mxu0 0.0
    %4578 = vmatpush1.msra.mxu0 0.0
    %4579 = vmatprep.subr.mxu0 0.0
    %4580 = vmatpush1.msra.mxu0 0.0
    %4581 = vmatprep.subr.mxu0 0.0
    %4582 = vmatpush1.msra.mxu0 0.0
    %4583 = vmatprep.subr.mxu0 0.0
    %4584 = vmatpush1.msra.mxu0 0.0
    %4585 = vmatprep.subr.mxu0 0.0
    %4586 = vmatpush1.msra.mxu0 0.0
    %4587 = vmatprep.subr.mxu0 0.0
    %4588 = vmatpush1.msra.mxu0 0.0
    %4589 = vmatprep.mubr.f32.mxu0 0.0
    %4590 = vmatmul.mubr.f32.gmra.mrb[0].mxu0 %v4523
    %v4591 = vpop.f32.mrb[0].mxu0
    %v4592 = vadd.f32 %v114, %v4591
    %v4593 = vpop.f32.mrb[0].mxu0
    %4594 = vdwg.mxu0
    %v4595 = vtanh.pop %v4592
    %4596 = vrot.lane.b32.xlu0 %v4595, 96
    %v4597 = vpop.permute.xlu0 %4596
    %4598 = vrot.lane.b32.xlu0 %v4592, 64
    %v4599 = vpop.permute.xlu0 %4598
    %v4600 = vxor.u32 %v4599, 2147483648
    %v4601 = vmul.f32 %v4600, 1.442695
    %v4602 = vpow.pop %v4601
    %v4603 = vadd.f32 %v4602, 1.0
    %v4604 = vrcp.pop %v4603
    %v4605 = vmul.f32 1.0, %v4604
    %v4606 = vsub.f32 %v4597, %v4595
    %v4607 = vmul.f32 %v4605, %v4606
    %v4608 = vadd.f32 %v4595, %v4607
    %v4609 = vmul.f32 %v4608, %v126
    %4610 = vrot.lane.b32.xlu0 %v4609, 15
    %v4611 = vpop.permute.xlu0 %4610
    %v4612 = vadd.f32 %v4332, %v4611
    %4613 = vst [vmem:[#allocation10] sm:$0xff] %v4612
    // Predicated region
    $region50: #{tpu_custom_call.1} parent=1 // pred_check
      _
    $region51: #{tpu_custom_call.1} parent=1 // pred_check_branch
      %4615 = sbr.rel (0) target = $region53
    $region52: #{tpu_custom_call.1} parent=1 // pred_region
      %s4617 = ssub.s32 128, 128
      %4618 = vsyncadd [#allocation4], %s4617
      %s4620 = sshll.u32 [#allocation10], 4
      %s4621 = int_to_ptr.vmem [resolvable:$true] %s4620
      %4623 = dma.vmem_to_hbm [thread:$0]  %s4621, 128, %s8, [#allocation4]
    $region53: #{tpu_custom_call.1} parent=1 // pred_fallthru
      _
    // Predicated region
    $region54: #{tpu_custom_call.1} parent=1 // pred_check
      _
    $region55: #{tpu_custom_call.1} parent=1 // pred_check_branch
      %4625 = sbr.rel (0) target = $region57
    $region56: #{tpu_custom_call.1} parent=1 // pred_region
      %4626 = dma.done [#allocation4], 128
    $region57: #{tpu_custom_call.1} parent=1 // pred_fallthru
      _
    %4627 = vsyncpa [#allocation3], 1
    %4628 = vsyncpa [#allocation6], 1
    %4629 = vsyncpa [#allocation9], 1
    %4630 = vsyncpa [#allocation4], 1

</llo_original>
